<compile_context>
chip_gen: v6e
topology: v6e:2x2x1
jax: 0.10.0
libtpu: 0.0.40
codegen_flags: <defaults>
</compile_context>

<pallas_src>
import jax
import jax.numpy as jnp
from jax.experimental import pallas as pl
from jax.experimental.pallas import tpu as pltpu


def _sign_bf16(x):
    # matches torch.sign (sign(0) == 0); +-1 / 0 are exact in bf16.
    return jnp.where(x > 0, 1.0, jnp.where(x < 0, -1.0, 0.0)).astype(jnp.bfloat16)


def _conv3x3(xap, w_ref, rows_out, width, c):
    """3x3 'same' conv of a zero-bordered +-1 slab via 3 matmuls (one per kw).

    xap   : (rows_out+2, width+2, c) bf16 signs, zero border already applied
    w_ref : (3, 3*c, c) bf16 sign weights, w_ref[kw] rows ordered (kh, cin)
    returns (rows_out, width, c) float32
    """
    m = rows_out * width
    acc = None
    for kw in range(3):
        p = jnp.concatenate(
            [xap[kh:kh + rows_out, kw:kw + width, :] for kh in range(3)],
            axis=-1).reshape(m, 3 * c)
        part = jnp.dot(p, w_ref[kw], preferred_element_type=jnp.float32)
        acc = part if acc is None else acc + part
    return acc.reshape(rows_out, width, c)


def _fused_block_kernel(x_ref, w1_ref, s1_ref, b1_ref, w2_ref, s2_ref, b2_ref,
                        out_ref):
    """Fused BiRealNetBlock for one (batch, row-tile) grid step.

    x_ref  : (1, H, W, C)   real-valued input (full image for this batch elem)
    w*_ref : (3, 3C, C)     sign(W) in bf16, [kw] block rows ordered (kh, cin)
    s*_ref : (1, C)         folded scale = gamma / sqrt(var+eps) * mean|W|
    b*_ref : (1, C)         folded bias  = beta - mean * gamma / sqrt(var+eps)
    out_ref: (1, TH, W*C)   lane-dense output row tile
    """
    H, W, C = x_ref.shape[1], x_ref.shape[2], x_ref.shape[3]
    TH = out_ref.shape[1]

    rt = pl.program_id(1)
    r0 = pl.multiple_of(rt * TH, TH)                # first output row of tile

    # ---- stage-1 input slab: original rows [r0-2, r0+TH+2), zeros outside ----
    top = x_ref[0, pl.ds(jnp.maximum(r0 - 2, 0), 2), :, :]        # rows r0-2, r0-1
    core = x_ref[0, pl.ds(r0, TH), :, :]                          # rows r0 .. r0+TH-1
    bot = x_ref[0, pl.ds(jnp.minimum(r0 + TH, H - 2), 2), :, :]   # rows r0+TH, r0+TH+1
    top = jnp.where(r0 > 0, top, 0.0)               # zero H-halo at image top
    bot = jnp.where(r0 + TH < H, bot, 0.0)          # zero H-halo at image bottom
    slab = jnp.concatenate([top, core, bot], axis=0)              # (TH+4, W, C) f32

    zc1 = jnp.zeros((TH + 4, 1, C), jnp.bfloat16)
    xa1p = jnp.concatenate([zc1, _sign_bf16(slab), zc1], axis=1)  # zero W border

    # stage 1 computes out1 rows [r0-1, r0+TH+1): halo rows recomputed per tile
    y1 = _conv3x3(xa1p, w1_ref, TH + 2, W, C)                     # (TH+2, W, C) f32
    s1 = s1_ref[...].reshape(1, 1, C)
    b1 = b1_ref[...].reshape(1, 1, C)
    out1 = y1 * s1 + (b1 + slab[1:TH + 3, :, :])

    # ---- stage 2: out1 rows outside the image act as conv2 zero padding ----
    xa2 = _sign_bf16(out1)
    ridx = r0 - 1 + jax.lax.broadcasted_iota(jnp.int32, (TH + 2, 1, 1), 0)
    xa2 = jnp.where((ridx >= 0) & (ridx < H), xa2, jnp.zeros((), jnp.bfloat16))
    zc2 = jnp.zeros((TH + 2, 1, C), jnp.bfloat16)
    xa2p = jnp.concatenate([zc2, xa2, zc2], axis=1)               # zero W border

    y2 = _conv3x3(xa2p, w2_ref, TH, W, C)                         # (TH, W, C) f32
    s2 = s2_ref[...].reshape(1, 1, C)
    b2 = b2_ref[...].reshape(1, 1, C)
    out2 = y2 * s2 + (b2 + out1[1:TH + 1, :, :])

    # lane-dense store: (TH, W, C) -> (TH, W*C)
    out_ref[0] = out2.reshape(TH, W * C).astype(out_ref.dtype)


def _prep_conv_bn(w_oihw, gamma, beta, mean, var, eps=1e-5):
    """Binarize weights; fold RAConv alpha + BatchNorm into (w_sign, scale, bias)."""
    cout, cin = w_oihw.shape[0], w_oihw.shape[1]
    alpha = jnp.mean(jnp.abs(w_oihw), axis=(1, 2, 3))                   # (Cout,)
    w_sign = jnp.sign(w_oihw).astype(jnp.bfloat16)                      # (O, I, 3, 3)
    # (kw, kh, cin, cout) -> (3, 3*cin, cout): per-kw block with rows (kh, cin)
    w3 = jnp.transpose(w_sign, (3, 2, 1, 0)).reshape(3, 3 * cin, cout)
    inv = gamma / jnp.sqrt(var + eps)
    scale = (inv * alpha).reshape(1, cout).astype(jnp.float32)
    bias = (beta - mean * inv).reshape(1, cout).astype(jnp.float32)
    return w3, scale, bias


def _pick_row_tile(h):
    if h <= 32:
        return h
    for t in (32, 24, 16, 8):
        if h % t == 0:
            return t
    return h   # never degrade to tiny tiles; fall back to whole-image tile


def _vmem_limit_bytes():
    # ~3/4 of physical VMEM, capped at 96 MiB: 96 MiB on v5e/v6e (128 MiB
    # physical), 48 MiB on v7x (64 MiB physical).
    try:
        cap = int(pltpu.get_tpu_info().vmem_capacity_bytes)
    except Exception:
        cap = 0
    if cap <= 0:
        cap = 64 * 1024 * 1024
    return min(96 * 1024 * 1024, (cap * 3) // 4)


@jax.jit
def birealnet_block(x_nhwc, w1_oihw, bn1, w2_oihw, bn2):
    """BiRealNetBlock forward (stride=1, downsample=None), NHWC activations."""
    # TODO(synk): stride != 1 and the external `downsample` module branch are
    # not implemented (the PyTorch spec requires a separately supplied module).
    # TODO(synk): for very large feature maps the full-image input block should
    # become a manually DMA'd (TH+4)-row slab (memory_space=pl.ANY) to keep
    # VMEM usage O(TH*W*C) instead of O(H*W*C).
    N, H, W, C = x_nhwc.shape
    assert H >= 2, "kernel assumes at least 2 image rows"
    TH = _pick_row_tile(H)

    w1, s1, b1 = _prep_conv_bn(w1_oihw, *bn1)
    w2, s2, b2 = _prep_conv_bn(w2_oihw, *bn2)
    x = x_nhwc.astype(jnp.float32)

    out_flat = pl.pallas_call(
        _fused_block_kernel,
        out_shape=jax.ShapeDtypeStruct((N, H, W * C), jnp.float32),
        grid=(N, H // TH),
        in_specs=[
            # full (unpadded) image per batch element; block index is constant
            # in rt so the pipeliner does not re-DMA it across row tiles.
            pl.BlockSpec((1, H, W, C), lambda n, rt: (n, 0, 0, 0)),
            pl.BlockSpec((3, 3 * C, C), lambda n, rt: (0, 0, 0)),
            pl.BlockSpec((1, C), lambda n, rt: (0, 0)),
            pl.BlockSpec((1, C), lambda n, rt: (0, 0)),
            pl.BlockSpec((3, 3 * C, C), lambda n, rt: (0, 0, 0)),
            pl.BlockSpec((1, C), lambda n, rt: (0, 0)),
            pl.BlockSpec((1, C), lambda n, rt: (0, 0)),
        ],
        out_specs=pl.BlockSpec((1, TH, W * C), lambda n, rt: (n, rt, 0)),
        compiler_params=pltpu.CompilerParams(
            dimension_semantics=("parallel", "parallel"),
            vmem_limit_bytes=_vmem_limit_bytes(),
        ),
    )(x, w1, s1, b1, w2, s2, b2)
    return out_flat.reshape(N, H, W, C)


# ---------------- pure-JAX reference (NCHW, mirrors the PyTorch code) ----------------
def _raconv_ref(a, w_oihw):
    alpha = jnp.mean(jnp.abs(w_oihw), axis=(1, 2, 3), keepdims=True)
    bw = jnp.sign(w_oihw) * alpha
    ba = jnp.sign(a)
    return jax.lax.conv_general_dilated(
        ba, bw, window_strides=(1, 1), padding=((1, 1), (1, 1)),
        dimension_numbers=("NCHW", "OIHW", "NCHW"))


def _bn_ref(y, gamma, beta, mean, var, eps=1e-5):
    inv = gamma / jnp.sqrt(var + eps)
    return (y - mean[None, :, None, None]) * inv[None, :, None, None] \
        + beta[None, :, None, None]


def birealnet_block_ref(x_nchw, w1, bn1, w2, bn2):
    out = _bn_ref(_raconv_ref(x_nchw, w1), *bn1) + x_nchw
    res = out
    out = _bn_ref(_raconv_ref(out, w2), *bn2) + res
    return out


if __name__ == "__main__":
    key = jax.random.PRNGKey(0)
    N, C, H, W = 2, 16, 16, 16          # in_channels == out_channels, stride=1
    ks = jax.random.split(key, 11)

    x_nchw = jax.random.normal(ks[0], (N, C, H, W), jnp.float32)
    w1 = jax.random.normal(ks[1], (C, C, 3, 3), jnp.float32) * 0.1
    w2 = jax.random.normal(ks[2], (C, C, 3, 3), jnp.float32) * 0.1

    bn1 = (jax.random.uniform(ks[3], (C,), jnp.float32, 0.5, 1.5),   # gamma
           jax.random.normal(ks[4], (C,), jnp.float32) * 0.1,        # beta
           jax.random.normal(ks[5], (C,), jnp.float32) * 0.1,        # running_mean
           jax.random.uniform(ks[6], (C,), jnp.float32, 0.5, 1.5))   # running_var
    bn2 = (jax.random.uniform(ks[7], (C,), jnp.float32, 0.5, 1.5),
           jax.random.normal(ks[8], (C,), jnp.float32) * 0.1,
           jax.random.normal(ks[9], (C,), jnp.float32) * 0.1,
           jax.random.uniform(ks[10], (C,), jnp.float32, 0.5, 1.5))

    # Kernel runs in NHWC.
    x_nhwc = jnp.transpose(x_nchw, (0, 2, 3, 1))
    out_nhwc = jax.block_until_ready(birealnet_block(x_nhwc, w1, bn1, w2, bn2))
    out_nchw = jnp.transpose(out_nhwc, (0, 3, 1, 2))

    ref = jax.block_until_ready(birealnet_block_ref(x_nchw, w1, bn1, w2, bn2))

    assert out_nchw.shape == ref.shape == (N, C, H, W)
    err = float(jnp.max(jnp.abs(out_nchw - ref)))
    assert jnp.allclose(out_nchw, ref, atol=1e-3, rtol=1e-3), err
    print("KERNEL_OK")
</pallas_src>

<mosaic_0001>
module attributes {stable_mosaic.version = 11 : i64} {
  func.func @_fused_block_kernel(%arg0: i32, %arg1: i32, %arg2: memref<1x16x16x16xf32, #tpu.memory_space<vmem>>, %arg3: memref<3x48x16xbf16, #tpu.memory_space<vmem>>, %arg4: memref<1x16xf32, #tpu.memory_space<vmem>>, %arg5: memref<1x16xf32, #tpu.memory_space<vmem>>, %arg6: memref<3x48x16xbf16, #tpu.memory_space<vmem>>, %arg7: memref<1x16xf32, #tpu.memory_space<vmem>>, %arg8: memref<1x16xf32, #tpu.memory_space<vmem>>, %arg9: memref<1x16x256xf32, #tpu.memory_space<vmem>>) attributes {dimension_semantics = [#tpu.dimension_semantics<parallel>, #tpu.dimension_semantics<parallel>], iteration_bounds = array<i64: 2, 1>, scalar_prefetch = 0 : i64, scratch_operands = 0 : i64, tpu.core_type = #tpu.core_type<tc>, window_params = [{transform_indices = @transform_0, window_bounds = array<i64: 1, 16, 16, 16>}, {pipeline_mode = #tpu.pipeline_mode<synchronous>, transform_indices = @transform_1, window_bounds = array<i64: 3, 48, 16>}, {pipeline_mode = #tpu.pipeline_mode<synchronous>, transform_indices = @transform_2, window_bounds = array<i64: 1, 16>}, {pipeline_mode = #tpu.pipeline_mode<synchronous>, transform_indices = @transform_3, window_bounds = array<i64: 1, 16>}, {pipeline_mode = #tpu.pipeline_mode<synchronous>, transform_indices = @transform_4, window_bounds = array<i64: 3, 48, 16>}, {pipeline_mode = #tpu.pipeline_mode<synchronous>, transform_indices = @transform_5, window_bounds = array<i64: 1, 16>}, {pipeline_mode = #tpu.pipeline_mode<synchronous>, transform_indices = @transform_6, window_bounds = array<i64: 1, 16>}, {transform_indices = @transform_7, window_bounds = array<i64: 1, 16, 256>}]} {
    %c16_i32 = arith.constant 16 : i32
    %0 = arith.muli %arg1, %c16_i32 : i32
    %1 = tpu.assume_multiple %0, 16 : i32
    %c2_i32 = arith.constant 2 : i32
    %2 = arith.subi %1, %c2_i32 : i32
    %c0_i32 = arith.constant 0 : i32
    %3 = arith.maxsi %2, %c0_i32 : i32
    %c0 = arith.constant 0 : index
    %4 = arith.index_cast %3 : i32 to index
    %c0_0 = arith.constant 0 : index
    %c0_1 = arith.constant 0 : index
    %5 = vector.load %arg2[%c0, %4, %c0_0, %c0_1] : memref<1x16x16x16xf32, #tpu.memory_space<vmem>>, vector<1x2x16x16xf32>
    %6 = vector.shape_cast %5 : vector<1x2x16x16xf32> to vector<2x16x16xf32>
    %c0_2 = arith.constant 0 : index
    %7 = arith.index_cast %1 : i32 to index
    %c0_3 = arith.constant 0 : index
    %c0_4 = arith.constant 0 : index
    %8 = vector.load %arg2[%c0_2, %7, %c0_3, %c0_4] : memref<1x16x16x16xf32, #tpu.memory_space<vmem>>, vector<1x16x16x16xf32>
    %9 = vector.shape_cast %8 : vector<1x16x16x16xf32> to vector<16x16x16xf32>
    %c16_i32_5 = arith.constant 16 : i32
    %10 = arith.addi %1, %c16_i32_5 : i32
    %c14_i32 = arith.constant 14 : i32
    %11 = arith.minsi %10, %c14_i32 : i32
    %c0_6 = arith.constant 0 : index
    %12 = arith.index_cast %11 : i32 to index
    %c0_7 = arith.constant 0 : index
    %c0_8 = arith.constant 0 : index
    %13 = vector.load %arg2[%c0_6, %12, %c0_7, %c0_8] : memref<1x16x16x16xf32, #tpu.memory_space<vmem>>, vector<1x2x16x16xf32>
    %14 = vector.shape_cast %13 : vector<1x2x16x16xf32> to vector<2x16x16xf32>
    %c0_i32_9 = arith.constant 0 : i32
    %15 = arith.cmpi sgt, %1, %c0_i32_9 : i32
    %cst = arith.constant 0.000000e+00 : f32
    %16 = vector.broadcast %cst : f32 to vector<2x16x16xf32>
    %17 = arith.select %15, %6, %16 : vector<2x16x16xf32>
    %c16_i32_10 = arith.constant 16 : i32
    %18 = arith.addi %1, %c16_i32_10 : i32
    %c16_i32_11 = arith.constant 16 : i32
    %19 = arith.cmpi slt, %18, %c16_i32_11 : i32
    %cst_12 = arith.constant 0.000000e+00 : f32
    %20 = vector.broadcast %cst_12 : f32 to vector<2x16x16xf32>
    %21 = arith.select %19, %14, %20 : vector<2x16x16xf32>
    %22 = tpu.concatenate %17, %9, %21 in 0 : vector<2x16x16xf32>, vector<16x16x16xf32>, vector<2x16x16xf32> -> vector<20x16x16xf32>
    %cst_13 = arith.constant 0.000000e+00 : bf16
    %23 = vector.broadcast %cst_13 : bf16 to vector<20x1x16xbf16>
    %cst_14 = arith.constant 0.000000e+00 : f32
    %24 = vector.broadcast %cst_14 : f32 to vector<20x16x16xf32>
    %25 = arith.cmpf ogt, %22, %24 : vector<20x16x16xf32>
    %cst_15 = arith.constant 0.000000e+00 : f32
    %26 = vector.broadcast %cst_15 : f32 to vector<20x16x16xf32>
    %27 = arith.cmpf olt, %22, %26 : vector<20x16x16xf32>
    %cst_16 = arith.constant -1.000000e+00 : f32
    %cst_17 = arith.constant 0.000000e+00 : f32
    %28 = vector.broadcast %cst_16 : f32 to vector<20x16x16xf32>
    %29 = vector.broadcast %cst_17 : f32 to vector<20x16x16xf32>
    %30 = arith.select %27, %28, %29 : vector<20x16x16xi1>, vector<20x16x16xf32>
    %cst_18 = arith.constant 1.000000e+00 : f32
    %31 = vector.broadcast %cst_18 : f32 to vector<20x16x16xf32>
    %32 = arith.select %25, %31, %30 : vector<20x16x16xi1>, vector<20x16x16xf32>
    %33 = arith.truncf %32 : vector<20x16x16xf32> to vector<20x16x16xbf16>
    %34 = tpu.concatenate %23, %33, %23 in 1 : vector<20x1x16xbf16>, vector<20x16x16xbf16>, vector<20x1x16xbf16> -> vector<20x18x16xbf16>
    %35 = vector.extract_strided_slice %34 {offsets = [0, 0, 0], sizes = [18, 16, 16], strides = [1, 1, 1]} : vector<20x18x16xbf16> to vector<18x16x16xbf16>
    %36 = vector.extract_strided_slice %34 {offsets = [1, 0, 0], sizes = [18, 16, 16], strides = [1, 1, 1]} : vector<20x18x16xbf16> to vector<18x16x16xbf16>
    %37 = vector.extract_strided_slice %34 {offsets = [2, 0, 0], sizes = [18, 16, 16], strides = [1, 1, 1]} : vector<20x18x16xbf16> to vector<18x16x16xbf16>
    %38 = tpu.concatenate %35, %36, %37 in 2 : vector<18x16x16xbf16>, vector<18x16x16xbf16>, vector<18x16x16xbf16> -> vector<18x16x48xbf16>
    %39 = vector.shape_cast %38 : vector<18x16x48xbf16> to vector<288x48xbf16>
    %c0_19 = arith.constant 0 : index
    %c0_20 = arith.constant 0 : index
    %c0_21 = arith.constant 0 : index
    %40 = vector.load %arg3[%c0_19, %c0_20, %c0_21] : memref<3x48x16xbf16, #tpu.memory_space<vmem>>, vector<1x48x16xbf16>
    %41 = vector.shape_cast %40 : vector<1x48x16xbf16> to vector<48x16xbf16>
    %cst_22 = arith.constant dense<0.000000e+00> : vector<288x16xf32>
    %42 = tpu.matmul %39, %41, %cst_22 {dimension_numbers = #tpu.dot_dimension_numbers<[1], [0], [0], [1], [0, 0, 1, 1], [], []>} : vector<288x48xbf16>, vector<48x16xbf16>, vector<288x16xf32> -> vector<288x16xf32>
    %43 = vector.extract_strided_slice %34 {offsets = [0, 1, 0], sizes = [18, 16, 16], strides = [1, 1, 1]} : vector<20x18x16xbf16> to vector<18x16x16xbf16>
    %44 = vector.extract_strided_slice %34 {offsets = [1, 1, 0], sizes = [18, 16, 16], strides = [1, 1, 1]} : vector<20x18x16xbf16> to vector<18x16x16xbf16>
    %45 = vector.extract_strided_slice %34 {offsets = [2, 1, 0], sizes = [18, 16, 16], strides = [1, 1, 1]} : vector<20x18x16xbf16> to vector<18x16x16xbf16>
    %46 = tpu.concatenate %43, %44, %45 in 2 : vector<18x16x16xbf16>, vector<18x16x16xbf16>, vector<18x16x16xbf16> -> vector<18x16x48xbf16>
    %47 = vector.shape_cast %46 : vector<18x16x48xbf16> to vector<288x48xbf16>
    %c1 = arith.constant 1 : index
    %c0_23 = arith.constant 0 : index
    %c0_24 = arith.constant 0 : index
    %48 = vector.load %arg3[%c1, %c0_23, %c0_24] : memref<3x48x16xbf16, #tpu.memory_space<vmem>>, vector<1x48x16xbf16>
    %49 = vector.shape_cast %48 : vector<1x48x16xbf16> to vector<48x16xbf16>
    %cst_25 = arith.constant dense<0.000000e+00> : vector<288x16xf32>
    %50 = tpu.matmul %47, %49, %cst_25 {dimension_numbers = #tpu.dot_dimension_numbers<[1], [0], [0], [1], [0, 0, 1, 1], [], []>} : vector<288x48xbf16>, vector<48x16xbf16>, vector<288x16xf32> -> vector<288x16xf32>
    %51 = arith.addf %42, %50 : vector<288x16xf32>
    %52 = vector.extract_strided_slice %34 {offsets = [0, 2, 0], sizes = [18, 16, 16], strides = [1, 1, 1]} : vector<20x18x16xbf16> to vector<18x16x16xbf16>
    %53 = vector.extract_strided_slice %34 {offsets = [1, 2, 0], sizes = [18, 16, 16], strides = [1, 1, 1]} : vector<20x18x16xbf16> to vector<18x16x16xbf16>
    %54 = vector.extract_strided_slice %34 {offsets = [2, 2, 0], sizes = [18, 16, 16], strides = [1, 1, 1]} : vector<20x18x16xbf16> to vector<18x16x16xbf16>
    %55 = tpu.concatenate %52, %53, %54 in 2 : vector<18x16x16xbf16>, vector<18x16x16xbf16>, vector<18x16x16xbf16> -> vector<18x16x48xbf16>
    %56 = vector.shape_cast %55 : vector<18x16x48xbf16> to vector<288x48xbf16>
    %c2 = arith.constant 2 : index
    %c0_26 = arith.constant 0 : index
    %c0_27 = arith.constant 0 : index
    %57 = vector.load %arg3[%c2, %c0_26, %c0_27] : memref<3x48x16xbf16, #tpu.memory_space<vmem>>, vector<1x48x16xbf16>
    %58 = vector.shape_cast %57 : vector<1x48x16xbf16> to vector<48x16xbf16>
    %cst_28 = arith.constant dense<0.000000e+00> : vector<288x16xf32>
    %59 = tpu.matmul %56, %58, %cst_28 {dimension_numbers = #tpu.dot_dimension_numbers<[1], [0], [0], [1], [0, 0, 1, 1], [], []>} : vector<288x48xbf16>, vector<48x16xbf16>, vector<288x16xf32> -> vector<288x16xf32>
    %60 = arith.addf %51, %59 : vector<288x16xf32>
    %61 = vector.shape_cast %60 : vector<288x16xf32> to vector<18x16x16xf32>
    %c0_29 = arith.constant 0 : index
    %c0_30 = arith.constant 0 : index
    %62 = vector.load %arg4[%c0_29, %c0_30] : memref<1x16xf32, #tpu.memory_space<vmem>>, vector<1x16xf32>
    %63 = vector.shape_cast %62 : vector<1x16xf32> to vector<1x1x16xf32>
    %c0_31 = arith.constant 0 : index
    %c0_32 = arith.constant 0 : index
    %64 = vector.load %arg5[%c0_31, %c0_32] : memref<1x16xf32, #tpu.memory_space<vmem>>, vector<1x16xf32>
    %65 = vector.shape_cast %64 : vector<1x16xf32> to vector<1x1x16xf32>
    %66 = vector.broadcast %63 : vector<1x1x16xf32> to vector<18x16x16xf32>
    %67 = arith.mulf %61, %66 : vector<18x16x16xf32>
    %68 = vector.extract_strided_slice %22 {offsets = [1, 0, 0], sizes = [18, 16, 16], strides = [1, 1, 1]} : vector<20x16x16xf32> to vector<18x16x16xf32>
    %69 = vector.broadcast %65 : vector<1x1x16xf32> to vector<18x16x16xf32>
    %70 = arith.addf %69, %68 : vector<18x16x16xf32>
    %71 = arith.addf %67, %70 : vector<18x16x16xf32>
    %cst_33 = arith.constant 0.000000e+00 : f32
    %72 = vector.broadcast %cst_33 : f32 to vector<18x16x16xf32>
    %73 = arith.cmpf ogt, %71, %72 : vector<18x16x16xf32>
    %cst_34 = arith.constant 0.000000e+00 : f32
    %74 = vector.broadcast %cst_34 : f32 to vector<18x16x16xf32>
    %75 = arith.cmpf olt, %71, %74 : vector<18x16x16xf32>
    %cst_35 = arith.constant -1.000000e+00 : f32
    %cst_36 = arith.constant 0.000000e+00 : f32
    %76 = vector.broadcast %cst_35 : f32 to vector<18x16x16xf32>
    %77 = vector.broadcast %cst_36 : f32 to vector<18x16x16xf32>
    %78 = arith.select %75, %76, %77 : vector<18x16x16xi1>, vector<18x16x16xf32>
    %cst_37 = arith.constant 1.000000e+00 : f32
    %79 = vector.broadcast %cst_37 : f32 to vector<18x16x16xf32>
    %80 = arith.select %73, %79, %78 : vector<18x16x16xi1>, vector<18x16x16xf32>
    %81 = arith.truncf %80 : vector<18x16x16xf32> to vector<18x16x16xbf16>
    %c1_i32 = arith.constant 1 : i32
    %82 = arith.subi %1, %c1_i32 : i32
    %83 = tpu.iota {dimensions = array<i32: 0>} : vector<18x1x1xi32>
    %84 = vector.broadcast %82 : i32 to vector<18x1x1xi32>
    %85 = arith.addi %84, %83 : vector<18x1x1xi32>
    %c0_i32_38 = arith.constant 0 : i32
    %86 = vector.broadcast %c0_i32_38 : i32 to vector<18x1x1xi32>
    %87 = arith.cmpi sge, %85, %86 : vector<18x1x1xi32>
    %c16_i32_39 = arith.constant 16 : i32
    %88 = vector.broadcast %c16_i32_39 : i32 to vector<18x1x1xi32>
    %89 = arith.cmpi slt, %85, %88 : vector<18x1x1xi32>
    %90 = arith.andi %87, %89 : vector<18x1x1xi1>
    %cst_40 = arith.constant 0.000000e+00 : bf16
    %91 = vector.shape_cast %90 : vector<18x1x1xi1> to vector<18x1x1xi1>
    %92 = vector.broadcast %91 : vector<18x1x1xi1> to vector<18x16x16xi1>
    %93 = vector.broadcast %cst_40 : bf16 to vector<18x16x16xbf16>
    %94 = arith.select %92, %81, %93 : vector<18x16x16xi1>, vector<18x16x16xbf16>
    %cst_41 = arith.constant 0.000000e+00 : bf16
    %95 = vector.broadcast %cst_41 : bf16 to vector<18x1x16xbf16>
    %96 = tpu.concatenate %95, %94, %95 in 1 : vector<18x1x16xbf16>, vector<18x16x16xbf16>, vector<18x1x16xbf16> -> vector<18x18x16xbf16>
    %97 = vector.extract_strided_slice %96 {offsets = [0, 0, 0], sizes = [16, 16, 16], strides = [1, 1, 1]} : vector<18x18x16xbf16> to vector<16x16x16xbf16>
    %98 = vector.extract_strided_slice %96 {offsets = [1, 0, 0], sizes = [16, 16, 16], strides = [1, 1, 1]} : vector<18x18x16xbf16> to vector<16x16x16xbf16>
    %99 = vector.extract_strided_slice %96 {offsets = [2, 0, 0], sizes = [16, 16, 16], strides = [1, 1, 1]} : vector<18x18x16xbf16> to vector<16x16x16xbf16>
    %100 = tpu.concatenate %97, %98, %99 in 2 : vector<16x16x16xbf16>, vector<16x16x16xbf16>, vector<16x16x16xbf16> -> vector<16x16x48xbf16>
    %101 = vector.shape_cast %100 : vector<16x16x48xbf16> to vector<256x48xbf16>
    %c0_42 = arith.constant 0 : index
    %c0_43 = arith.constant 0 : index
    %c0_44 = arith.constant 0 : index
    %102 = vector.load %arg6[%c0_42, %c0_43, %c0_44] : memref<3x48x16xbf16, #tpu.memory_space<vmem>>, vector<1x48x16xbf16>
    %103 = vector.shape_cast %102 : vector<1x48x16xbf16> to vector<48x16xbf16>
    %cst_45 = arith.constant dense<0.000000e+00> : vector<256x16xf32>
    %104 = tpu.matmul %101, %103, %cst_45 {dimension_numbers = #tpu.dot_dimension_numbers<[1], [0], [0], [1], [0, 0, 1, 1], [], []>} : vector<256x48xbf16>, vector<48x16xbf16>, vector<256x16xf32> -> vector<256x16xf32>
    %105 = vector.extract_strided_slice %96 {offsets = [0, 1, 0], sizes = [16, 16, 16], strides = [1, 1, 1]} : vector<18x18x16xbf16> to vector<16x16x16xbf16>
    %106 = vector.extract_strided_slice %96 {offsets = [1, 1, 0], sizes = [16, 16, 16], strides = [1, 1, 1]} : vector<18x18x16xbf16> to vector<16x16x16xbf16>
    %107 = vector.extract_strided_slice %96 {offsets = [2, 1, 0], sizes = [16, 16, 16], strides = [1, 1, 1]} : vector<18x18x16xbf16> to vector<16x16x16xbf16>
    %108 = tpu.concatenate %105, %106, %107 in 2 : vector<16x16x16xbf16>, vector<16x16x16xbf16>, vector<16x16x16xbf16> -> vector<16x16x48xbf16>
    %109 = vector.shape_cast %108 : vector<16x16x48xbf16> to vector<256x48xbf16>
    %c1_46 = arith.constant 1 : index
    %c0_47 = arith.constant 0 : index
    %c0_48 = arith.constant 0 : index
    %110 = vector.load %arg6[%c1_46, %c0_47, %c0_48] : memref<3x48x16xbf16, #tpu.memory_space<vmem>>, vector<1x48x16xbf16>
    %111 = vector.shape_cast %110 : vector<1x48x16xbf16> to vector<48x16xbf16>
    %cst_49 = arith.constant dense<0.000000e+00> : vector<256x16xf32>
    %112 = tpu.matmul %109, %111, %cst_49 {dimension_numbers = #tpu.dot_dimension_numbers<[1], [0], [0], [1], [0, 0, 1, 1], [], []>} : vector<256x48xbf16>, vector<48x16xbf16>, vector<256x16xf32> -> vector<256x16xf32>
    %113 = arith.addf %104, %112 : vector<256x16xf32>
    %114 = vector.extract_strided_slice %96 {offsets = [0, 2, 0], sizes = [16, 16, 16], strides = [1, 1, 1]} : vector<18x18x16xbf16> to vector<16x16x16xbf16>
    %115 = vector.extract_strided_slice %96 {offsets = [1, 2, 0], sizes = [16, 16, 16], strides = [1, 1, 1]} : vector<18x18x16xbf16> to vector<16x16x16xbf16>
    %116 = vector.extract_strided_slice %96 {offsets = [2, 2, 0], sizes = [16, 16, 16], strides = [1, 1, 1]} : vector<18x18x16xbf16> to vector<16x16x16xbf16>
    %117 = tpu.concatenate %114, %115, %116 in 2 : vector<16x16x16xbf16>, vector<16x16x16xbf16>, vector<16x16x16xbf16> -> vector<16x16x48xbf16>
    %118 = vector.shape_cast %117 : vector<16x16x48xbf16> to vector<256x48xbf16>
    %c2_50 = arith.constant 2 : index
    %c0_51 = arith.constant 0 : index
    %c0_52 = arith.constant 0 : index
    %119 = vector.load %arg6[%c2_50, %c0_51, %c0_52] : memref<3x48x16xbf16, #tpu.memory_space<vmem>>, vector<1x48x16xbf16>
    %120 = vector.shape_cast %119 : vector<1x48x16xbf16> to vector<48x16xbf16>
    %cst_53 = arith.constant dense<0.000000e+00> : vector<256x16xf32>
    %121 = tpu.matmul %118, %120, %cst_53 {dimension_numbers = #tpu.dot_dimension_numbers<[1], [0], [0], [1], [0, 0, 1, 1], [], []>} : vector<256x48xbf16>, vector<48x16xbf16>, vector<256x16xf32> -> vector<256x16xf32>
    %122 = arith.addf %113, %121 : vector<256x16xf32>
    %123 = vector.shape_cast %122 : vector<256x16xf32> to vector<16x16x16xf32>
    %c0_54 = arith.constant 0 : index
    %c0_55 = arith.constant 0 : index
    %124 = vector.load %arg7[%c0_54, %c0_55] : memref<1x16xf32, #tpu.memory_space<vmem>>, vector<1x16xf32>
    %125 = vector.shape_cast %124 : vector<1x16xf32> to vector<1x1x16xf32>
    %c0_56 = arith.constant 0 : index
    %c0_57 = arith.constant 0 : index
    %126 = vector.load %arg8[%c0_56, %c0_57] : memref<1x16xf32, #tpu.memory_space<vmem>>, vector<1x16xf32>
    %127 = vector.shape_cast %126 : vector<1x16xf32> to vector<1x1x16xf32>
    %128 = vector.broadcast %125 : vector<1x1x16xf32> to vector<16x16x16xf32>
    %129 = arith.mulf %123, %128 : vector<16x16x16xf32>
    %130 = vector.extract_strided_slice %71 {offsets = [1, 0, 0], sizes = [16, 16, 16], strides = [1, 1, 1]} : vector<18x16x16xf32> to vector<16x16x16xf32>
    %131 = vector.broadcast %127 : vector<1x1x16xf32> to vector<16x16x16xf32>
    %132 = arith.addf %131, %130 : vector<16x16x16xf32>
    %133 = arith.addf %129, %132 : vector<16x16x16xf32>
    %134 = vector.shape_cast %133 : vector<16x16x16xf32> to vector<16x256xf32>
    %c0_58 = arith.constant 0 : index
    %c0_59 = arith.constant 0 : index
    %c0_60 = arith.constant 0 : index
    %135 = vector.load %arg9[%c0_58, %c0_59, %c0_60] : memref<1x16x256xf32, #tpu.memory_space<vmem>>, vector<1x16x256xf32>
    %136 = vector.shape_cast %135 : vector<1x16x256xf32> to vector<16x256xf32>
    %137 = vector.shape_cast %134 : vector<16x256xf32> to vector<1x16x256xf32>
    tpu.vector_store %arg9[%c0_58, %c0_59, %c0_60], %137 {strides = array<i32>} : memref<1x16x256xf32, #tpu.memory_space<vmem>>, vector<1x16x256xf32>,
    return
  }
  func.func @transform_0(%arg0: i32, %arg1: i32) -> (i32, i32, i32, i32) {
    %c0_i32 = arith.constant 0 : i32
    %c0_i32_0 = arith.constant 0 : i32
    %c0_i32_1 = arith.constant 0 : i32
    %c0_i32_2 = arith.constant 0 : i32
    return %arg0, %c0_i32, %c0_i32_0, %c0_i32_1 : i32, i32, i32, i32
  }
  func.func @transform_1(%arg0: i32, %arg1: i32) -> (i32, i32, i32) {
    %c0_i32 = arith.constant 0 : i32
    %c0_i32_0 = arith.constant 0 : i32
    %c0_i32_1 = arith.constant 0 : i32
    %c0_i32_2 = arith.constant 0 : i32
    return %c0_i32, %c0_i32_0, %c0_i32_1 : i32, i32, i32
  }
  func.func @transform_2(%arg0: i32, %arg1: i32) -> (i32, i32) {
    %c0_i32 = arith.constant 0 : i32
    %c0_i32_0 = arith.constant 0 : i32
    %c0_i32_1 = arith.constant 0 : i32
    return %c0_i32, %c0_i32_0 : i32, i32
  }
  func.func @transform_3(%arg0: i32, %arg1: i32) -> (i32, i32) {
    %c0_i32 = arith.constant 0 : i32
    %c0_i32_0 = arith.constant 0 : i32
    %c0_i32_1 = arith.constant 0 : i32
    return %c0_i32, %c0_i32_0 : i32, i32
  }
  func.func @transform_4(%arg0: i32, %arg1: i32) -> (i32, i32, i32) {
    %c0_i32 = arith.constant 0 : i32
    %c0_i32_0 = arith.constant 0 : i32
    %c0_i32_1 = arith.constant 0 : i32
    %c0_i32_2 = arith.constant 0 : i32
    return %c0_i32, %c0_i32_0, %c0_i32_1 : i32, i32, i32
  }
  func.func @transform_5(%arg0: i32, %arg1: i32) -> (i32, i32) {
    %c0_i32 = arith.constant 0 : i32
    %c0_i32_0 = arith.constant 0 : i32
    %c0_i32_1 = arith.constant 0 : i32
    return %c0_i32, %c0_i32_0 : i32, i32
  }
  func.func @transform_6(%arg0: i32, %arg1: i32) -> (i32, i32) {
    %c0_i32 = arith.constant 0 : i32
    %c0_i32_0 = arith.constant 0 : i32
    %c0_i32_1 = arith.constant 0 : i32
    return %c0_i32, %c0_i32_0 : i32, i32
  }
  func.func @transform_7(%arg0: i32, %arg1: i32) -> (i32, i32, i32) {
    %c0_i32 = arith.constant 0 : i32
    %c0_i32_0 = arith.constant 0 : i32
    return %arg0, %arg1, %c0_i32 : i32, i32, i32
  }
}

</mosaic_0001>

<llo_original>
// kernel: birealnet_block.1
$region0: #{birealnet_block.1}
  #allocation0 [shape = 'u32[]', space=smem, size = 0x4, offset = 0x4, fixed_abs, tag = 'smem constant byte address 0x4 - core index']
  #allocation1 [shape = 'u32[144,128]{1,0:T(1,128)}', space=vmem, size = 0x12000, scoped, tag = 'internal scratch']
  %s0 = inlined_call_operand.vmem [shape: f32[2,16,16,16], index: 0, kind: input, shape index: {}]
  %s1 = inlined_call_operand.vmem [shape: bf16[3,48,16], index: 1, kind: input, shape index: {}]
  %s2 = inlined_call_operand.vmem [shape: f32[1,16], index: 2, kind: input, shape index: {}]
  %s3 = inlined_call_operand.vmem [shape: f32[1,16], index: 3, kind: input, shape index: {}]
  %s4 = inlined_call_operand.vmem [shape: bf16[3,48,16], index: 4, kind: input, shape index: {}]
  %s5 = inlined_call_operand.vmem [shape: f32[1,16], index: 5, kind: input, shape index: {}]
  %s6 = inlined_call_operand.vmem [shape: f32[1,16], index: 6, kind: input, shape index: {}]
  %s7 = inlined_call_operand.vmem [shape: f32[2,16,256], index: 7, kind: output, shape index: {}]
  %s8 = sld [smem:[#allocation0]]
  $region61: #{birealnet_block.1} parent=0
    _
  %s10 = ssub.s32 1, %s8
  %s11 = scalar_select 0, %s10, %s8
  loop: start=0, step=1, limit=4
  $region2: #{birealnet_block.1} parent=0 // loop_pre_header
    _
  $region3: #{birealnet_block.1} parent=0 // loop_header
    %s13 = sphi 0, %s17
    %p14 = scmp.ge.s32.totalorder %s13, 4
    %s20 = sphi 0, %s32
    %s21 = sphi 0, %s28
    %s22 = sphi 0, %s20
    %s23 = sphi 0, %s21
    %s24 = sphi 0, %s22
    %s25 = sphi 0, %s23
    %s35 = sphi 0, %s37
    %s38 = sphi 0, %s35
    %s39 = sphi 0, %s38
    %s55 = sphi 0, %s39
    %s59 = sphi 0, %s59
    %s61 = sphi 0, %s59
    %s62 = sphi 0, %s61
    %s76 = sphi 0, %s62
    %s80 = sphi 0, %s80
    %s82 = sphi 0, %s80
    %s83 = sphi 0, %s82
    %s97 = sphi 0, %s83
    %s101 = sphi 0, %s101
    %s103 = sphi 0, %s101
    %s104 = sphi 0, %s103
    %s118 = sphi 0, %s104
    %s122 = sphi 0, %s122
    %s124 = sphi 0, %s122
    %s125 = sphi 0, %s124
    %s139 = sphi 0, %s125
    %s143 = sphi 0, %s143
    %s145 = sphi 0, %s143
    %s146 = sphi 0, %s145
    %s160 = sphi 0, %s146
    %s164 = sphi 0, %s164
    %s166 = sphi 0, %s164
    %s167 = sphi 0, %s166
    %s181 = sphi 0, %s167
    %s189 = sphi 0, %s191
    %s192 = sphi 0, %s189
    %s193 = sphi 0, %s192
    %s209 = sphi 0, %s193
  $region4: #{birealnet_block.1} parent=0 // loop_header_branch
    %16 = sbr.rel (%p14) target = $region8
  $region5: #{birealnet_block.1} parent=0 // loop_body
    %s18 = ssub.s32 %s13, 1
    %s19 = ssub.s32 %s13, 2
    %s26 = sadd.s32 1, %s21
    %p27 = scmp.ge.s32.totalorder %s26, 1
    %s28 = scalar_select %p27, 0, %s26
    %s29 = sadd.s32 1, %s20
    %s30 = scalar_select %p27, %s29, %s20
    %p31 = scmp.ge.s32.totalorder %s30, 2
    %s32 = scalar_select %p31, 0, %s30
    %s33 = ssub.s32 %s20, %s32
    %p34 = scmp.eq.s32.totalorder %s33, 0
    %s36 = sadd.s32 %s35, 1
    %s37 = scalar_select %p34, %s35, %s36
    %p40 = pneg %p34
    %p41 = scmp.eq.s32.totalorder %s13, 1
    %p42 = por %p40, %p41
    %p43 = scmp.ne.s32.totalorder %s35, %s38
    %p44 = scmp.eq.s32.totalorder %s13, 0
    %p45 = por %p43, %p44
    %p46 = scmp.ne.s32.totalorder %s35, %s38
    %p47 = scmp.eq.s32.totalorder %s18, 1
    %p48 = por %p46, %p47
    %p49 = scmp.ne.s32.totalorder %s38, %s39
    %p50 = scmp.eq.s32.totalorder %s18, 0
    %p51 = por %p49, %p50
    %p52 = scmp.ne.s32.totalorder %s38, %s39
    %p53 = scmp.eq.s32.totalorder %s19, 1
    %p54 = por %p52, %p53
    %p56 = scmp.ne.s32.totalorder %s39, %s55
    %p57 = scmp.eq.s32.totalorder %s19, 0
    %p58 = por %p56, %p57
    %s60 = sadd.s32 %s59, 1
    %p63 = scmp.eq.s32.totalorder %s13, 1
    %p64 = scmp.ne.s32.totalorder %s59, %s61
    %p65 = scmp.eq.s32.totalorder %s13, 0
    %p66 = por %p64, %p65
    %p67 = scmp.ne.s32.totalorder %s59, %s61
    %p68 = scmp.eq.s32.totalorder %s18, 1
    %p69 = por %p67, %p68
    %p70 = scmp.ne.s32.totalorder %s61, %s62
    %p71 = scmp.eq.s32.totalorder %s18, 0
    %p72 = por %p70, %p71
    %p73 = scmp.ne.s32.totalorder %s61, %s62
    %p74 = scmp.eq.s32.totalorder %s19, 1
    %p75 = por %p73, %p74
    %p77 = scmp.ne.s32.totalorder %s62, %s76
    %p78 = scmp.eq.s32.totalorder %s19, 0
    %p79 = por %p77, %p78
    %s81 = sadd.s32 %s80, 1
    %p84 = scmp.eq.s32.totalorder %s13, 1
    %p85 = scmp.ne.s32.totalorder %s80, %s82
    %p86 = scmp.eq.s32.totalorder %s13, 0
    %p87 = por %p85, %p86
    %p88 = scmp.ne.s32.totalorder %s80, %s82
    %p89 = scmp.eq.s32.totalorder %s18, 1
    %p90 = por %p88, %p89
    %p91 = scmp.ne.s32.totalorder %s82, %s83
    %p92 = scmp.eq.s32.totalorder %s18, 0
    %p93 = por %p91, %p92
    %p94 = scmp.ne.s32.totalorder %s82, %s83
    %p95 = scmp.eq.s32.totalorder %s19, 1
    %p96 = por %p94, %p95
    %p98 = scmp.ne.s32.totalorder %s83, %s97
    %p99 = scmp.eq.s32.totalorder %s19, 0
    %p100 = por %p98, %p99
    %s102 = sadd.s32 %s101, 1
    %p105 = scmp.eq.s32.totalorder %s13, 1
    %p106 = scmp.ne.s32.totalorder %s101, %s103
    %p107 = scmp.eq.s32.totalorder %s13, 0
    %p108 = por %p106, %p107
    %p109 = scmp.ne.s32.totalorder %s101, %s103
    %p110 = scmp.eq.s32.totalorder %s18, 1
    %p111 = por %p109, %p110
    %p112 = scmp.ne.s32.totalorder %s103, %s104
    %p113 = scmp.eq.s32.totalorder %s18, 0
    %p114 = por %p112, %p113
    %p115 = scmp.ne.s32.totalorder %s103, %s104
    %p116 = scmp.eq.s32.totalorder %s19, 1
    %p117 = por %p115, %p116
    %p119 = scmp.ne.s32.totalorder %s104, %s118
    %p120 = scmp.eq.s32.totalorder %s19, 0
    %p121 = por %p119, %p120
    %s123 = sadd.s32 %s122, 1
    %p126 = scmp.eq.s32.totalorder %s13, 1
    %p127 = scmp.ne.s32.totalorder %s122, %s124
    %p128 = scmp.eq.s32.totalorder %s13, 0
    %p129 = por %p127, %p128
    %p130 = scmp.ne.s32.totalorder %s122, %s124
    %p131 = scmp.eq.s32.totalorder %s18, 1
    %p132 = por %p130, %p131
    %p133 = scmp.ne.s32.totalorder %s124, %s125
    %p134 = scmp.eq.s32.totalorder %s18, 0
    %p135 = por %p133, %p134
    %p136 = scmp.ne.s32.totalorder %s124, %s125
    %p137 = scmp.eq.s32.totalorder %s19, 1
    %p138 = por %p136, %p137
    %p140 = scmp.ne.s32.totalorder %s125, %s139
    %p141 = scmp.eq.s32.totalorder %s19, 0
    %p142 = por %p140, %p141
    %s144 = sadd.s32 %s143, 1
    %p147 = scmp.eq.s32.totalorder %s13, 1
    %p148 = scmp.ne.s32.totalorder %s143, %s145
    %p149 = scmp.eq.s32.totalorder %s13, 0
    %p150 = por %p148, %p149
    %p151 = scmp.ne.s32.totalorder %s143, %s145
    %p152 = scmp.eq.s32.totalorder %s18, 1
    %p153 = por %p151, %p152
    %p154 = scmp.ne.s32.totalorder %s145, %s146
    %p155 = scmp.eq.s32.totalorder %s18, 0
    %p156 = por %p154, %p155
    %p157 = scmp.ne.s32.totalorder %s145, %s146
    %p158 = scmp.eq.s32.totalorder %s19, 1
    %p159 = por %p157, %p158
    %p161 = scmp.ne.s32.totalorder %s146, %s160
    %p162 = scmp.eq.s32.totalorder %s19, 0
    %p163 = por %p161, %p162
    %s165 = sadd.s32 %s164, 1
    %p168 = scmp.eq.s32.totalorder %s13, 1
    %p169 = scmp.ne.s32.totalorder %s164, %s166
    %p170 = scmp.eq.s32.totalorder %s13, 0
    %p171 = por %p169, %p170
    %p172 = scmp.ne.s32.totalorder %s164, %s166
    %p173 = scmp.eq.s32.totalorder %s18, 1
    %p174 = por %p172, %p173
    %p175 = scmp.ne.s32.totalorder %s166, %s167
    %p176 = scmp.eq.s32.totalorder %s18, 0
    %p177 = por %p175, %p176
    %p178 = scmp.ne.s32.totalorder %s166, %s167
    %p179 = scmp.eq.s32.totalorder %s19, 1
    %p180 = por %p178, %p179
    %p182 = scmp.ne.s32.totalorder %s167, %s181
    %p183 = scmp.eq.s32.totalorder %s19, 0
    %p184 = por %p182, %p183
    %s185 = ssub.s32 %s20, %s32
    %s186 = ssub.s32 %s21, %s28
    %s187 = sor.u32 %s185, %s186
    %p188 = scmp.eq.s32.totalorder %s187, 0
    %s190 = sadd.s32 %s189, 1
    %s191 = scalar_select %p188, %s189, %s190
    %p194 = pneg %p188
    %p195 = scmp.eq.s32.totalorder %s13, 1
    %p196 = por %p194, %p195
    %p197 = scmp.ne.s32.totalorder %s189, %s192
    %p198 = scmp.eq.s32.totalorder %s13, 0
    %p199 = por %p197, %p198
    %p200 = scmp.ne.s32.totalorder %s189, %s192
    %p201 = scmp.eq.s32.totalorder %s18, 1
    %p202 = por %p200, %p201
    %p203 = scmp.ne.s32.totalorder %s192, %s193
    %p204 = scmp.eq.s32.totalorder %s18, 0
    %p205 = por %p203, %p204
    %p206 = scmp.ne.s32.totalorder %s192, %s193
    %p207 = scmp.eq.s32.totalorder %s19, 1
    %p208 = por %p206, %p207
    %p210 = scmp.ne.s32.totalorder %s193, %s209
    %p211 = scmp.eq.s32.totalorder %s19, 0
    %p212 = por %p210, %p211
    %p213 = scmp.le.s32.totalorder 1, %s13
    %p214 = scmp.lt.s32.totalorder %s13, 3
    %p215 = pnand %p213, %p214
    %p216 = pneg %p215
    // Predicated region
    $region9: #{birealnet_block.1} parent=5 // pred_check
      _
    $region10: #{birealnet_block.1} parent=5 // pred_check_branch
      %218 = sbr.rel (%p215) target = $region12
    $region11: #{birealnet_block.1} parent=5 // pred_region
      %s219 = ssub.s32 %s13, 1
      // Predicated region
      $region13: #{birealnet_block.1} parent=11 // pred_check
        %p220 = pneg %p72
      $region14: #{birealnet_block.1} parent=11 // pred_check_branch
        %222 = sbr.rel (%p220) target = $region16
      $region15: #{birealnet_block.1} parent=11 // pred_region
        _
      $region16: #{birealnet_block.1} parent=11 // pred_fallthru
        _
      // Predicated region
      $region17: #{birealnet_block.1} parent=11 // pred_check
        %p223 = pneg %p93
      $region18: #{birealnet_block.1} parent=11 // pred_check_branch
        %225 = sbr.rel (%p223) target = $region20
      $region19: #{birealnet_block.1} parent=11 // pred_region
        _
      $region20: #{birealnet_block.1} parent=11 // pred_fallthru
        _
      // Predicated region
      $region21: #{birealnet_block.1} parent=11 // pred_check
        %p226 = pneg %p114
      $region22: #{birealnet_block.1} parent=11 // pred_check_branch
        %228 = sbr.rel (%p226) target = $region24
      $region23: #{birealnet_block.1} parent=11 // pred_region
        _
      $region24: #{birealnet_block.1} parent=11 // pred_fallthru
        _
      // Predicated region
      $region25: #{birealnet_block.1} parent=11 // pred_check
        %p229 = pneg %p135
      $region26: #{birealnet_block.1} parent=11 // pred_check_branch
        %231 = sbr.rel (%p229) target = $region28
      $region27: #{birealnet_block.1} parent=11 // pred_region
        _
      $region28: #{birealnet_block.1} parent=11 // pred_fallthru
        _
      // Predicated region
      $region29: #{birealnet_block.1} parent=11 // pred_check
        %p232 = pneg %p156
      $region30: #{birealnet_block.1} parent=11 // pred_check_branch
        %234 = sbr.rel (%p232) target = $region32
      $region31: #{birealnet_block.1} parent=11 // pred_region
        _
      $region32: #{birealnet_block.1} parent=11 // pred_fallthru
        _
      // Predicated region
      $region33: #{birealnet_block.1} parent=11 // pred_check
        %p235 = pneg %p177
      $region34: #{birealnet_block.1} parent=11 // pred_check_branch
        %237 = sbr.rel (%p235) target = $region36
      $region35: #{birealnet_block.1} parent=11 // pred_region
        _
      $region36: #{birealnet_block.1} parent=11 // pred_fallthru
        _
    $region12: #{birealnet_block.1} parent=5 // pred_fallthru
      _
    %p238 = scmp.lt.s32.totalorder %s13, 2
    // Predicated region
    $region37: #{birealnet_block.1} parent=5 // pred_check
      %p239 = pneg %p238
    $region38: #{birealnet_block.1} parent=5 // pred_check_branch
      %241 = sbr.rel (%p239) target = $region40
    $region39: #{birealnet_block.1} parent=5 // pred_region
      // Predicated region
      $region41: #{birealnet_block.1} parent=39 // pred_check
        %p242 = pneg %p45
      $region42: #{birealnet_block.1} parent=39 // pred_check_branch
        %244 = sbr.rel (%p242) target = $region44
      $region43: #{birealnet_block.1} parent=39 // pred_region
        %p245 = scmp.lt.s32.totalorder %s20, 1
        %s246 = scalar_select %p245, %s20, 1
        %s247 = smul.addr %s246, 32
        %s248 = smul.addr %s247, 8
        %s249 = scalar_lea.vmem %s0, %s248
      $region44: #{birealnet_block.1} parent=39 // pred_fallthru
        _
    $region40: #{birealnet_block.1} parent=5 // pred_fallthru
      _
    %p250 = scmp.le.s32.totalorder 1, %s13
    %p251 = scmp.lt.s32.totalorder %s13, 3
    %p252 = pnand %p250, %p251
    %p253 = pneg %p252
    // Predicated region
    $region45: #{birealnet_block.1} parent=5 // pred_check
      _
    $region46: #{birealnet_block.1} parent=5 // pred_check_branch
      %255 = sbr.rel (%p252) target = $region48
    $region47: #{birealnet_block.1} parent=5 // pred_region
      %s256 = ssub.s32 %s13, 1
      %p257 = scmp.lt.s32.totalorder %s22, 1
      %s258 = scalar_select %p257, %s22, 1
      %s259 = smul.addr %s258, 32
      %s260 = smul.addr %s259, 8
      %s261 = scalar_lea.vmem %s0, %s260
      %p262 = pneg %p51
      %p263 = pneg %p48
      %p264 = pneg %p72
      %p265 = pneg %p69
      %p266 = pneg %p93
      %p267 = pneg %p90
      %p268 = pneg %p114
      %p269 = pneg %p111
      %p270 = pneg %p135
      %p271 = pneg %p132
      %p272 = pneg %p156
      %p273 = pneg %p153
      %p274 = pneg %p177
      %p275 = pneg %p174
      %p276 = pneg %p205
      %p277 = pneg %p202
      %s278 = smul.u32 2, %s23
      %p279 = scmp.lt.s32.totalorder %s22, 1
      %s280 = scalar_select %p279, %s22, 1
      %p281 = scmp.lt.s32.totalorder %s278, 1
      %s282 = scalar_select %p281, %s278, 1
      %s283 = smul.addr %s282, 2
      %s284 = smul.addr %s280, 4
      %s285 = sadd.s32 %s283, %s284
      %s286 = smul.addr %s285, 8
      %s287 = scalar_lea.vmem %s7, %s286
      %p288 = scmp.lt.s32.totalorder %s22, 1
      %s289 = scalar_select %p288, %s22, 1
      %s290 = smul.addr %s289, 32
      %s291 = smul.addr %s290, 8
      %s292 = scalar_lea.vmem %s0, %s291
      %s293 = smul.u32 2, %s23
      %p294 = scmp.lt.s32.totalorder %s22, 1
      %s295 = scalar_select %p294, %s22, 1
      %p296 = scmp.lt.s32.totalorder %s293, 1
      %s297 = scalar_select %p296, %s293, 1
      %s298 = smul.addr %s297, 2
      %s299 = smul.addr %s295, 4
      %s300 = sadd.s32 %s298, %s299
      %s301 = smul.addr %s300, 8
      %s302 = scalar_lea.vmem %s7, %s301
      %s303 = smul.u32 2, %s23
      %s305 = smul.u32 %s23, 16
      %s306 = ssub.s32 %s305, 2
      %p307 = scmp.gt.s32.totalorder %s306, 0
      %s308 = scalar_select %p307, %s306, 0
      %s309 = smul.u32 %s308, 16
      %s310 = scalar_lea.vmem %s292, %s309
      %v311 = vld [vmem:[%s310] sm:$0xff]
      %v312 = vld [vmem:[%s310 + $0x8] sm:$0xff]
      %v313 = vld [vmem:[%s310 + $0x10] sm:$0xff]
      %v314 = vld [vmem:[%s310 + $0x18] sm:$0xff]
      %s315 = smul.u32 %s305, 16
      %s316 = scalar_lea.vmem %s292, %s315
      %v317 = vld [vmem:[%s316] sm:$0xff]
      %v318 = vld [vmem:[%s316 + $0x8] sm:$0xff]
      %v319 = vld [vmem:[%s316 + $0x10] sm:$0xff]
      %v320 = vld [vmem:[%s316 + $0x18] sm:$0xff]
      %v321 = vld [vmem:[%s316 + $0x20] sm:$0xff]
      %v322 = vld [vmem:[%s316 + $0x28] sm:$0xff]
      %v323 = vld [vmem:[%s316 + $0x30] sm:$0xff]
      %v324 = vld [vmem:[%s316 + $0x38] sm:$0xff]
      %v325 = vld [vmem:[%s316 + $0x40] sm:$0xff]
      %v326 = vld [vmem:[%s316 + $0x48] sm:$0xff]
      %v327 = vld [vmem:[%s316 + $0x50] sm:$0xff]
      %v328 = vld [vmem:[%s316 + $0x58] sm:$0xff]
      %v329 = vld [vmem:[%s316 + $0x60] sm:$0xff]
      %v330 = vld [vmem:[%s316 + $0x68] sm:$0xff]
      %v331 = vld [vmem:[%s316 + $0x70] sm:$0xff]
      %v332 = vld [vmem:[%s316 + $0x78] sm:$0xff]
      %v333 = vld [vmem:[%s316 + $0x80] sm:$0xff]
      %v334 = vld [vmem:[%s316 + $0x88] sm:$0xff]
      %v335 = vld [vmem:[%s316 + $0x90] sm:$0xff]
      %v336 = vld [vmem:[%s316 + $0x98] sm:$0xff]
      %v337 = vld [vmem:[%s316 + $0xa0] sm:$0xff]
      %v338 = vld [vmem:[%s316 + $0xa8] sm:$0xff]
      %v339 = vld [vmem:[%s316 + $0xb0] sm:$0xff]
      %v340 = vld [vmem:[%s316 + $0xb8] sm:$0xff]
      %v341 = vld [vmem:[%s316 + $0xc0] sm:$0xff]
      %v342 = vld [vmem:[%s316 + $0xc8] sm:$0xff]
      %v343 = vld [vmem:[%s316 + $0xd0] sm:$0xff]
      %v344 = vld [vmem:[%s316 + $0xd8] sm:$0xff]
      %v345 = vld [vmem:[%s316 + $0xe0] sm:$0xff]
      %v346 = vld [vmem:[%s316 + $0xe8] sm:$0xff]
      %v347 = vld [vmem:[%s316 + $0xf0] sm:$0xff]
      %v348 = vld [vmem:[%s316 + $0xf8] sm:$0xff]
      %s349 = sadd.s32 %s305, 16
      %p350 = scmp.lt.s32.totalorder %s349, 14
      %s351 = scalar_select %p350, %s349, 14
      %s352 = smul.u32 %s351, 16
      %s353 = scalar_lea.vmem %s292, %s352
      %v354 = vld [vmem:[%s353] sm:$0xff]
      %v355 = vld [vmem:[%s353 + $0x8] sm:$0xff]
      %v356 = vld [vmem:[%s353 + $0x10] sm:$0xff]
      %v357 = vld [vmem:[%s353 + $0x18] sm:$0xff]
      %p358 = scmp.gt.s32.totalorder %s305, 0
      %s359 = scalar_select %p358, 1, 0
      %v360 = vstv %s359
      %vm361 = vcmp.eq.s32.totalorder %v360, 1
      %v362 = vsel %vm361, %v311, 0.0
      %v363 = vsel %vm361, %v312, 0.0
      %v364 = vsel %vm361, %v313, 0.0
      %v365 = vsel %vm361, %v314, 0.0
      %p366 = scmp.lt.s32.totalorder %s349, 16
      %s367 = scalar_select %p366, 1, 0
      %v368 = vstv %s367
      %vm369 = vcmp.eq.s32.totalorder %v368, 1
      %v370 = vsel %vm369, %v354, 0.0
      %v371 = vsel %vm369, %v355, 0.0
      %v372 = vsel %vm369, %v356, 0.0
      %v373 = vsel %vm369, %v357, 0.0
      %vm374 = vcmp.gt.f32.partialorder %v362, 0.0
      %vm375 = vcmp.gt.f32.partialorder %v363, 0.0
      %vm376 = vcmp.gt.f32.partialorder %v364, 0.0
      %vm377 = vcmp.gt.f32.partialorder %v365, 0.0
      %vm378 = vcmp.gt.f32.partialorder %v317, 0.0
      %vm379 = vcmp.gt.f32.partialorder %v318, 0.0
      %vm380 = vcmp.gt.f32.partialorder %v319, 0.0
      %vm381 = vcmp.gt.f32.partialorder %v320, 0.0
      %vm382 = vcmp.gt.f32.partialorder %v321, 0.0
      %vm383 = vcmp.gt.f32.partialorder %v322, 0.0
      %vm384 = vcmp.gt.f32.partialorder %v323, 0.0
      %vm385 = vcmp.gt.f32.partialorder %v324, 0.0
      %vm386 = vcmp.gt.f32.partialorder %v325, 0.0
      %vm387 = vcmp.gt.f32.partialorder %v326, 0.0
      %vm388 = vcmp.gt.f32.partialorder %v327, 0.0
      %vm389 = vcmp.gt.f32.partialorder %v328, 0.0
      %vm390 = vcmp.gt.f32.partialorder %v329, 0.0
      %vm391 = vcmp.gt.f32.partialorder %v330, 0.0
      %vm392 = vcmp.gt.f32.partialorder %v331, 0.0
      %vm393 = vcmp.gt.f32.partialorder %v332, 0.0
      %vm394 = vcmp.gt.f32.partialorder %v333, 0.0
      %vm395 = vcmp.gt.f32.partialorder %v334, 0.0
      %vm396 = vcmp.gt.f32.partialorder %v335, 0.0
      %vm397 = vcmp.gt.f32.partialorder %v336, 0.0
      %vm398 = vcmp.gt.f32.partialorder %v337, 0.0
      %vm399 = vcmp.gt.f32.partialorder %v338, 0.0
      %vm400 = vcmp.gt.f32.partialorder %v339, 0.0
      %vm401 = vcmp.gt.f32.partialorder %v340, 0.0
      %vm402 = vcmp.gt.f32.partialorder %v341, 0.0
      %vm403 = vcmp.gt.f32.partialorder %v342, 0.0
      %vm404 = vcmp.gt.f32.partialorder %v343, 0.0
      %vm405 = vcmp.gt.f32.partialorder %v344, 0.0
      %vm406 = vcmp.gt.f32.partialorder %v345, 0.0
      %vm407 = vcmp.gt.f32.partialorder %v346, 0.0
      %vm408 = vcmp.gt.f32.partialorder %v347, 0.0
      %vm409 = vcmp.gt.f32.partialorder %v348, 0.0
      %vm410 = vcmp.gt.f32.partialorder %v370, 0.0
      %vm411 = vcmp.gt.f32.partialorder %v371, 0.0
      %vm412 = vcmp.gt.f32.partialorder %v372, 0.0
      %vm413 = vcmp.gt.f32.partialorder %v373, 0.0
      %vm414 = vcmp.lt.f32.partialorder %v362, 0.0
      %vm415 = vcmp.lt.f32.partialorder %v363, 0.0
      %vm416 = vcmp.lt.f32.partialorder %v364, 0.0
      %vm417 = vcmp.lt.f32.partialorder %v365, 0.0
      %vm418 = vcmp.lt.f32.partialorder %v317, 0.0
      %vm419 = vcmp.lt.f32.partialorder %v318, 0.0
      %vm420 = vcmp.lt.f32.partialorder %v319, 0.0
      %vm421 = vcmp.lt.f32.partialorder %v320, 0.0
      %vm422 = vcmp.lt.f32.partialorder %v321, 0.0
      %vm423 = vcmp.lt.f32.partialorder %v322, 0.0
      %vm424 = vcmp.lt.f32.partialorder %v323, 0.0
      %vm425 = vcmp.lt.f32.partialorder %v324, 0.0
      %vm426 = vcmp.lt.f32.partialorder %v325, 0.0
      %vm427 = vcmp.lt.f32.partialorder %v326, 0.0
      %vm428 = vcmp.lt.f32.partialorder %v327, 0.0
      %vm429 = vcmp.lt.f32.partialorder %v328, 0.0
      %vm430 = vcmp.lt.f32.partialorder %v329, 0.0
      %vm431 = vcmp.lt.f32.partialorder %v330, 0.0
      %vm432 = vcmp.lt.f32.partialorder %v331, 0.0
      %vm433 = vcmp.lt.f32.partialorder %v332, 0.0
      %vm434 = vcmp.lt.f32.partialorder %v333, 0.0
      %vm435 = vcmp.lt.f32.partialorder %v334, 0.0
      %vm436 = vcmp.lt.f32.partialorder %v335, 0.0
      %vm437 = vcmp.lt.f32.partialorder %v336, 0.0
      %vm438 = vcmp.lt.f32.partialorder %v337, 0.0
      %vm439 = vcmp.lt.f32.partialorder %v338, 0.0
      %vm440 = vcmp.lt.f32.partialorder %v339, 0.0
      %vm441 = vcmp.lt.f32.partialorder %v340, 0.0
      %vm442 = vcmp.lt.f32.partialorder %v341, 0.0
      %vm443 = vcmp.lt.f32.partialorder %v342, 0.0
      %vm444 = vcmp.lt.f32.partialorder %v343, 0.0
      %vm445 = vcmp.lt.f32.partialorder %v344, 0.0
      %vm446 = vcmp.lt.f32.partialorder %v345, 0.0
      %vm447 = vcmp.lt.f32.partialorder %v346, 0.0
      %vm448 = vcmp.lt.f32.partialorder %v347, 0.0
      %vm449 = vcmp.lt.f32.partialorder %v348, 0.0
      %vm450 = vcmp.lt.f32.partialorder %v370, 0.0
      %vm451 = vcmp.lt.f32.partialorder %v371, 0.0
      %vm452 = vcmp.lt.f32.partialorder %v372, 0.0
      %vm453 = vcmp.lt.f32.partialorder %v373, 0.0
      %v454 = vsel %vm414, -1.0, 0.0
      %v455 = vsel %vm415, -1.0, 0.0
      %v456 = vsel %vm416, -1.0, 0.0
      %v457 = vsel %vm417, -1.0, 0.0
      %v458 = vsel %vm418, -1.0, 0.0
      %v459 = vsel %vm419, -1.0, 0.0
      %v460 = vsel %vm420, -1.0, 0.0
      %v461 = vsel %vm421, -1.0, 0.0
      %v462 = vsel %vm422, -1.0, 0.0
      %v463 = vsel %vm423, -1.0, 0.0
      %v464 = vsel %vm424, -1.0, 0.0
      %v465 = vsel %vm425, -1.0, 0.0
      %v466 = vsel %vm426, -1.0, 0.0
      %v467 = vsel %vm427, -1.0, 0.0
      %v468 = vsel %vm428, -1.0, 0.0
      %v469 = vsel %vm429, -1.0, 0.0
      %v470 = vsel %vm430, -1.0, 0.0
      %v471 = vsel %vm431, -1.0, 0.0
      %v472 = vsel %vm432, -1.0, 0.0
      %v473 = vsel %vm433, -1.0, 0.0
      %v474 = vsel %vm434, -1.0, 0.0
      %v475 = vsel %vm435, -1.0, 0.0
      %v476 = vsel %vm436, -1.0, 0.0
      %v477 = vsel %vm437, -1.0, 0.0
      %v478 = vsel %vm438, -1.0, 0.0
      %v479 = vsel %vm439, -1.0, 0.0
      %v480 = vsel %vm440, -1.0, 0.0
      %v481 = vsel %vm441, -1.0, 0.0
      %v482 = vsel %vm442, -1.0, 0.0
      %v483 = vsel %vm443, -1.0, 0.0
      %v484 = vsel %vm444, -1.0, 0.0
      %v485 = vsel %vm445, -1.0, 0.0
      %v486 = vsel %vm446, -1.0, 0.0
      %v487 = vsel %vm447, -1.0, 0.0
      %v488 = vsel %vm448, -1.0, 0.0
      %v489 = vsel %vm449, -1.0, 0.0
      %v490 = vsel %vm450, -1.0, 0.0
      %v491 = vsel %vm451, -1.0, 0.0
      %v492 = vsel %vm452, -1.0, 0.0
      %v493 = vsel %vm453, -1.0, 0.0
      %v494 = vsel %vm374, 1.0, %v454
      %v495 = vsel %vm375, 1.0, %v455
      %v496 = vsel %vm376, 1.0, %v456
      %v497 = vsel %vm377, 1.0, %v457
      %v498 = vsel %vm378, 1.0, %v458
      %v499 = vsel %vm379, 1.0, %v459
      %v500 = vsel %vm380, 1.0, %v460
      %v501 = vsel %vm381, 1.0, %v461
      %v502 = vsel %vm382, 1.0, %v462
      %v503 = vsel %vm383, 1.0, %v463
      %v504 = vsel %vm384, 1.0, %v464
      %v505 = vsel %vm385, 1.0, %v465
      %v506 = vsel %vm386, 1.0, %v466
      %v507 = vsel %vm387, 1.0, %v467
      %v508 = vsel %vm388, 1.0, %v468
      %v509 = vsel %vm389, 1.0, %v469
      %v510 = vsel %vm390, 1.0, %v470
      %v511 = vsel %vm391, 1.0, %v471
      %v512 = vsel %vm392, 1.0, %v472
      %v513 = vsel %vm393, 1.0, %v473
      %v514 = vsel %vm394, 1.0, %v474
      %v515 = vsel %vm395, 1.0, %v475
      %v516 = vsel %vm396, 1.0, %v476
      %v517 = vsel %vm397, 1.0, %v477
      %v518 = vsel %vm398, 1.0, %v478
      %v519 = vsel %vm399, 1.0, %v479
      %v520 = vsel %vm400, 1.0, %v480
      %v521 = vsel %vm401, 1.0, %v481
      %v522 = vsel %vm402, 1.0, %v482
      %v523 = vsel %vm403, 1.0, %v483
      %v524 = vsel %vm404, 1.0, %v484
      %v525 = vsel %vm405, 1.0, %v485
      %v526 = vsel %vm406, 1.0, %v486
      %v527 = vsel %vm407, 1.0, %v487
      %v528 = vsel %vm408, 1.0, %v488
      %v529 = vsel %vm409, 1.0, %v489
      %v530 = vsel %vm410, 1.0, %v490
      %v531 = vsel %vm411, 1.0, %v491
      %v532 = vsel %vm412, 1.0, %v492
      %v533 = vsel %vm413, 1.0, %v493
      %v534 = vpack.c.bf16 %v495, %v494
      %v535 = vpack.c.bf16 %v497, %v496
      %v536 = vpack.c.bf16 %v499, %v498
      %v537 = vpack.c.bf16 %v501, %v500
      %v538 = vpack.c.bf16 %v503, %v502
      %v539 = vpack.c.bf16 %v505, %v504
      %v540 = vpack.c.bf16 %v507, %v506
      %v541 = vpack.c.bf16 %v509, %v508
      %v542 = vpack.c.bf16 %v511, %v510
      %v543 = vpack.c.bf16 %v513, %v512
      %v544 = vpack.c.bf16 %v515, %v514
      %v545 = vpack.c.bf16 %v517, %v516
      %v546 = vpack.c.bf16 %v519, %v518
      %v547 = vpack.c.bf16 %v521, %v520
      %v548 = vpack.c.bf16 %v523, %v522
      %v549 = vpack.c.bf16 %v525, %v524
      %v550 = vpack.c.bf16 %v527, %v526
      %v551 = vpack.c.bf16 %v529, %v528
      %v552 = vpack.c.bf16 %v531, %v530
      %v553 = vpack.c.bf16 %v533, %v532
      %v555 = vshrl.u32 %v534, 16
      %v557 = vrot.slane %v555, 7
      %v558 = vshll.u32 %v534, 16
      %v560 = vor.u32 %v557, %v558
      %v562 = vshrl.u32 %v535, 16
      %v564 = vrot.slane %v562, 7
      %v565 = vshll.u32 %v535, 16
      %v567 = vor.u32 %v564, %v565
      %v569 = vshrl.u32 %v536, 16
      %v571 = vrot.slane %v569, 7
      %v572 = vshll.u32 %v536, 16
      %v574 = vor.u32 %v571, %v572
      %v576 = vshrl.u32 %v537, 16
      %v578 = vrot.slane %v576, 7
      %v579 = vshll.u32 %v537, 16
      %v581 = vor.u32 %v578, %v579
      %v583 = vshrl.u32 %v538, 16
      %v585 = vrot.slane %v583, 7
      %v586 = vshll.u32 %v538, 16
      %v588 = vor.u32 %v585, %v586
      %v590 = vshrl.u32 %v539, 16
      %v592 = vrot.slane %v590, 7
      %v593 = vshll.u32 %v539, 16
      %v595 = vor.u32 %v592, %v593
      %v597 = vshrl.u32 %v540, 16
      %v599 = vrot.slane %v597, 7
      %v600 = vshll.u32 %v540, 16
      %v602 = vor.u32 %v599, %v600
      %v604 = vshrl.u32 %v541, 16
      %v606 = vrot.slane %v604, 7
      %v607 = vshll.u32 %v541, 16
      %v609 = vor.u32 %v606, %v607
      %v611 = vshrl.u32 %v542, 16
      %v613 = vrot.slane %v611, 7
      %v614 = vshll.u32 %v542, 16
      %v616 = vor.u32 %v613, %v614
      %v618 = vshrl.u32 %v543, 16
      %v620 = vrot.slane %v618, 7
      %v621 = vshll.u32 %v543, 16
      %v623 = vor.u32 %v620, %v621
      %v625 = vshrl.u32 %v544, 16
      %v627 = vrot.slane %v625, 7
      %v628 = vshll.u32 %v544, 16
      %v630 = vor.u32 %v627, %v628
      %v632 = vshrl.u32 %v545, 16
      %v634 = vrot.slane %v632, 7
      %v635 = vshll.u32 %v545, 16
      %v637 = vor.u32 %v634, %v635
      %v639 = vshrl.u32 %v546, 16
      %v641 = vrot.slane %v639, 7
      %v642 = vshll.u32 %v546, 16
      %v644 = vor.u32 %v641, %v642
      %v646 = vshrl.u32 %v547, 16
      %v648 = vrot.slane %v646, 7
      %v649 = vshll.u32 %v547, 16
      %v651 = vor.u32 %v648, %v649
      %v653 = vshrl.u32 %v548, 16
      %v655 = vrot.slane %v653, 7
      %v656 = vshll.u32 %v548, 16
      %v658 = vor.u32 %v655, %v656
      %v660 = vshrl.u32 %v549, 16
      %v662 = vrot.slane %v660, 7
      %v663 = vshll.u32 %v549, 16
      %v665 = vor.u32 %v662, %v663
      %v667 = vshrl.u32 %v550, 16
      %v669 = vrot.slane %v667, 7
      %v670 = vshll.u32 %v550, 16
      %v672 = vor.u32 %v669, %v670
      %v674 = vshrl.u32 %v551, 16
      %v676 = vrot.slane %v674, 7
      %v677 = vshll.u32 %v551, 16
      %v679 = vor.u32 %v676, %v677
      %v681 = vshrl.u32 %v552, 16
      %v683 = vrot.slane %v681, 7
      %v684 = vshll.u32 %v552, 16
      %v686 = vor.u32 %v683, %v684
      %v688 = vshrl.u32 %v553, 16
      %v690 = vrot.slane %v688, 7
      %v691 = vshll.u32 %v553, 16
      %v693 = vor.u32 %v690, %v691
      %vm734 = vcmask 1040384
      %vm735 = vsmask.f32 256
      %vm736 = vmand %vm734, %vm735
      %v737 = vsel %vm736, 0, %v560
      %v738 = vsel %vm736, 0, %v567
      %v739 = vsel %vm736, 0, %v574
      %v740 = vsel %vm736, 0, %v581
      %v741 = vsel %vm736, 0, %v588
      %v742 = vsel %vm736, 0, %v595
      %v743 = vsel %vm736, 0, %v602
      %v744 = vsel %vm736, 0, %v609
      %v745 = vsel %vm736, 0, %v616
      %v746 = vsel %vm736, 0, %v623
      %v747 = vsel %vm736, 0, %v630
      %v748 = vsel %vm736, 0, %v637
      %v749 = vsel %vm736, 0, %v644
      %v750 = vsel %vm736, 0, %v651
      %v751 = vsel %vm736, 0, %v658
      %v752 = vsel %vm736, 0, %v665
      %v753 = vsel %vm736, 0, %v672
      %v754 = vsel %vm736, 0, %v679
      %v755 = vsel %vm736, 0, %v686
      %v756 = vsel %vm736, 0, %v693
      %v757 = vsel %vm736, %v557, 0
      %v758 = vsel %vm736, %v564, 0
      %v759 = vsel %vm736, %v571, 0
      %v760 = vsel %vm736, %v578, 0
      %v761 = vsel %vm736, %v585, 0
      %v762 = vsel %vm736, %v592, 0
      %v763 = vsel %vm736, %v599, 0
      %v764 = vsel %vm736, %v606, 0
      %v765 = vsel %vm736, %v613, 0
      %v766 = vsel %vm736, %v620, 0
      %v767 = vsel %vm736, %v627, 0
      %v768 = vsel %vm736, %v634, 0
      %v769 = vsel %vm736, %v641, 0
      %v770 = vsel %vm736, %v648, 0
      %v771 = vsel %vm736, %v655, 0
      %v772 = vsel %vm736, %v662, 0
      %v773 = vsel %vm736, %v669, 0
      %v774 = vsel %vm736, %v676, 0
      %v775 = vsel %vm736, %v683, 0
      %v776 = vsel %vm736, %v690, 0
      %795 = vrot.lane.b32.xlu0 %v738, 16
      %v796 = vpop.permute.xlu0 %795
      %797 = vrot.lane.b32.xlu0 %v739, 16
      %v798 = vpop.permute.xlu0 %797
      %799 = vrot.lane.b32.xlu0 %v740, 16
      %v800 = vpop.permute.xlu0 %799
      %801 = vrot.lane.b32.xlu0 %v741, 16
      %v802 = vpop.permute.xlu0 %801
      %803 = vrot.lane.b32.xlu0 %v742, 16
      %v804 = vpop.permute.xlu0 %803
      %805 = vrot.lane.b32.xlu0 %v743, 16
      %v806 = vpop.permute.xlu0 %805
      %807 = vrot.lane.b32.xlu0 %v744, 16
      %v808 = vpop.permute.xlu0 %807
      %809 = vrot.lane.b32.xlu0 %v745, 16
      %v810 = vpop.permute.xlu0 %809
      %811 = vrot.lane.b32.xlu0 %v746, 16
      %v812 = vpop.permute.xlu0 %811
      %813 = vrot.lane.b32.xlu0 %v747, 16
      %v814 = vpop.permute.xlu0 %813
      %815 = vrot.lane.b32.xlu0 %v748, 16
      %v816 = vpop.permute.xlu0 %815
      %817 = vrot.lane.b32.xlu0 %v749, 16
      %v818 = vpop.permute.xlu0 %817
      %819 = vrot.lane.b32.xlu0 %v750, 16
      %v820 = vpop.permute.xlu0 %819
      %821 = vrot.lane.b32.xlu0 %v751, 16
      %v822 = vpop.permute.xlu0 %821
      %823 = vrot.lane.b32.xlu0 %v752, 16
      %v824 = vpop.permute.xlu0 %823
      %825 = vrot.lane.b32.xlu0 %v753, 16
      %v826 = vpop.permute.xlu0 %825
      %827 = vrot.lane.b32.xlu0 %v754, 16
      %v828 = vpop.permute.xlu0 %827
      %829 = vrot.lane.b32.xlu0 %v755, 16
      %v830 = vpop.permute.xlu0 %829
      %832 = vrot.lane.b32.xlu0 %v739, 32
      %v833 = vpop.permute.xlu0 %832
      %834 = vrot.lane.b32.xlu0 %v740, 32
      %v835 = vpop.permute.xlu0 %834
      %836 = vrot.lane.b32.xlu0 %v741, 32
      %v837 = vpop.permute.xlu0 %836
      %838 = vrot.lane.b32.xlu0 %v742, 32
      %v839 = vpop.permute.xlu0 %838
      %840 = vrot.lane.b32.xlu0 %v743, 32
      %v841 = vpop.permute.xlu0 %840
      %842 = vrot.lane.b32.xlu0 %v744, 32
      %v843 = vpop.permute.xlu0 %842
      %844 = vrot.lane.b32.xlu0 %v745, 32
      %v845 = vpop.permute.xlu0 %844
      %846 = vrot.lane.b32.xlu0 %v746, 32
      %v847 = vpop.permute.xlu0 %846
      %848 = vrot.lane.b32.xlu0 %v747, 32
      %v849 = vpop.permute.xlu0 %848
      %850 = vrot.lane.b32.xlu0 %v748, 32
      %v851 = vpop.permute.xlu0 %850
      %852 = vrot.lane.b32.xlu0 %v749, 32
      %v853 = vpop.permute.xlu0 %852
      %854 = vrot.lane.b32.xlu0 %v750, 32
      %v855 = vpop.permute.xlu0 %854
      %856 = vrot.lane.b32.xlu0 %v751, 32
      %v857 = vpop.permute.xlu0 %856
      %858 = vrot.lane.b32.xlu0 %v752, 32
      %v859 = vpop.permute.xlu0 %858
      %860 = vrot.lane.b32.xlu0 %v753, 32
      %v861 = vpop.permute.xlu0 %860
      %862 = vrot.lane.b32.xlu0 %v754, 32
      %v863 = vpop.permute.xlu0 %862
      %864 = vrot.lane.b32.xlu0 %v755, 32
      %v865 = vpop.permute.xlu0 %864
      %866 = vrot.lane.b32.xlu0 %v756, 32
      %v867 = vpop.permute.xlu0 %866
      %vm868 = vcmask 130048
      %v871 = vsel %vm868, %v737, %v796
      %v874 = vsel %vm868, %v738, %v798
      %v877 = vsel %vm868, %v739, %v800
      %v880 = vsel %vm868, %v740, %v802
      %v883 = vsel %vm868, %v741, %v804
      %v886 = vsel %vm868, %v742, %v806
      %v889 = vsel %vm868, %v743, %v808
      %v892 = vsel %vm868, %v744, %v810
      %v895 = vsel %vm868, %v745, %v812
      %v898 = vsel %vm868, %v746, %v814
      %v901 = vsel %vm868, %v747, %v816
      %v904 = vsel %vm868, %v748, %v818
      %v907 = vsel %vm868, %v749, %v820
      %v910 = vsel %vm868, %v750, %v822
      %v913 = vsel %vm868, %v751, %v824
      %v916 = vsel %vm868, %v752, %v826
      %v919 = vsel %vm868, %v753, %v828
      %v922 = vsel %vm868, %v754, %v830
      %vm923 = vcmask 261120
      %v925 = vsel %vm923, %v871, %v833
      %v927 = vsel %vm923, %v874, %v835
      %v929 = vsel %vm923, %v877, %v837
      %v931 = vsel %vm923, %v880, %v839
      %v933 = vsel %vm923, %v883, %v841
      %v935 = vsel %vm923, %v886, %v843
      %v937 = vsel %vm923, %v889, %v845
      %v939 = vsel %vm923, %v892, %v847
      %v941 = vsel %vm923, %v895, %v849
      %v943 = vsel %vm923, %v898, %v851
      %v945 = vsel %vm923, %v901, %v853
      %v947 = vsel %vm923, %v904, %v855
      %v949 = vsel %vm923, %v907, %v857
      %v951 = vsel %vm923, %v910, %v859
      %v953 = vsel %vm923, %v913, %v861
      %v955 = vsel %vm923, %v916, %v863
      %v957 = vsel %vm923, %v919, %v865
      %v959 = vsel %vm923, %v922, %v867
      %v960 = vld [vmem:[%s1] sm:$0xf]
      %v961 = vld [vmem:[%s1 + $0x4] sm:$0xf]
      %v962 = vld [vmem:[%s1 + $0x8] sm:$0xf]
      %v963 = vld [vmem:[%s1 + $0xc] sm:$0xf]
      %v964 = vld [vmem:[%s1 + $0x10] sm:$0xf]
      %v965 = vld [vmem:[%s1 + $0x14] sm:$0xf]
      %984 = vrot.lane.b32.xlu0 %v758, 16
      %v985 = vpop.permute.xlu0 %984
      %986 = vrot.lane.b32.xlu0 %v759, 16
      %v987 = vpop.permute.xlu0 %986
      %988 = vrot.lane.b32.xlu0 %v760, 16
      %v989 = vpop.permute.xlu0 %988
      %990 = vrot.lane.b32.xlu0 %v761, 16
      %v991 = vpop.permute.xlu0 %990
      %992 = vrot.lane.b32.xlu0 %v762, 16
      %v993 = vpop.permute.xlu0 %992
      %994 = vrot.lane.b32.xlu0 %v763, 16
      %v995 = vpop.permute.xlu0 %994
      %996 = vrot.lane.b32.xlu0 %v764, 16
      %v997 = vpop.permute.xlu0 %996
      %998 = vrot.lane.b32.xlu0 %v765, 16
      %v999 = vpop.permute.xlu0 %998
      %1000 = vrot.lane.b32.xlu0 %v766, 16
      %v1001 = vpop.permute.xlu0 %1000
      %1002 = vrot.lane.b32.xlu0 %v767, 16
      %v1003 = vpop.permute.xlu0 %1002
      %1004 = vrot.lane.b32.xlu0 %v768, 16
      %v1005 = vpop.permute.xlu0 %1004
      %1006 = vrot.lane.b32.xlu0 %v769, 16
      %v1007 = vpop.permute.xlu0 %1006
      %1008 = vrot.lane.b32.xlu0 %v770, 16
      %v1009 = vpop.permute.xlu0 %1008
      %1010 = vrot.lane.b32.xlu0 %v771, 16
      %v1011 = vpop.permute.xlu0 %1010
      %1012 = vrot.lane.b32.xlu0 %v772, 16
      %v1013 = vpop.permute.xlu0 %1012
      %1014 = vrot.lane.b32.xlu0 %v773, 16
      %v1015 = vpop.permute.xlu0 %1014
      %1016 = vrot.lane.b32.xlu0 %v774, 16
      %v1017 = vpop.permute.xlu0 %1016
      %1018 = vrot.lane.b32.xlu0 %v775, 16
      %v1019 = vpop.permute.xlu0 %1018
      %1021 = vrot.lane.b32.xlu0 %v759, 32
      %v1022 = vpop.permute.xlu0 %1021
      %1023 = vrot.lane.b32.xlu0 %v760, 32
      %v1024 = vpop.permute.xlu0 %1023
      %1025 = vrot.lane.b32.xlu0 %v761, 32
      %v1026 = vpop.permute.xlu0 %1025
      %1027 = vrot.lane.b32.xlu0 %v762, 32
      %v1028 = vpop.permute.xlu0 %1027
      %1029 = vrot.lane.b32.xlu0 %v763, 32
      %v1030 = vpop.permute.xlu0 %1029
      %1031 = vrot.lane.b32.xlu0 %v764, 32
      %v1032 = vpop.permute.xlu0 %1031
      %1033 = vrot.lane.b32.xlu0 %v765, 32
      %v1034 = vpop.permute.xlu0 %1033
      %1035 = vrot.lane.b32.xlu0 %v766, 32
      %v1036 = vpop.permute.xlu0 %1035
      %1037 = vrot.lane.b32.xlu0 %v767, 32
      %v1038 = vpop.permute.xlu0 %1037
      %1039 = vrot.lane.b32.xlu0 %v768, 32
      %v1040 = vpop.permute.xlu0 %1039
      %1041 = vrot.lane.b32.xlu0 %v769, 32
      %v1042 = vpop.permute.xlu0 %1041
      %1043 = vrot.lane.b32.xlu0 %v770, 32
      %v1044 = vpop.permute.xlu0 %1043
      %1045 = vrot.lane.b32.xlu0 %v771, 32
      %v1046 = vpop.permute.xlu0 %1045
      %1047 = vrot.lane.b32.xlu0 %v772, 32
      %v1048 = vpop.permute.xlu0 %1047
      %1049 = vrot.lane.b32.xlu0 %v773, 32
      %v1050 = vpop.permute.xlu0 %1049
      %1051 = vrot.lane.b32.xlu0 %v774, 32
      %v1052 = vpop.permute.xlu0 %1051
      %1053 = vrot.lane.b32.xlu0 %v775, 32
      %v1054 = vpop.permute.xlu0 %1053
      %1055 = vrot.lane.b32.xlu0 %v776, 32
      %v1056 = vpop.permute.xlu0 %1055
      %v1059 = vsel %vm868, %v757, %v985
      %v1062 = vsel %vm868, %v758, %v987
      %v1065 = vsel %vm868, %v759, %v989
      %v1068 = vsel %vm868, %v760, %v991
      %v1071 = vsel %vm868, %v761, %v993
      %v1074 = vsel %vm868, %v762, %v995
      %v1077 = vsel %vm868, %v763, %v997
      %v1080 = vsel %vm868, %v764, %v999
      %v1083 = vsel %vm868, %v765, %v1001
      %v1086 = vsel %vm868, %v766, %v1003
      %v1089 = vsel %vm868, %v767, %v1005
      %v1092 = vsel %vm868, %v768, %v1007
      %v1095 = vsel %vm868, %v769, %v1009
      %v1098 = vsel %vm868, %v770, %v1011
      %v1101 = vsel %vm868, %v771, %v1013
      %v1104 = vsel %vm868, %v772, %v1015
      %v1107 = vsel %vm868, %v773, %v1017
      %v1110 = vsel %vm868, %v774, %v1019
      %v1112 = vsel %vm923, %v1059, %v1022
      %v1114 = vsel %vm923, %v1062, %v1024
      %v1116 = vsel %vm923, %v1065, %v1026
      %v1118 = vsel %vm923, %v1068, %v1028
      %v1120 = vsel %vm923, %v1071, %v1030
      %v1122 = vsel %vm923, %v1074, %v1032
      %v1124 = vsel %vm923, %v1077, %v1034
      %v1126 = vsel %vm923, %v1080, %v1036
      %v1128 = vsel %vm923, %v1083, %v1038
      %v1130 = vsel %vm923, %v1086, %v1040
      %v1132 = vsel %vm923, %v1089, %v1042
      %v1134 = vsel %vm923, %v1092, %v1044
      %v1136 = vsel %vm923, %v1095, %v1046
      %v1138 = vsel %vm923, %v1098, %v1048
      %v1140 = vsel %vm923, %v1101, %v1050
      %v1142 = vsel %vm923, %v1104, %v1052
      %v1144 = vsel %vm923, %v1107, %v1054
      %v1146 = vsel %vm923, %v1110, %v1056
      %vm1147 = vsmask.f32 7424
      %v1148 = vshrl.u32 %v925, 16
      %v1150 = vshll.u32 %v925, 16
      %v1152 = vrot.slane %v1150, 1
      %v1153 = vor.u32 %v1148, %v1152
      %v1154 = vshll.u32 %v1112, 16
      %v1156 = vrot.slane %v1154, 1
      %v1157 = vsel %vm1147, %v1153, %v1156
      %v1158 = vshrl.u32 %v927, 16
      %v1160 = vshll.u32 %v927, 16
      %v1162 = vrot.slane %v1160, 1
      %v1163 = vor.u32 %v1158, %v1162
      %v1164 = vshll.u32 %v1114, 16
      %v1166 = vrot.slane %v1164, 1
      %v1167 = vsel %vm1147, %v1163, %v1166
      %v1168 = vshrl.u32 %v929, 16
      %v1170 = vshll.u32 %v929, 16
      %v1172 = vrot.slane %v1170, 1
      %v1173 = vor.u32 %v1168, %v1172
      %v1174 = vshll.u32 %v1116, 16
      %v1176 = vrot.slane %v1174, 1
      %v1177 = vsel %vm1147, %v1173, %v1176
      %v1178 = vshrl.u32 %v931, 16
      %v1180 = vshll.u32 %v931, 16
      %v1182 = vrot.slane %v1180, 1
      %v1183 = vor.u32 %v1178, %v1182
      %v1184 = vshll.u32 %v1118, 16
      %v1186 = vrot.slane %v1184, 1
      %v1187 = vsel %vm1147, %v1183, %v1186
      %v1188 = vshrl.u32 %v933, 16
      %v1190 = vshll.u32 %v933, 16
      %v1192 = vrot.slane %v1190, 1
      %v1193 = vor.u32 %v1188, %v1192
      %v1194 = vshll.u32 %v1120, 16
      %v1196 = vrot.slane %v1194, 1
      %v1197 = vsel %vm1147, %v1193, %v1196
      %v1198 = vshrl.u32 %v935, 16
      %v1200 = vshll.u32 %v935, 16
      %v1202 = vrot.slane %v1200, 1
      %v1203 = vor.u32 %v1198, %v1202
      %v1204 = vshll.u32 %v1122, 16
      %v1206 = vrot.slane %v1204, 1
      %v1207 = vsel %vm1147, %v1203, %v1206
      %v1208 = vshrl.u32 %v937, 16
      %v1210 = vshll.u32 %v937, 16
      %v1212 = vrot.slane %v1210, 1
      %v1213 = vor.u32 %v1208, %v1212
      %v1214 = vshll.u32 %v1124, 16
      %v1216 = vrot.slane %v1214, 1
      %v1217 = vsel %vm1147, %v1213, %v1216
      %v1218 = vshrl.u32 %v939, 16
      %v1220 = vshll.u32 %v939, 16
      %v1222 = vrot.slane %v1220, 1
      %v1223 = vor.u32 %v1218, %v1222
      %v1224 = vshll.u32 %v1126, 16
      %v1226 = vrot.slane %v1224, 1
      %v1227 = vsel %vm1147, %v1223, %v1226
      %v1228 = vshrl.u32 %v941, 16
      %v1230 = vshll.u32 %v941, 16
      %v1232 = vrot.slane %v1230, 1
      %v1233 = vor.u32 %v1228, %v1232
      %v1234 = vshll.u32 %v1128, 16
      %v1236 = vrot.slane %v1234, 1
      %v1237 = vsel %vm1147, %v1233, %v1236
      %v1238 = vshrl.u32 %v943, 16
      %v1240 = vshll.u32 %v943, 16
      %v1242 = vrot.slane %v1240, 1
      %v1243 = vor.u32 %v1238, %v1242
      %v1244 = vshll.u32 %v1130, 16
      %v1246 = vrot.slane %v1244, 1
      %v1247 = vsel %vm1147, %v1243, %v1246
      %v1248 = vshrl.u32 %v945, 16
      %v1250 = vshll.u32 %v945, 16
      %v1252 = vrot.slane %v1250, 1
      %v1253 = vor.u32 %v1248, %v1252
      %v1254 = vshll.u32 %v1132, 16
      %v1256 = vrot.slane %v1254, 1
      %v1257 = vsel %vm1147, %v1253, %v1256
      %v1258 = vshrl.u32 %v947, 16
      %v1260 = vshll.u32 %v947, 16
      %v1262 = vrot.slane %v1260, 1
      %v1263 = vor.u32 %v1258, %v1262
      %v1264 = vshll.u32 %v1134, 16
      %v1266 = vrot.slane %v1264, 1
      %v1267 = vsel %vm1147, %v1263, %v1266
      %v1268 = vshrl.u32 %v949, 16
      %v1270 = vshll.u32 %v949, 16
      %v1272 = vrot.slane %v1270, 1
      %v1273 = vor.u32 %v1268, %v1272
      %v1274 = vshll.u32 %v1136, 16
      %v1276 = vrot.slane %v1274, 1
      %v1277 = vsel %vm1147, %v1273, %v1276
      %v1278 = vshrl.u32 %v951, 16
      %v1280 = vshll.u32 %v951, 16
      %v1282 = vrot.slane %v1280, 1
      %v1283 = vor.u32 %v1278, %v1282
      %v1284 = vshll.u32 %v1138, 16
      %v1286 = vrot.slane %v1284, 1
      %v1287 = vsel %vm1147, %v1283, %v1286
      %v1288 = vshrl.u32 %v953, 16
      %v1290 = vshll.u32 %v953, 16
      %v1292 = vrot.slane %v1290, 1
      %v1293 = vor.u32 %v1288, %v1292
      %v1294 = vshll.u32 %v1140, 16
      %v1296 = vrot.slane %v1294, 1
      %v1297 = vsel %vm1147, %v1293, %v1296
      %v1298 = vshrl.u32 %v955, 16
      %v1300 = vshll.u32 %v955, 16
      %v1302 = vrot.slane %v1300, 1
      %v1303 = vor.u32 %v1298, %v1302
      %v1304 = vshll.u32 %v1142, 16
      %v1306 = vrot.slane %v1304, 1
      %v1307 = vsel %vm1147, %v1303, %v1306
      %v1308 = vshrl.u32 %v957, 16
      %v1310 = vshll.u32 %v957, 16
      %v1312 = vrot.slane %v1310, 1
      %v1313 = vor.u32 %v1308, %v1312
      %v1314 = vshll.u32 %v1144, 16
      %v1316 = vrot.slane %v1314, 1
      %v1317 = vsel %vm1147, %v1313, %v1316
      %v1318 = vshrl.u32 %v959, 16
      %v1320 = vshll.u32 %v959, 16
      %v1322 = vrot.slane %v1320, 1
      %v1323 = vor.u32 %v1318, %v1322
      %v1324 = vshll.u32 %v1146, 16
      %v1326 = vrot.slane %v1324, 1
      %v1327 = vsel %vm1147, %v1323, %v1326
      %s1328 = scalar_lea.vmem %s1, 24
      %v1329 = vld [vmem:[%s1328] sm:$0xf]
      %v1330 = vld [vmem:[%s1328 + $0x4] sm:$0xf]
      %v1331 = vld [vmem:[%s1328 + $0x8] sm:$0xf]
      %v1332 = vld [vmem:[%s1328 + $0xc] sm:$0xf]
      %v1333 = vld [vmem:[%s1328 + $0x10] sm:$0xf]
      %v1334 = vld [vmem:[%s1328 + $0x14] sm:$0xf]
      %v1341 = vunpack.c.l.b16 %v1329
      %v1342 = vunpack.c.l.b16 %v1330
      %v1343 = vunpack.c.l.b16 %v1331
      %v1344 = vunpack.c.l.b16 %v1332
      %v1345 = vunpack.c.l.b16 %v1333
      %v1346 = vunpack.c.l.b16 %v1334
      %v1347 = vpack.c.b16 %v1342, %v1341
      %v1348 = vpack.c.b16 %v1344, %v1343
      %v1349 = vpack.c.b16 %v1346, %v1345
      %vm1353 = vcmask 392192
      %v1355 = vsel %vm1353, %v1157, 0
      %v1358 = vsel %vm1353, %v1167, 0
      %v1361 = vsel %vm1353, %v1177, 0
      %v1364 = vsel %vm1353, %v1187, 0
      %v1367 = vsel %vm1353, %v1197, 0
      %v1370 = vsel %vm1353, %v1207, 0
      %v1373 = vsel %vm1353, %v1217, 0
      %v1376 = vsel %vm1353, %v1227, 0
      %v1379 = vsel %vm1353, %v1237, 0
      %v1382 = vsel %vm1353, %v1247, 0
      %v1385 = vsel %vm1353, %v1257, 0
      %v1388 = vsel %vm1353, %v1267, 0
      %v1391 = vsel %vm1353, %v1277, 0
      %v1394 = vsel %vm1353, %v1287, 0
      %v1397 = vsel %vm1353, %v1297, 0
      %v1400 = vsel %vm1353, %v1307, 0
      %v1403 = vsel %vm1353, %v1317, 0
      %v1406 = vsel %vm1353, %v1327, 0
      %1408 = vmatprep.subr.bf16.mxu0 0
      %1409 = vmatpush1.bf16.msra.mxu0 0
      %1410 = vmatprep.subr.bf16.mxu0 0
      %1411 = vmatpush1.bf16.msra.mxu0 0
      %1412 = vmatprep.subr.bf16.mxu0 0
      %1413 = vmatpush1.bf16.msra.mxu0 0
      %1414 = vmatprep.subr.bf16.mxu0 0
      %1415 = vmatpush1.bf16.msra.mxu0 0
      %1416 = vmatprep.subr.bf16.mxu0 0
      %1417 = vmatpush1.bf16.msra.mxu0 0
      %1418 = vmatprep.subr.bf16.mxu0 0
      %1419 = vmatpush1.bf16.msra.mxu0 %v1349
      %1420 = vmatprep.subr.bf16.mxu0 0
      %1421 = vmatpush1.bf16.msra.mxu0 %v1348
      %1422 = vmatprep.subr.bf16.mxu0 0
      %1423 = vmatpush1.bf16.msra.mxu0 %v1347
      %1424 = vmatprep.subr.bf16.mxu0 0
      %1425 = vmatpush2.bf16.msra.mxu0 0
      %1426 = vmatprep.subr.bf16.mxu0 0
      %1427 = vmatpush2.bf16.msra.mxu0 0
      %1428 = vmatprep.subr.bf16.mxu0 0
      %1429 = vmatpush2.bf16.msra.mxu0 0
      %1430 = vmatprep.subr.bf16.mxu0 0
      %1431 = vmatpush2.bf16.msra.mxu0 0
      %1432 = vmatprep.subr.bf16.mxu0 0
      %1433 = vmatpush2.bf16.msra.mxu0 0
      %1434 = vmatprep.subr.bf16.mxu0 0
      %1435 = vmatpush2.bf16.msra.mxu0 0
      %1436 = vmatprep.subr.bf16.mxu0 0
      %1437 = vmatpush2.bf16.msra.mxu0 0
      %1438 = vmatprep.subr.bf16.mxu0 0
      %1439 = vmatpush2.bf16.msra.mxu0 0
      %1440 = vmatprep.mubr.bf16.mxu0 0
      %1441 = vmatmul.mubr.bf16.gmra.mxu0 %v1355
      %v1442 = vpop.f32.mrf.mxu0
      %v1443 = vadd.f32 0.0, %v1442
      %v1444 = vpop.f32.mrf.mxu0
      %v1445 = vpop.f32.mrf.mxu0
      %v1446 = vadd.f32 0.0, %v1445
      %v1447 = vpop.f32.mrf.mxu0
      %1448 = vmatprep.mubr.bf16.mxu0 0
      %1449 = vmatmul.mubr.bf16.gmra.mxu0 %v1358
      %v1450 = vpop.f32.mrf.mxu0
      %v1451 = vadd.f32 0.0, %v1450
      %v1452 = vpop.f32.mrf.mxu0
      %v1453 = vpop.f32.mrf.mxu0
      %v1454 = vadd.f32 0.0, %v1453
      %v1455 = vpop.f32.mrf.mxu0
      %1456 = vmatprep.mubr.bf16.mxu0 0
      %1457 = vmatmul.mubr.bf16.gmra.mxu0 %v1361
      %v1458 = vpop.f32.mrf.mxu0
      %v1459 = vadd.f32 0.0, %v1458
      %v1460 = vpop.f32.mrf.mxu0
      %v1461 = vpop.f32.mrf.mxu0
      %v1462 = vadd.f32 0.0, %v1461
      %v1463 = vpop.f32.mrf.mxu0
      %1464 = vmatprep.mubr.bf16.mxu0 0
      %1465 = vmatmul.mubr.bf16.gmra.mxu0 %v1364
      %v1466 = vpop.f32.mrf.mxu0
      %v1467 = vadd.f32 0.0, %v1466
      %v1468 = vpop.f32.mrf.mxu0
      %v1469 = vpop.f32.mrf.mxu0
      %v1470 = vadd.f32 0.0, %v1469
      %v1471 = vpop.f32.mrf.mxu0
      %1472 = vmatprep.mubr.bf16.mxu0 0
      %1473 = vmatmul.mubr.bf16.gmra.mxu0 %v1367
      %v1474 = vpop.f32.mrf.mxu0
      %v1475 = vadd.f32 0.0, %v1474
      %v1476 = vpop.f32.mrf.mxu0
      %v1477 = vpop.f32.mrf.mxu0
      %v1478 = vadd.f32 0.0, %v1477
      %v1479 = vpop.f32.mrf.mxu0
      %1480 = vmatprep.mubr.bf16.mxu0 0
      %1481 = vmatmul.mubr.bf16.gmra.mxu0 %v1370
      %v1482 = vpop.f32.mrf.mxu0
      %v1483 = vadd.f32 0.0, %v1482
      %v1484 = vpop.f32.mrf.mxu0
      %v1485 = vpop.f32.mrf.mxu0
      %v1486 = vadd.f32 0.0, %v1485
      %v1487 = vpop.f32.mrf.mxu0
      %1488 = vmatprep.mubr.bf16.mxu0 0
      %1489 = vmatmul.mubr.bf16.gmra.mxu0 %v1373
      %v1490 = vpop.f32.mrf.mxu0
      %v1491 = vadd.f32 0.0, %v1490
      %v1492 = vpop.f32.mrf.mxu0
      %v1493 = vpop.f32.mrf.mxu0
      %v1494 = vadd.f32 0.0, %v1493
      %v1495 = vpop.f32.mrf.mxu0
      %1496 = vmatprep.mubr.bf16.mxu0 0
      %1497 = vmatmul.mubr.bf16.gmra.mxu0 %v1376
      %v1498 = vpop.f32.mrf.mxu0
      %v1499 = vadd.f32 0.0, %v1498
      %v1500 = vpop.f32.mrf.mxu0
      %v1501 = vpop.f32.mrf.mxu0
      %v1502 = vadd.f32 0.0, %v1501
      %v1503 = vpop.f32.mrf.mxu0
      %1504 = vmatprep.mubr.bf16.mxu0 0
      %1505 = vmatmul.mubr.bf16.gmra.mxu0 %v1379
      %v1506 = vpop.f32.mrf.mxu0
      %v1507 = vadd.f32 0.0, %v1506
      %v1508 = vpop.f32.mrf.mxu0
      %v1509 = vpop.f32.mrf.mxu0
      %v1510 = vadd.f32 0.0, %v1509
      %v1511 = vpop.f32.mrf.mxu0
      %1512 = vmatprep.mubr.bf16.mxu0 0
      %1513 = vmatmul.mubr.bf16.gmra.mxu0 %v1382
      %v1514 = vpop.f32.mrf.mxu0
      %v1515 = vadd.f32 0.0, %v1514
      %v1516 = vpop.f32.mrf.mxu0
      %v1517 = vpop.f32.mrf.mxu0
      %v1518 = vadd.f32 0.0, %v1517
      %v1519 = vpop.f32.mrf.mxu0
      %1520 = vmatprep.mubr.bf16.mxu0 0
      %1521 = vmatmul.mubr.bf16.gmra.mxu0 %v1385
      %v1522 = vpop.f32.mrf.mxu0
      %v1523 = vadd.f32 0.0, %v1522
      %v1524 = vpop.f32.mrf.mxu0
      %v1525 = vpop.f32.mrf.mxu0
      %v1526 = vadd.f32 0.0, %v1525
      %v1527 = vpop.f32.mrf.mxu0
      %1528 = vmatprep.mubr.bf16.mxu0 0
      %1529 = vmatmul.mubr.bf16.gmra.mxu0 %v1388
      %v1530 = vpop.f32.mrf.mxu0
      %v1531 = vadd.f32 0.0, %v1530
      %v1532 = vpop.f32.mrf.mxu0
      %v1533 = vpop.f32.mrf.mxu0
      %v1534 = vadd.f32 0.0, %v1533
      %v1535 = vpop.f32.mrf.mxu0
      %1536 = vmatprep.mubr.bf16.mxu0 0
      %1537 = vmatmul.mubr.bf16.gmra.mxu0 %v1391
      %v1538 = vpop.f32.mrf.mxu0
      %v1539 = vadd.f32 0.0, %v1538
      %v1540 = vpop.f32.mrf.mxu0
      %v1541 = vpop.f32.mrf.mxu0
      %v1542 = vadd.f32 0.0, %v1541
      %v1543 = vpop.f32.mrf.mxu0
      %1544 = vmatprep.mubr.bf16.mxu0 0
      %1545 = vmatmul.mubr.bf16.gmra.mxu0 %v1394
      %v1546 = vpop.f32.mrf.mxu0
      %v1547 = vadd.f32 0.0, %v1546
      %v1548 = vpop.f32.mrf.mxu0
      %v1549 = vpop.f32.mrf.mxu0
      %v1550 = vadd.f32 0.0, %v1549
      %v1551 = vpop.f32.mrf.mxu0
      %1552 = vmatprep.mubr.bf16.mxu0 0
      %1553 = vmatmul.mubr.bf16.gmra.mxu0 %v1397
      %v1554 = vpop.f32.mrf.mxu0
      %v1555 = vadd.f32 0.0, %v1554
      %v1556 = vpop.f32.mrf.mxu0
      %v1557 = vpop.f32.mrf.mxu0
      %v1558 = vadd.f32 0.0, %v1557
      %v1559 = vpop.f32.mrf.mxu0
      %1560 = vmatprep.mubr.bf16.mxu0 0
      %1561 = vmatmul.mubr.bf16.gmra.mxu0 %v1400
      %v1562 = vpop.f32.mrf.mxu0
      %v1563 = vadd.f32 0.0, %v1562
      %v1564 = vpop.f32.mrf.mxu0
      %v1565 = vpop.f32.mrf.mxu0
      %v1566 = vadd.f32 0.0, %v1565
      %v1567 = vpop.f32.mrf.mxu0
      %1568 = vmatprep.mubr.bf16.mxu0 0
      %1569 = vmatmul.mubr.bf16.gmra.mxu0 %v1403
      %v1570 = vpop.f32.mrf.mxu0
      %v1571 = vadd.f32 0.0, %v1570
      %v1572 = vpop.f32.mrf.mxu0
      %v1573 = vpop.f32.mrf.mxu0
      %v1574 = vadd.f32 0.0, %v1573
      %v1575 = vpop.f32.mrf.mxu0
      %1576 = vmatprep.mubr.bf16.mxu0 0
      %1577 = vmatmul.mubr.bf16.gmra.mxu0 %v1406
      %v1578 = vpop.f32.mrf.mxu0
      %v1579 = vadd.f32 0.0, %v1578
      %v1580 = vpop.f32.mrf.mxu0
      %v1581 = vpop.f32.mrf.mxu0
      %v1582 = vadd.f32 0.0, %v1581
      %v1583 = vpop.f32.mrf.mxu0
      %1584 = vdwg.mxu0
      %v1591 = vunpack.c.l.b16 %v960
      %v1592 = vunpack.c.l.b16 %v961
      %v1593 = vunpack.c.l.b16 %v962
      %v1594 = vunpack.c.l.b16 %v963
      %v1595 = vunpack.c.l.b16 %v964
      %v1596 = vunpack.c.l.b16 %v965
      %v1597 = vpack.c.b16 %v1592, %v1591
      %v1598 = vpack.c.b16 %v1594, %v1593
      %v1599 = vpack.c.b16 %v1596, %v1595
      %v1603 = vsel %vm1353, %v925, 0
      %v1605 = vsel %vm1353, %v927, 0
      %v1607 = vsel %vm1353, %v929, 0
      %v1609 = vsel %vm1353, %v931, 0
      %v1611 = vsel %vm1353, %v933, 0
      %v1613 = vsel %vm1353, %v935, 0
      %v1615 = vsel %vm1353, %v937, 0
      %v1617 = vsel %vm1353, %v939, 0
      %v1619 = vsel %vm1353, %v941, 0
      %v1621 = vsel %vm1353, %v943, 0
      %v1623 = vsel %vm1353, %v945, 0
      %v1625 = vsel %vm1353, %v947, 0
      %v1627 = vsel %vm1353, %v949, 0
      %v1629 = vsel %vm1353, %v951, 0
      %v1631 = vsel %vm1353, %v953, 0
      %v1633 = vsel %vm1353, %v955, 0
      %v1635 = vsel %vm1353, %v957, 0
      %v1637 = vsel %vm1353, %v959, 0
      %1639 = vmatprep.subr.bf16.mxu0 0
      %1640 = vmatpush1.bf16.msra.mxu0 0
      %1641 = vmatprep.subr.bf16.mxu0 0
      %1642 = vmatpush1.bf16.msra.mxu0 0
      %1643 = vmatprep.subr.bf16.mxu0 0
      %1644 = vmatpush1.bf16.msra.mxu0 0
      %1645 = vmatprep.subr.bf16.mxu0 0
      %1646 = vmatpush1.bf16.msra.mxu0 0
      %1647 = vmatprep.subr.bf16.mxu0 0
      %1648 = vmatpush1.bf16.msra.mxu0 0
      %1649 = vmatprep.subr.bf16.mxu0 0
      %1650 = vmatpush1.bf16.msra.mxu0 %v1599
      %1651 = vmatprep.subr.bf16.mxu0 0
      %1652 = vmatpush1.bf16.msra.mxu0 %v1598
      %1653 = vmatprep.subr.bf16.mxu0 0
      %1654 = vmatpush1.bf16.msra.mxu0 %v1597
      %1655 = vmatprep.subr.bf16.mxu0 0
      %1656 = vmatpush2.bf16.msra.mxu0 0
      %1657 = vmatprep.subr.bf16.mxu0 0
      %1658 = vmatpush2.bf16.msra.mxu0 0
      %1659 = vmatprep.subr.bf16.mxu0 0
      %1660 = vmatpush2.bf16.msra.mxu0 0
      %1661 = vmatprep.subr.bf16.mxu0 0
      %1662 = vmatpush2.bf16.msra.mxu0 0
      %1663 = vmatprep.subr.bf16.mxu0 0
      %1664 = vmatpush2.bf16.msra.mxu0 0
      %1665 = vmatprep.subr.bf16.mxu0 0
      %1666 = vmatpush2.bf16.msra.mxu0 0
      %1667 = vmatprep.subr.bf16.mxu0 0
      %1668 = vmatpush2.bf16.msra.mxu0 0
      %1669 = vmatprep.subr.bf16.mxu0 0
      %1670 = vmatpush2.bf16.msra.mxu0 0
      %1671 = vmatprep.mubr.bf16.mxu0 0
      %1672 = vmatmul.mubr.bf16.gmra.mxu0 %v1603
      %v1673 = vpop.f32.mrf.mxu0
      %v1674 = vadd.f32 %v1443, %v1673
      %v1675 = vpop.f32.mrf.mxu0
      %v1676 = vpop.f32.mrf.mxu0
      %v1677 = vadd.f32 %v1446, %v1676
      %v1678 = vpop.f32.mrf.mxu0
      %1679 = vmatprep.mubr.bf16.mxu0 0
      %1680 = vmatmul.mubr.bf16.gmra.mxu0 %v1605
      %v1681 = vpop.f32.mrf.mxu0
      %v1682 = vadd.f32 %v1451, %v1681
      %v1683 = vpop.f32.mrf.mxu0
      %v1684 = vpop.f32.mrf.mxu0
      %v1685 = vadd.f32 %v1454, %v1684
      %v1686 = vpop.f32.mrf.mxu0
      %1687 = vmatprep.mubr.bf16.mxu0 0
      %1688 = vmatmul.mubr.bf16.gmra.mxu0 %v1607
      %v1689 = vpop.f32.mrf.mxu0
      %v1690 = vadd.f32 %v1459, %v1689
      %v1691 = vpop.f32.mrf.mxu0
      %v1692 = vpop.f32.mrf.mxu0
      %v1693 = vadd.f32 %v1462, %v1692
      %v1694 = vpop.f32.mrf.mxu0
      %1695 = vmatprep.mubr.bf16.mxu0 0
      %1696 = vmatmul.mubr.bf16.gmra.mxu0 %v1609
      %v1697 = vpop.f32.mrf.mxu0
      %v1698 = vadd.f32 %v1467, %v1697
      %v1699 = vpop.f32.mrf.mxu0
      %v1700 = vpop.f32.mrf.mxu0
      %v1701 = vadd.f32 %v1470, %v1700
      %v1702 = vpop.f32.mrf.mxu0
      %1703 = vmatprep.mubr.bf16.mxu0 0
      %1704 = vmatmul.mubr.bf16.gmra.mxu0 %v1611
      %v1705 = vpop.f32.mrf.mxu0
      %v1706 = vadd.f32 %v1475, %v1705
      %v1707 = vpop.f32.mrf.mxu0
      %v1708 = vpop.f32.mrf.mxu0
      %v1709 = vadd.f32 %v1478, %v1708
      %v1710 = vpop.f32.mrf.mxu0
      %1711 = vmatprep.mubr.bf16.mxu0 0
      %1712 = vmatmul.mubr.bf16.gmra.mxu0 %v1613
      %v1713 = vpop.f32.mrf.mxu0
      %v1714 = vadd.f32 %v1483, %v1713
      %v1715 = vpop.f32.mrf.mxu0
      %v1716 = vpop.f32.mrf.mxu0
      %v1717 = vadd.f32 %v1486, %v1716
      %v1718 = vpop.f32.mrf.mxu0
      %1719 = vmatprep.mubr.bf16.mxu0 0
      %1720 = vmatmul.mubr.bf16.gmra.mxu0 %v1615
      %v1721 = vpop.f32.mrf.mxu0
      %v1722 = vadd.f32 %v1491, %v1721
      %v1723 = vpop.f32.mrf.mxu0
      %v1724 = vpop.f32.mrf.mxu0
      %v1725 = vadd.f32 %v1494, %v1724
      %v1726 = vpop.f32.mrf.mxu0
      %1727 = vmatprep.mubr.bf16.mxu0 0
      %1728 = vmatmul.mubr.bf16.gmra.mxu0 %v1617
      %v1729 = vpop.f32.mrf.mxu0
      %v1730 = vadd.f32 %v1499, %v1729
      %v1731 = vpop.f32.mrf.mxu0
      %v1732 = vpop.f32.mrf.mxu0
      %v1733 = vadd.f32 %v1502, %v1732
      %v1734 = vpop.f32.mrf.mxu0
      %1735 = vmatprep.mubr.bf16.mxu0 0
      %1736 = vmatmul.mubr.bf16.gmra.mxu0 %v1619
      %v1737 = vpop.f32.mrf.mxu0
      %v1738 = vadd.f32 %v1507, %v1737
      %v1739 = vpop.f32.mrf.mxu0
      %v1740 = vpop.f32.mrf.mxu0
      %v1741 = vadd.f32 %v1510, %v1740
      %v1742 = vpop.f32.mrf.mxu0
      %1743 = vmatprep.mubr.bf16.mxu0 0
      %1744 = vmatmul.mubr.bf16.gmra.mxu0 %v1621
      %v1745 = vpop.f32.mrf.mxu0
      %v1746 = vadd.f32 %v1515, %v1745
      %v1747 = vpop.f32.mrf.mxu0
      %v1748 = vpop.f32.mrf.mxu0
      %v1749 = vadd.f32 %v1518, %v1748
      %v1750 = vpop.f32.mrf.mxu0
      %1751 = vmatprep.mubr.bf16.mxu0 0
      %1752 = vmatmul.mubr.bf16.gmra.mxu0 %v1623
      %v1753 = vpop.f32.mrf.mxu0
      %v1754 = vadd.f32 %v1523, %v1753
      %v1755 = vpop.f32.mrf.mxu0
      %v1756 = vpop.f32.mrf.mxu0
      %v1757 = vadd.f32 %v1526, %v1756
      %v1758 = vpop.f32.mrf.mxu0
      %1759 = vmatprep.mubr.bf16.mxu0 0
      %1760 = vmatmul.mubr.bf16.gmra.mxu0 %v1625
      %v1761 = vpop.f32.mrf.mxu0
      %v1762 = vadd.f32 %v1531, %v1761
      %v1763 = vpop.f32.mrf.mxu0
      %v1764 = vpop.f32.mrf.mxu0
      %v1765 = vadd.f32 %v1534, %v1764
      %v1766 = vpop.f32.mrf.mxu0
      %1767 = vmatprep.mubr.bf16.mxu0 0
      %1768 = vmatmul.mubr.bf16.gmra.mxu0 %v1627
      %v1769 = vpop.f32.mrf.mxu0
      %v1770 = vadd.f32 %v1539, %v1769
      %v1771 = vpop.f32.mrf.mxu0
      %v1772 = vpop.f32.mrf.mxu0
      %v1773 = vadd.f32 %v1542, %v1772
      %v1774 = vpop.f32.mrf.mxu0
      %1775 = vmatprep.mubr.bf16.mxu0 0
      %1776 = vmatmul.mubr.bf16.gmra.mxu0 %v1629
      %v1777 = vpop.f32.mrf.mxu0
      %v1778 = vadd.f32 %v1547, %v1777
      %v1779 = vpop.f32.mrf.mxu0
      %v1780 = vpop.f32.mrf.mxu0
      %v1781 = vadd.f32 %v1550, %v1780
      %v1782 = vpop.f32.mrf.mxu0
      %1783 = vmatprep.mubr.bf16.mxu0 0
      %1784 = vmatmul.mubr.bf16.gmra.mxu0 %v1631
      %v1785 = vpop.f32.mrf.mxu0
      %v1786 = vadd.f32 %v1555, %v1785
      %v1787 = vpop.f32.mrf.mxu0
      %v1788 = vpop.f32.mrf.mxu0
      %v1789 = vadd.f32 %v1558, %v1788
      %v1790 = vpop.f32.mrf.mxu0
      %1791 = vmatprep.mubr.bf16.mxu0 0
      %1792 = vmatmul.mubr.bf16.gmra.mxu0 %v1633
      %v1793 = vpop.f32.mrf.mxu0
      %v1794 = vadd.f32 %v1563, %v1793
      %v1795 = vpop.f32.mrf.mxu0
      %v1796 = vpop.f32.mrf.mxu0
      %v1797 = vadd.f32 %v1566, %v1796
      %v1798 = vpop.f32.mrf.mxu0
      %1799 = vmatprep.mubr.bf16.mxu0 0
      %1800 = vmatmul.mubr.bf16.gmra.mxu0 %v1635
      %v1801 = vpop.f32.mrf.mxu0
      %v1802 = vadd.f32 %v1571, %v1801
      %v1803 = vpop.f32.mrf.mxu0
      %v1804 = vpop.f32.mrf.mxu0
      %v1805 = vadd.f32 %v1574, %v1804
      %v1806 = vpop.f32.mrf.mxu0
      %1807 = vmatprep.mubr.bf16.mxu0 0
      %1808 = vmatmul.mubr.bf16.gmra.mxu0 %v1637
      %v1809 = vpop.f32.mrf.mxu0
      %v1810 = vadd.f32 %v1579, %v1809
      %v1811 = vpop.f32.mrf.mxu0
      %v1812 = vpop.f32.mrf.mxu0
      %v1813 = vadd.f32 %v1582, %v1812
      %v1814 = vpop.f32.mrf.mxu0
      %1815 = vdwg.mxu0
      %vm1852 = vcmask 1046528
      %v1853 = vrot.slane %v925, 1
      %v1854 = vrot.slane %v1112, 1
      %v1855 = vsel %vm1852, %v1853, %v1854
      %v1856 = vrot.slane %v927, 1
      %v1857 = vrot.slane %v1114, 1
      %v1858 = vsel %vm1852, %v1856, %v1857
      %v1859 = vrot.slane %v929, 1
      %v1860 = vrot.slane %v1116, 1
      %v1861 = vsel %vm1852, %v1859, %v1860
      %v1862 = vrot.slane %v931, 1
      %v1863 = vrot.slane %v1118, 1
      %v1864 = vsel %vm1852, %v1862, %v1863
      %v1865 = vrot.slane %v933, 1
      %v1866 = vrot.slane %v1120, 1
      %v1867 = vsel %vm1852, %v1865, %v1866
      %v1868 = vrot.slane %v935, 1
      %v1869 = vrot.slane %v1122, 1
      %v1870 = vsel %vm1852, %v1868, %v1869
      %v1871 = vrot.slane %v937, 1
      %v1872 = vrot.slane %v1124, 1
      %v1873 = vsel %vm1852, %v1871, %v1872
      %v1874 = vrot.slane %v939, 1
      %v1875 = vrot.slane %v1126, 1
      %v1876 = vsel %vm1852, %v1874, %v1875
      %v1877 = vrot.slane %v941, 1
      %v1878 = vrot.slane %v1128, 1
      %v1879 = vsel %vm1852, %v1877, %v1878
      %v1880 = vrot.slane %v943, 1
      %v1881 = vrot.slane %v1130, 1
      %v1882 = vsel %vm1852, %v1880, %v1881
      %v1883 = vrot.slane %v945, 1
      %v1884 = vrot.slane %v1132, 1
      %v1885 = vsel %vm1852, %v1883, %v1884
      %v1886 = vrot.slane %v947, 1
      %v1887 = vrot.slane %v1134, 1
      %v1888 = vsel %vm1852, %v1886, %v1887
      %v1889 = vrot.slane %v949, 1
      %v1890 = vrot.slane %v1136, 1
      %v1891 = vsel %vm1852, %v1889, %v1890
      %v1892 = vrot.slane %v951, 1
      %v1893 = vrot.slane %v1138, 1
      %v1894 = vsel %vm1852, %v1892, %v1893
      %v1895 = vrot.slane %v953, 1
      %v1896 = vrot.slane %v1140, 1
      %v1897 = vsel %vm1852, %v1895, %v1896
      %v1898 = vrot.slane %v955, 1
      %v1899 = vrot.slane %v1142, 1
      %v1900 = vsel %vm1852, %v1898, %v1899
      %v1901 = vrot.slane %v957, 1
      %v1902 = vrot.slane %v1144, 1
      %v1903 = vsel %vm1852, %v1901, %v1902
      %v1904 = vrot.slane %v959, 1
      %v1905 = vrot.slane %v1146, 1
      %v1906 = vsel %vm1852, %v1904, %v1905
      %s1907 = scalar_lea.vmem %s1, 48
      %v1908 = vld [vmem:[%s1907] sm:$0xf]
      %v1909 = vld [vmem:[%s1907 + $0x4] sm:$0xf]
      %v1910 = vld [vmem:[%s1907 + $0x8] sm:$0xf]
      %v1911 = vld [vmem:[%s1907 + $0xc] sm:$0xf]
      %v1912 = vld [vmem:[%s1907 + $0x10] sm:$0xf]
      %v1913 = vld [vmem:[%s1907 + $0x14] sm:$0xf]
      %v1920 = vunpack.c.l.b16 %v1908
      %v1921 = vunpack.c.l.b16 %v1909
      %v1922 = vunpack.c.l.b16 %v1910
      %v1923 = vunpack.c.l.b16 %v1911
      %v1924 = vunpack.c.l.b16 %v1912
      %v1925 = vunpack.c.l.b16 %v1913
      %v1926 = vpack.c.b16 %v1921, %v1920
      %v1927 = vpack.c.b16 %v1923, %v1922
      %v1928 = vpack.c.b16 %v1925, %v1924
      %v1933 = vsel %vm1353, %v1855, 0
      %v1936 = vsel %vm1353, %v1858, 0
      %v1939 = vsel %vm1353, %v1861, 0
      %v1942 = vsel %vm1353, %v1864, 0
      %v1945 = vsel %vm1353, %v1867, 0
      %v1948 = vsel %vm1353, %v1870, 0
      %v1951 = vsel %vm1353, %v1873, 0
      %v1954 = vsel %vm1353, %v1876, 0
      %v1957 = vsel %vm1353, %v1879, 0
      %v1960 = vsel %vm1353, %v1882, 0
      %v1963 = vsel %vm1353, %v1885, 0
      %v1966 = vsel %vm1353, %v1888, 0
      %v1969 = vsel %vm1353, %v1891, 0
      %v1972 = vsel %vm1353, %v1894, 0
      %v1975 = vsel %vm1353, %v1897, 0
      %v1978 = vsel %vm1353, %v1900, 0
      %v1981 = vsel %vm1353, %v1903, 0
      %v1984 = vsel %vm1353, %v1906, 0
      %1986 = vmatprep.subr.bf16.mxu0 0
      %1987 = vmatpush1.bf16.msra.mxu0 0
      %1988 = vmatprep.subr.bf16.mxu0 0
      %1989 = vmatpush1.bf16.msra.mxu0 0
      %1990 = vmatprep.subr.bf16.mxu0 0
      %1991 = vmatpush1.bf16.msra.mxu0 0
      %1992 = vmatprep.subr.bf16.mxu0 0
      %1993 = vmatpush1.bf16.msra.mxu0 0
      %1994 = vmatprep.subr.bf16.mxu0 0
      %1995 = vmatpush1.bf16.msra.mxu0 0
      %1996 = vmatprep.subr.bf16.mxu0 0
      %1997 = vmatpush1.bf16.msra.mxu0 %v1928
      %1998 = vmatprep.subr.bf16.mxu0 0
      %1999 = vmatpush1.bf16.msra.mxu0 %v1927
      %2000 = vmatprep.subr.bf16.mxu0 0
      %2001 = vmatpush1.bf16.msra.mxu0 %v1926
      %2002 = vmatprep.subr.bf16.mxu0 0
      %2003 = vmatpush2.bf16.msra.mxu0 0
      %2004 = vmatprep.subr.bf16.mxu0 0
      %2005 = vmatpush2.bf16.msra.mxu0 0
      %2006 = vmatprep.subr.bf16.mxu0 0
      %2007 = vmatpush2.bf16.msra.mxu0 0
      %2008 = vmatprep.subr.bf16.mxu0 0
      %2009 = vmatpush2.bf16.msra.mxu0 0
      %2010 = vmatprep.subr.bf16.mxu0 0
      %2011 = vmatpush2.bf16.msra.mxu0 0
      %2012 = vmatprep.subr.bf16.mxu0 0
      %2013 = vmatpush2.bf16.msra.mxu0 0
      %2014 = vmatprep.subr.bf16.mxu0 0
      %2015 = vmatpush2.bf16.msra.mxu0 0
      %2016 = vmatprep.subr.bf16.mxu0 0
      %2017 = vmatpush2.bf16.msra.mxu0 0
      %2018 = vmatprep.mubr.bf16.mxu0 0
      %2019 = vmatmul.mubr.bf16.gmra.mxu0 %v1933
      %v2020 = vpop.f32.mrf.mxu0
      %v2021 = vadd.f32 0.0, %v2020
      %v2022 = vpop.f32.mrf.mxu0
      %v2023 = vpop.f32.mrf.mxu0
      %v2024 = vadd.f32 0.0, %v2023
      %v2025 = vpop.f32.mrf.mxu0
      %2026 = vmatprep.mubr.bf16.mxu0 0
      %2027 = vmatmul.mubr.bf16.gmra.mxu0 %v1936
      %v2028 = vpop.f32.mrf.mxu0
      %v2029 = vadd.f32 0.0, %v2028
      %v2030 = vpop.f32.mrf.mxu0
      %v2031 = vpop.f32.mrf.mxu0
      %v2032 = vadd.f32 0.0, %v2031
      %v2033 = vpop.f32.mrf.mxu0
      %2034 = vmatprep.mubr.bf16.mxu0 0
      %2035 = vmatmul.mubr.bf16.gmra.mxu0 %v1939
      %v2036 = vpop.f32.mrf.mxu0
      %v2037 = vadd.f32 0.0, %v2036
      %v2038 = vpop.f32.mrf.mxu0
      %v2039 = vpop.f32.mrf.mxu0
      %v2040 = vadd.f32 0.0, %v2039
      %v2041 = vpop.f32.mrf.mxu0
      %2042 = vmatprep.mubr.bf16.mxu0 0
      %2043 = vmatmul.mubr.bf16.gmra.mxu0 %v1942
      %v2044 = vpop.f32.mrf.mxu0
      %v2045 = vadd.f32 0.0, %v2044
      %v2046 = vpop.f32.mrf.mxu0
      %v2047 = vpop.f32.mrf.mxu0
      %v2048 = vadd.f32 0.0, %v2047
      %v2049 = vpop.f32.mrf.mxu0
      %2050 = vmatprep.mubr.bf16.mxu0 0
      %2051 = vmatmul.mubr.bf16.gmra.mxu0 %v1945
      %v2052 = vpop.f32.mrf.mxu0
      %v2053 = vadd.f32 0.0, %v2052
      %v2054 = vpop.f32.mrf.mxu0
      %v2055 = vpop.f32.mrf.mxu0
      %v2056 = vadd.f32 0.0, %v2055
      %v2057 = vpop.f32.mrf.mxu0
      %2058 = vmatprep.mubr.bf16.mxu0 0
      %2059 = vmatmul.mubr.bf16.gmra.mxu0 %v1948
      %v2060 = vpop.f32.mrf.mxu0
      %v2061 = vadd.f32 0.0, %v2060
      %v2062 = vpop.f32.mrf.mxu0
      %v2063 = vpop.f32.mrf.mxu0
      %v2064 = vadd.f32 0.0, %v2063
      %v2065 = vpop.f32.mrf.mxu0
      %2066 = vmatprep.mubr.bf16.mxu0 0
      %2067 = vmatmul.mubr.bf16.gmra.mxu0 %v1951
      %v2068 = vpop.f32.mrf.mxu0
      %v2069 = vadd.f32 0.0, %v2068
      %v2070 = vpop.f32.mrf.mxu0
      %v2071 = vpop.f32.mrf.mxu0
      %v2072 = vadd.f32 0.0, %v2071
      %v2073 = vpop.f32.mrf.mxu0
      %2074 = vmatprep.mubr.bf16.mxu0 0
      %2075 = vmatmul.mubr.bf16.gmra.mxu0 %v1954
      %v2076 = vpop.f32.mrf.mxu0
      %v2077 = vadd.f32 0.0, %v2076
      %v2078 = vpop.f32.mrf.mxu0
      %v2079 = vpop.f32.mrf.mxu0
      %v2080 = vadd.f32 0.0, %v2079
      %v2081 = vpop.f32.mrf.mxu0
      %2082 = vmatprep.mubr.bf16.mxu0 0
      %2083 = vmatmul.mubr.bf16.gmra.mxu0 %v1957
      %v2084 = vpop.f32.mrf.mxu0
      %v2085 = vadd.f32 0.0, %v2084
      %v2086 = vpop.f32.mrf.mxu0
      %v2087 = vpop.f32.mrf.mxu0
      %v2088 = vadd.f32 0.0, %v2087
      %v2089 = vpop.f32.mrf.mxu0
      %2090 = vmatprep.mubr.bf16.mxu0 0
      %2091 = vmatmul.mubr.bf16.gmra.mxu0 %v1960
      %v2092 = vpop.f32.mrf.mxu0
      %v2093 = vadd.f32 0.0, %v2092
      %v2094 = vpop.f32.mrf.mxu0
      %v2095 = vpop.f32.mrf.mxu0
      %v2096 = vadd.f32 0.0, %v2095
      %v2097 = vpop.f32.mrf.mxu0
      %2098 = vmatprep.mubr.bf16.mxu0 0
      %2099 = vmatmul.mubr.bf16.gmra.mxu0 %v1963
      %v2100 = vpop.f32.mrf.mxu0
      %v2101 = vadd.f32 0.0, %v2100
      %v2102 = vpop.f32.mrf.mxu0
      %v2103 = vpop.f32.mrf.mxu0
      %v2104 = vadd.f32 0.0, %v2103
      %v2105 = vpop.f32.mrf.mxu0
      %2106 = vmatprep.mubr.bf16.mxu0 0
      %2107 = vmatmul.mubr.bf16.gmra.mxu0 %v1966
      %v2108 = vpop.f32.mrf.mxu0
      %v2109 = vadd.f32 0.0, %v2108
      %v2110 = vpop.f32.mrf.mxu0
      %v2111 = vpop.f32.mrf.mxu0
      %v2112 = vadd.f32 0.0, %v2111
      %v2113 = vpop.f32.mrf.mxu0
      %2114 = vmatprep.mubr.bf16.mxu0 0
      %2115 = vmatmul.mubr.bf16.gmra.mxu0 %v1969
      %v2116 = vpop.f32.mrf.mxu0
      %v2117 = vadd.f32 0.0, %v2116
      %v2118 = vpop.f32.mrf.mxu0
      %v2119 = vpop.f32.mrf.mxu0
      %v2120 = vadd.f32 0.0, %v2119
      %v2121 = vpop.f32.mrf.mxu0
      %2122 = vmatprep.mubr.bf16.mxu0 0
      %2123 = vmatmul.mubr.bf16.gmra.mxu0 %v1972
      %v2124 = vpop.f32.mrf.mxu0
      %v2125 = vadd.f32 0.0, %v2124
      %v2126 = vpop.f32.mrf.mxu0
      %v2127 = vpop.f32.mrf.mxu0
      %v2128 = vadd.f32 0.0, %v2127
      %v2129 = vpop.f32.mrf.mxu0
      %2130 = vmatprep.mubr.bf16.mxu0 0
      %2131 = vmatmul.mubr.bf16.gmra.mxu0 %v1975
      %v2132 = vpop.f32.mrf.mxu0
      %v2133 = vadd.f32 0.0, %v2132
      %v2134 = vpop.f32.mrf.mxu0
      %v2135 = vpop.f32.mrf.mxu0
      %v2136 = vadd.f32 0.0, %v2135
      %v2137 = vpop.f32.mrf.mxu0
      %2138 = vmatprep.mubr.bf16.mxu0 0
      %2139 = vmatmul.mubr.bf16.gmra.mxu0 %v1978
      %v2140 = vpop.f32.mrf.mxu0
      %v2141 = vadd.f32 0.0, %v2140
      %v2142 = vpop.f32.mrf.mxu0
      %v2143 = vpop.f32.mrf.mxu0
      %v2144 = vadd.f32 0.0, %v2143
      %v2145 = vpop.f32.mrf.mxu0
      %2146 = vmatprep.mubr.bf16.mxu0 0
      %2147 = vmatmul.mubr.bf16.gmra.mxu0 %v1981
      %v2148 = vpop.f32.mrf.mxu0
      %v2149 = vadd.f32 0.0, %v2148
      %v2150 = vpop.f32.mrf.mxu0
      %v2151 = vpop.f32.mrf.mxu0
      %v2152 = vadd.f32 0.0, %v2151
      %v2153 = vpop.f32.mrf.mxu0
      %2154 = vmatprep.mubr.bf16.mxu0 0
      %2155 = vmatmul.mubr.bf16.gmra.mxu0 %v1984
      %v2156 = vpop.f32.mrf.mxu0
      %v2157 = vadd.f32 0.0, %v2156
      %v2158 = vpop.f32.mrf.mxu0
      %v2159 = vpop.f32.mrf.mxu0
      %v2160 = vadd.f32 0.0, %v2159
      %v2161 = vpop.f32.mrf.mxu0
      %2162 = vdwg.mxu0
      %v2163 = vadd.f32 %v1674, %v2021
      %v2164 = vadd.f32 %v1677, %v2024
      %v2165 = vadd.f32 %v1682, %v2029
      %v2166 = vadd.f32 %v1685, %v2032
      %v2167 = vadd.f32 %v1690, %v2037
      %v2168 = vadd.f32 %v1693, %v2040
      %v2169 = vadd.f32 %v1698, %v2045
      %v2170 = vadd.f32 %v1701, %v2048
      %v2171 = vadd.f32 %v1706, %v2053
      %v2172 = vadd.f32 %v1709, %v2056
      %v2173 = vadd.f32 %v1714, %v2061
      %v2174 = vadd.f32 %v1717, %v2064
      %v2175 = vadd.f32 %v1722, %v2069
      %v2176 = vadd.f32 %v1725, %v2072
      %v2177 = vadd.f32 %v1730, %v2077
      %v2178 = vadd.f32 %v1733, %v2080
      %v2179 = vadd.f32 %v1738, %v2085
      %v2180 = vadd.f32 %v1741, %v2088
      %v2181 = vadd.f32 %v1746, %v2093
      %v2182 = vadd.f32 %v1749, %v2096
      %v2183 = vadd.f32 %v1754, %v2101
      %v2184 = vadd.f32 %v1757, %v2104
      %v2185 = vadd.f32 %v1762, %v2109
      %v2186 = vadd.f32 %v1765, %v2112
      %v2187 = vadd.f32 %v1770, %v2117
      %v2188 = vadd.f32 %v1773, %v2120
      %v2189 = vadd.f32 %v1778, %v2125
      %v2190 = vadd.f32 %v1781, %v2128
      %v2191 = vadd.f32 %v1786, %v2133
      %v2192 = vadd.f32 %v1789, %v2136
      %v2193 = vadd.f32 %v1794, %v2141
      %v2194 = vadd.f32 %v1797, %v2144
      %v2195 = vadd.f32 %v1802, %v2149
      %v2196 = vadd.f32 %v1805, %v2152
      %v2197 = vadd.f32 %v1810, %v2157
      %v2198 = vadd.f32 %v1813, %v2160
      %v2199 = vld [vmem:[%s2] sm:$0x1]
      %v2200 = vld [vmem:[%s3] sm:$0x1]
      %v2202 = vlaneseq
      %v2203 = vshrl.u32 %v2202, 7
      %v2204 = vsub.s32 0, %v2203
      %v2205 = vrot.slane %v2199, %v2204
      %v2207 = vmul.f32 %v2163, %v2205
      %v2208 = vmul.f32 %v2164, %v2205
      %v2209 = vmul.f32 %v2165, %v2205
      %v2210 = vmul.f32 %v2166, %v2205
      %v2211 = vmul.f32 %v2167, %v2205
      %v2212 = vmul.f32 %v2168, %v2205
      %v2213 = vmul.f32 %v2169, %v2205
      %v2214 = vmul.f32 %v2170, %v2205
      %v2215 = vmul.f32 %v2171, %v2205
      %v2216 = vmul.f32 %v2172, %v2205
      %v2217 = vmul.f32 %v2173, %v2205
      %v2218 = vmul.f32 %v2174, %v2205
      %v2219 = vmul.f32 %v2175, %v2205
      %v2220 = vmul.f32 %v2176, %v2205
      %v2221 = vmul.f32 %v2177, %v2205
      %v2222 = vmul.f32 %v2178, %v2205
      %v2223 = vmul.f32 %v2179, %v2205
      %v2224 = vmul.f32 %v2180, %v2205
      %v2225 = vmul.f32 %v2181, %v2205
      %v2226 = vmul.f32 %v2182, %v2205
      %v2227 = vmul.f32 %v2183, %v2205
      %v2228 = vmul.f32 %v2184, %v2205
      %v2229 = vmul.f32 %v2185, %v2205
      %v2230 = vmul.f32 %v2186, %v2205
      %v2231 = vmul.f32 %v2187, %v2205
      %v2232 = vmul.f32 %v2188, %v2205
      %v2233 = vmul.f32 %v2189, %v2205
      %v2234 = vmul.f32 %v2190, %v2205
      %v2235 = vmul.f32 %v2191, %v2205
      %v2236 = vmul.f32 %v2192, %v2205
      %v2237 = vmul.f32 %v2193, %v2205
      %v2238 = vmul.f32 %v2194, %v2205
      %v2239 = vmul.f32 %v2195, %v2205
      %v2240 = vmul.f32 %v2196, %v2205
      %v2241 = vmul.f32 %v2197, %v2205
      %v2242 = vmul.f32 %v2198, %v2205
      %v2244 = vlaneseq
      %v2245 = vshrl.u32 %v2244, 7
      %v2246 = vsub.s32 0, %v2245
      %v2247 = vrot.slane %v2200, %v2246
      %v2249 = vadd.f32 %v2247, %v364
      %v2250 = vadd.f32 %v2247, %v365
      %v2251 = vadd.f32 %v2247, %v317
      %v2252 = vadd.f32 %v2247, %v318
      %v2253 = vadd.f32 %v2247, %v319
      %v2254 = vadd.f32 %v2247, %v320
      %v2255 = vadd.f32 %v2247, %v321
      %v2256 = vadd.f32 %v2247, %v322
      %v2257 = vadd.f32 %v2247, %v323
      %v2258 = vadd.f32 %v2247, %v324
      %v2259 = vadd.f32 %v2247, %v325
      %v2260 = vadd.f32 %v2247, %v326
      %v2261 = vadd.f32 %v2247, %v327
      %v2262 = vadd.f32 %v2247, %v328
      %v2263 = vadd.f32 %v2247, %v329
      %v2264 = vadd.f32 %v2247, %v330
      %v2265 = vadd.f32 %v2247, %v331
      %v2266 = vadd.f32 %v2247, %v332
      %v2267 = vadd.f32 %v2247, %v333
      %v2268 = vadd.f32 %v2247, %v334
      %v2269 = vadd.f32 %v2247, %v335
      %v2270 = vadd.f32 %v2247, %v336
      %v2271 = vadd.f32 %v2247, %v337
      %v2272 = vadd.f32 %v2247, %v338
      %v2273 = vadd.f32 %v2247, %v339
      %v2274 = vadd.f32 %v2247, %v340
      %v2275 = vadd.f32 %v2247, %v341
      %v2276 = vadd.f32 %v2247, %v342
      %v2277 = vadd.f32 %v2247, %v343
      %v2278 = vadd.f32 %v2247, %v344
      %v2279 = vadd.f32 %v2247, %v345
      %v2280 = vadd.f32 %v2247, %v346
      %v2281 = vadd.f32 %v2247, %v347
      %v2282 = vadd.f32 %v2247, %v348
      %v2283 = vadd.f32 %v2247, %v370
      %v2284 = vadd.f32 %v2247, %v371
      %v2285 = vadd.f32 %v2207, %v2249
      %v2286 = vadd.f32 %v2208, %v2250
      %v2287 = vadd.f32 %v2209, %v2251
      %v2288 = vadd.f32 %v2210, %v2252
      %v2289 = vadd.f32 %v2211, %v2253
      %v2290 = vadd.f32 %v2212, %v2254
      %v2291 = vadd.f32 %v2213, %v2255
      %v2292 = vadd.f32 %v2214, %v2256
      %v2293 = vadd.f32 %v2215, %v2257
      %v2294 = vadd.f32 %v2216, %v2258
      %v2295 = vadd.f32 %v2217, %v2259
      %v2296 = vadd.f32 %v2218, %v2260
      %v2297 = vadd.f32 %v2219, %v2261
      %v2298 = vadd.f32 %v2220, %v2262
      %v2299 = vadd.f32 %v2221, %v2263
      %v2300 = vadd.f32 %v2222, %v2264
      %v2301 = vadd.f32 %v2223, %v2265
      %v2302 = vadd.f32 %v2224, %v2266
      %v2303 = vadd.f32 %v2225, %v2267
      %v2304 = vadd.f32 %v2226, %v2268
      %v2305 = vadd.f32 %v2227, %v2269
      %v2306 = vadd.f32 %v2228, %v2270
      %v2307 = vadd.f32 %v2229, %v2271
      %v2308 = vadd.f32 %v2230, %v2272
      %v2309 = vadd.f32 %v2231, %v2273
      %v2310 = vadd.f32 %v2232, %v2274
      %v2311 = vadd.f32 %v2233, %v2275
      %v2312 = vadd.f32 %v2234, %v2276
      %v2313 = vadd.f32 %v2235, %v2277
      %v2314 = vadd.f32 %v2236, %v2278
      %v2315 = vadd.f32 %v2237, %v2279
      %v2316 = vadd.f32 %v2238, %v2280
      %v2317 = vadd.f32 %v2239, %v2281
      %v2318 = vadd.f32 %v2240, %v2282
      %v2319 = vadd.f32 %v2241, %v2283
      %v2320 = vadd.f32 %v2242, %v2284
      %vm2321 = vcmp.gt.f32.partialorder %v2285, 0.0
      %vm2322 = vcmp.gt.f32.partialorder %v2286, 0.0
      %vm2323 = vcmp.gt.f32.partialorder %v2287, 0.0
      %vm2324 = vcmp.gt.f32.partialorder %v2288, 0.0
      %vm2325 = vcmp.gt.f32.partialorder %v2289, 0.0
      %vm2326 = vcmp.gt.f32.partialorder %v2290, 0.0
      %vm2327 = vcmp.gt.f32.partialorder %v2291, 0.0
      %vm2328 = vcmp.gt.f32.partialorder %v2292, 0.0
      %vm2329 = vcmp.gt.f32.partialorder %v2293, 0.0
      %vm2330 = vcmp.gt.f32.partialorder %v2294, 0.0
      %vm2331 = vcmp.gt.f32.partialorder %v2295, 0.0
      %vm2332 = vcmp.gt.f32.partialorder %v2296, 0.0
      %vm2333 = vcmp.gt.f32.partialorder %v2297, 0.0
      %vm2334 = vcmp.gt.f32.partialorder %v2298, 0.0
      %vm2335 = vcmp.gt.f32.partialorder %v2299, 0.0
      %vm2336 = vcmp.gt.f32.partialorder %v2300, 0.0
      %vm2337 = vcmp.gt.f32.partialorder %v2301, 0.0
      %vm2338 = vcmp.gt.f32.partialorder %v2302, 0.0
      %vm2339 = vcmp.gt.f32.partialorder %v2303, 0.0
      %vm2340 = vcmp.gt.f32.partialorder %v2304, 0.0
      %vm2341 = vcmp.gt.f32.partialorder %v2305, 0.0
      %vm2342 = vcmp.gt.f32.partialorder %v2306, 0.0
      %vm2343 = vcmp.gt.f32.partialorder %v2307, 0.0
      %vm2344 = vcmp.gt.f32.partialorder %v2308, 0.0
      %vm2345 = vcmp.gt.f32.partialorder %v2309, 0.0
      %vm2346 = vcmp.gt.f32.partialorder %v2310, 0.0
      %vm2347 = vcmp.gt.f32.partialorder %v2311, 0.0
      %vm2348 = vcmp.gt.f32.partialorder %v2312, 0.0
      %vm2349 = vcmp.gt.f32.partialorder %v2313, 0.0
      %vm2350 = vcmp.gt.f32.partialorder %v2314, 0.0
      %vm2351 = vcmp.gt.f32.partialorder %v2315, 0.0
      %vm2352 = vcmp.gt.f32.partialorder %v2316, 0.0
      %vm2353 = vcmp.gt.f32.partialorder %v2317, 0.0
      %vm2354 = vcmp.gt.f32.partialorder %v2318, 0.0
      %vm2355 = vcmp.gt.f32.partialorder %v2319, 0.0
      %vm2356 = vcmp.gt.f32.partialorder %v2320, 0.0
      %vm2357 = vcmp.lt.f32.partialorder %v2285, 0.0
      %vm2358 = vcmp.lt.f32.partialorder %v2286, 0.0
      %vm2359 = vcmp.lt.f32.partialorder %v2287, 0.0
      %vm2360 = vcmp.lt.f32.partialorder %v2288, 0.0
      %vm2361 = vcmp.lt.f32.partialorder %v2289, 0.0
      %vm2362 = vcmp.lt.f32.partialorder %v2290, 0.0
      %vm2363 = vcmp.lt.f32.partialorder %v2291, 0.0
      %vm2364 = vcmp.lt.f32.partialorder %v2292, 0.0
      %vm2365 = vcmp.lt.f32.partialorder %v2293, 0.0
      %vm2366 = vcmp.lt.f32.partialorder %v2294, 0.0
      %vm2367 = vcmp.lt.f32.partialorder %v2295, 0.0
      %vm2368 = vcmp.lt.f32.partialorder %v2296, 0.0
      %vm2369 = vcmp.lt.f32.partialorder %v2297, 0.0
      %vm2370 = vcmp.lt.f32.partialorder %v2298, 0.0
      %vm2371 = vcmp.lt.f32.partialorder %v2299, 0.0
      %vm2372 = vcmp.lt.f32.partialorder %v2300, 0.0
      %vm2373 = vcmp.lt.f32.partialorder %v2301, 0.0
      %vm2374 = vcmp.lt.f32.partialorder %v2302, 0.0
      %vm2375 = vcmp.lt.f32.partialorder %v2303, 0.0
      %vm2376 = vcmp.lt.f32.partialorder %v2304, 0.0
      %vm2377 = vcmp.lt.f32.partialorder %v2305, 0.0
      %vm2378 = vcmp.lt.f32.partialorder %v2306, 0.0
      %vm2379 = vcmp.lt.f32.partialorder %v2307, 0.0
      %vm2380 = vcmp.lt.f32.partialorder %v2308, 0.0
      %vm2381 = vcmp.lt.f32.partialorder %v2309, 0.0
      %vm2382 = vcmp.lt.f32.partialorder %v2310, 0.0
      %vm2383 = vcmp.lt.f32.partialorder %v2311, 0.0
      %vm2384 = vcmp.lt.f32.partialorder %v2312, 0.0
      %vm2385 = vcmp.lt.f32.partialorder %v2313, 0.0
      %vm2386 = vcmp.lt.f32.partialorder %v2314, 0.0
      %vm2387 = vcmp.lt.f32.partialorder %v2315, 0.0
      %vm2388 = vcmp.lt.f32.partialorder %v2316, 0.0
      %vm2389 = vcmp.lt.f32.partialorder %v2317, 0.0
      %vm2390 = vcmp.lt.f32.partialorder %v2318, 0.0
      %vm2391 = vcmp.lt.f32.partialorder %v2319, 0.0
      %vm2392 = vcmp.lt.f32.partialorder %v2320, 0.0
      %v2393 = vsel %vm2357, -1.0, 0.0
      %v2394 = vsel %vm2358, -1.0, 0.0
      %v2395 = vsel %vm2359, -1.0, 0.0
      %v2396 = vsel %vm2360, -1.0, 0.0
      %v2397 = vsel %vm2361, -1.0, 0.0
      %v2398 = vsel %vm2362, -1.0, 0.0
      %v2399 = vsel %vm2363, -1.0, 0.0
      %v2400 = vsel %vm2364, -1.0, 0.0
      %v2401 = vsel %vm2365, -1.0, 0.0
      %v2402 = vsel %vm2366, -1.0, 0.0
      %v2403 = vsel %vm2367, -1.0, 0.0
      %v2404 = vsel %vm2368, -1.0, 0.0
      %v2405 = vsel %vm2369, -1.0, 0.0
      %v2406 = vsel %vm2370, -1.0, 0.0
      %v2407 = vsel %vm2371, -1.0, 0.0
      %v2408 = vsel %vm2372, -1.0, 0.0
      %v2409 = vsel %vm2373, -1.0, 0.0
      %v2410 = vsel %vm2374, -1.0, 0.0
      %v2411 = vsel %vm2375, -1.0, 0.0
      %v2412 = vsel %vm2376, -1.0, 0.0
      %v2413 = vsel %vm2377, -1.0, 0.0
      %v2414 = vsel %vm2378, -1.0, 0.0
      %v2415 = vsel %vm2379, -1.0, 0.0
      %v2416 = vsel %vm2380, -1.0, 0.0
      %v2417 = vsel %vm2381, -1.0, 0.0
      %v2418 = vsel %vm2382, -1.0, 0.0
      %v2419 = vsel %vm2383, -1.0, 0.0
      %v2420 = vsel %vm2384, -1.0, 0.0
      %v2421 = vsel %vm2385, -1.0, 0.0
      %v2422 = vsel %vm2386, -1.0, 0.0
      %v2423 = vsel %vm2387, -1.0, 0.0
      %v2424 = vsel %vm2388, -1.0, 0.0
      %v2425 = vsel %vm2389, -1.0, 0.0
      %v2426 = vsel %vm2390, -1.0, 0.0
      %v2427 = vsel %vm2391, -1.0, 0.0
      %v2428 = vsel %vm2392, -1.0, 0.0
      %v2429 = vsel %vm2321, 1.0, %v2393
      %v2430 = vsel %vm2322, 1.0, %v2394
      %v2431 = vsel %vm2323, 1.0, %v2395
      %v2432 = vsel %vm2324, 1.0, %v2396
      %v2433 = vsel %vm2325, 1.0, %v2397
      %v2434 = vsel %vm2326, 1.0, %v2398
      %v2435 = vsel %vm2327, 1.0, %v2399
      %v2436 = vsel %vm2328, 1.0, %v2400
      %v2437 = vsel %vm2329, 1.0, %v2401
      %v2438 = vsel %vm2330, 1.0, %v2402
      %v2439 = vsel %vm2331, 1.0, %v2403
      %v2440 = vsel %vm2332, 1.0, %v2404
      %v2441 = vsel %vm2333, 1.0, %v2405
      %v2442 = vsel %vm2334, 1.0, %v2406
      %v2443 = vsel %vm2335, 1.0, %v2407
      %v2444 = vsel %vm2336, 1.0, %v2408
      %v2445 = vsel %vm2337, 1.0, %v2409
      %v2446 = vsel %vm2338, 1.0, %v2410
      %v2447 = vsel %vm2339, 1.0, %v2411
      %v2448 = vsel %vm2340, 1.0, %v2412
      %v2449 = vsel %vm2341, 1.0, %v2413
      %v2450 = vsel %vm2342, 1.0, %v2414
      %v2451 = vsel %vm2343, 1.0, %v2415
      %v2452 = vsel %vm2344, 1.0, %v2416
      %v2453 = vsel %vm2345, 1.0, %v2417
      %v2454 = vsel %vm2346, 1.0, %v2418
      %v2455 = vsel %vm2347, 1.0, %v2419
      %v2456 = vsel %vm2348, 1.0, %v2420
      %v2457 = vsel %vm2349, 1.0, %v2421
      %v2458 = vsel %vm2350, 1.0, %v2422
      %v2459 = vsel %vm2351, 1.0, %v2423
      %v2460 = vsel %vm2352, 1.0, %v2424
      %v2461 = vsel %vm2353, 1.0, %v2425
      %v2462 = vsel %vm2354, 1.0, %v2426
      %v2463 = vsel %vm2355, 1.0, %v2427
      %v2464 = vsel %vm2356, 1.0, %v2428
      %v2465 = vpack.c.bf16 %v2430, %v2429
      %v2466 = vpack.c.bf16 %v2432, %v2431
      %v2467 = vpack.c.bf16 %v2434, %v2433
      %v2468 = vpack.c.bf16 %v2436, %v2435
      %v2469 = vpack.c.bf16 %v2438, %v2437
      %v2470 = vpack.c.bf16 %v2440, %v2439
      %v2471 = vpack.c.bf16 %v2442, %v2441
      %v2472 = vpack.c.bf16 %v2444, %v2443
      %v2473 = vpack.c.bf16 %v2446, %v2445
      %v2474 = vpack.c.bf16 %v2448, %v2447
      %v2475 = vpack.c.bf16 %v2450, %v2449
      %v2476 = vpack.c.bf16 %v2452, %v2451
      %v2477 = vpack.c.bf16 %v2454, %v2453
      %v2478 = vpack.c.bf16 %v2456, %v2455
      %v2479 = vpack.c.bf16 %v2458, %v2457
      %v2480 = vpack.c.bf16 %v2460, %v2459
      %v2481 = vpack.c.bf16 %v2462, %v2461
      %v2482 = vpack.c.bf16 %v2464, %v2463
      %s2483 = ssub.s32 %s305, 1
      %v2484 = vstv %s2483
      %v2485 = vadd.s32 %v2484, 1
      %v2486 = vadd.s32 %v2484, 2
      %v2487 = vadd.s32 %v2484, 3
      %v2488 = vadd.s32 %v2484, 4
      %v2489 = vadd.s32 %v2484, 5
      %v2490 = vadd.s32 %v2484, 6
      %v2491 = vadd.s32 %v2484, 7
      %v2492 = vadd.s32 %v2484, 8
      %v2493 = vadd.s32 %v2484, 9
      %v2494 = vadd.s32 %v2484, 10
      %v2495 = vadd.s32 %v2484, 11
      %v2496 = vadd.s32 %v2484, 12
      %v2497 = vadd.s32 %v2484, 13
      %v2498 = vadd.s32 %v2484, 14
      %v2499 = vadd.s32 %v2484, 15
      %v2500 = vadd.s32 %v2484, 16
      %v2501 = vadd.s32 %v2484, 17
      %vm2502 = vcmp.ge.s32.totalorder %v2484, 0
      %vm2503 = vcmp.ge.s32.totalorder %v2485, 0
      %vm2504 = vcmp.ge.s32.totalorder %v2486, 0
      %vm2505 = vcmp.ge.s32.totalorder %v2487, 0
      %vm2506 = vcmp.ge.s32.totalorder %v2488, 0
      %vm2507 = vcmp.ge.s32.totalorder %v2489, 0
      %vm2508 = vcmp.ge.s32.totalorder %v2490, 0
      %vm2509 = vcmp.ge.s32.totalorder %v2491, 0
      %vm2510 = vcmp.ge.s32.totalorder %v2492, 0
      %vm2511 = vcmp.ge.s32.totalorder %v2493, 0
      %vm2512 = vcmp.ge.s32.totalorder %v2494, 0
      %vm2513 = vcmp.ge.s32.totalorder %v2495, 0
      %vm2514 = vcmp.ge.s32.totalorder %v2496, 0
      %vm2515 = vcmp.ge.s32.totalorder %v2497, 0
      %vm2516 = vcmp.ge.s32.totalorder %v2498, 0
      %vm2517 = vcmp.ge.s32.totalorder %v2499, 0
      %vm2518 = vcmp.ge.s32.totalorder %v2500, 0
      %vm2519 = vcmp.ge.s32.totalorder %v2501, 0
      %vm2520 = vcmp.lt.s32.totalorder %v2484, 16
      %vm2521 = vcmp.lt.s32.totalorder %v2485, 16
      %vm2522 = vcmp.lt.s32.totalorder %v2486, 16
      %vm2523 = vcmp.lt.s32.totalorder %v2487, 16
      %vm2524 = vcmp.lt.s32.totalorder %v2488, 16
      %vm2525 = vcmp.lt.s32.totalorder %v2489, 16
      %vm2526 = vcmp.lt.s32.totalorder %v2490, 16
      %vm2527 = vcmp.lt.s32.totalorder %v2491, 16
      %vm2528 = vcmp.lt.s32.totalorder %v2492, 16
      %vm2529 = vcmp.lt.s32.totalorder %v2493, 16
      %vm2530 = vcmp.lt.s32.totalorder %v2494, 16
      %vm2531 = vcmp.lt.s32.totalorder %v2495, 16
      %vm2532 = vcmp.lt.s32.totalorder %v2496, 16
      %vm2533 = vcmp.lt.s32.totalorder %v2497, 16
      %vm2534 = vcmp.lt.s32.totalorder %v2498, 16
      %vm2535 = vcmp.lt.s32.totalorder %v2499, 16
      %vm2536 = vcmp.lt.s32.totalorder %v2500, 16
      %vm2537 = vcmp.lt.s32.totalorder %v2501, 16
      %vm2538 = vmand %vm2502, %vm2520
      %vm2539 = vmand %vm2503, %vm2521
      %vm2540 = vmand %vm2504, %vm2522
      %vm2541 = vmand %vm2505, %vm2523
      %vm2542 = vmand %vm2506, %vm2524
      %vm2543 = vmand %vm2507, %vm2525
      %vm2544 = vmand %vm2508, %vm2526
      %vm2545 = vmand %vm2509, %vm2527
      %vm2546 = vmand %vm2510, %vm2528
      %vm2547 = vmand %vm2511, %vm2529
      %vm2548 = vmand %vm2512, %vm2530
      %vm2549 = vmand %vm2513, %vm2531
      %vm2550 = vmand %vm2514, %vm2532
      %vm2551 = vmand %vm2515, %vm2533
      %vm2552 = vmand %vm2516, %vm2534
      %vm2553 = vmand %vm2517, %vm2535
      %vm2554 = vmand %vm2518, %vm2536
      %vm2555 = vmand %vm2519, %vm2537
      %v2556 = vsel %vm2538, 1, 0
      %v2557 = vsel %vm2539, 1, 0
      %v2558 = vsel %vm2540, 1, 0
      %v2559 = vsel %vm2541, 1, 0
      %v2560 = vsel %vm2542, 1, 0
      %v2561 = vsel %vm2543, 1, 0
      %v2562 = vsel %vm2544, 1, 0
      %v2563 = vsel %vm2545, 1, 0
      %v2564 = vsel %vm2546, 1, 0
      %v2565 = vsel %vm2547, 1, 0
      %v2566 = vsel %vm2548, 1, 0
      %v2567 = vsel %vm2549, 1, 0
      %v2568 = vsel %vm2550, 1, 0
      %v2569 = vsel %vm2551, 1, 0
      %v2570 = vsel %vm2552, 1, 0
      %v2571 = vsel %vm2553, 1, 0
      %v2572 = vsel %vm2554, 1, 0
      %v2573 = vsel %vm2555, 1, 0
      %vm2574 = vcmp.eq.s32.totalorder %v2556, 1
      %vm2575 = vcmp.eq.s32.totalorder %v2557, 1
      %vm2576 = vcmp.eq.s32.totalorder %v2558, 1
      %vm2577 = vcmp.eq.s32.totalorder %v2559, 1
      %vm2578 = vcmp.eq.s32.totalorder %v2560, 1
      %vm2579 = vcmp.eq.s32.totalorder %v2561, 1
      %vm2580 = vcmp.eq.s32.totalorder %v2562, 1
      %vm2581 = vcmp.eq.s32.totalorder %v2563, 1
      %vm2582 = vcmp.eq.s32.totalorder %v2564, 1
      %vm2583 = vcmp.eq.s32.totalorder %v2565, 1
      %vm2584 = vcmp.eq.s32.totalorder %v2566, 1
      %vm2585 = vcmp.eq.s32.totalorder %v2567, 1
      %vm2586 = vcmp.eq.s32.totalorder %v2568, 1
      %vm2587 = vcmp.eq.s32.totalorder %v2569, 1
      %vm2588 = vcmp.eq.s32.totalorder %v2570, 1
      %vm2589 = vcmp.eq.s32.totalorder %v2571, 1
      %vm2590 = vcmp.eq.s32.totalorder %v2572, 1
      %vm2591 = vcmp.eq.s32.totalorder %v2573, 1
      %v2592 = vsel %vm2574, %v2465, 0
      %v2593 = vsel %vm2575, %v2466, 0
      %v2594 = vsel %vm2576, %v2467, 0
      %v2595 = vsel %vm2577, %v2468, 0
      %v2596 = vsel %vm2578, %v2469, 0
      %v2597 = vsel %vm2579, %v2470, 0
      %v2598 = vsel %vm2580, %v2471, 0
      %v2599 = vsel %vm2581, %v2472, 0
      %v2600 = vsel %vm2582, %v2473, 0
      %v2601 = vsel %vm2583, %v2474, 0
      %v2602 = vsel %vm2584, %v2475, 0
      %v2603 = vsel %vm2585, %v2476, 0
      %v2604 = vsel %vm2586, %v2477, 0
      %v2605 = vsel %vm2587, %v2478, 0
      %v2606 = vsel %vm2588, %v2479, 0
      %v2607 = vsel %vm2589, %v2480, 0
      %v2608 = vsel %vm2590, %v2481, 0
      %v2609 = vsel %vm2591, %v2482, 0
      %v2611 = vshrl.u32 %v2592, 16
      %v2613 = vrot.slane %v2611, 7
      %v2614 = vshll.u32 %v2592, 16
      %v2616 = vor.u32 %v2613, %v2614
      %v2618 = vshrl.u32 %v2593, 16
      %v2620 = vrot.slane %v2618, 7
      %v2621 = vshll.u32 %v2593, 16
      %v2623 = vor.u32 %v2620, %v2621
      %v2625 = vshrl.u32 %v2594, 16
      %v2627 = vrot.slane %v2625, 7
      %v2628 = vshll.u32 %v2594, 16
      %v2630 = vor.u32 %v2627, %v2628
      %v2632 = vshrl.u32 %v2595, 16
      %v2634 = vrot.slane %v2632, 7
      %v2635 = vshll.u32 %v2595, 16
      %v2637 = vor.u32 %v2634, %v2635
      %v2639 = vshrl.u32 %v2596, 16
      %v2641 = vrot.slane %v2639, 7
      %v2642 = vshll.u32 %v2596, 16
      %v2644 = vor.u32 %v2641, %v2642
      %v2646 = vshrl.u32 %v2597, 16
      %v2648 = vrot.slane %v2646, 7
      %v2649 = vshll.u32 %v2597, 16
      %v2651 = vor.u32 %v2648, %v2649
      %v2653 = vshrl.u32 %v2598, 16
      %v2655 = vrot.slane %v2653, 7
      %v2656 = vshll.u32 %v2598, 16
      %v2658 = vor.u32 %v2655, %v2656
      %v2660 = vshrl.u32 %v2599, 16
      %v2662 = vrot.slane %v2660, 7
      %v2663 = vshll.u32 %v2599, 16
      %v2665 = vor.u32 %v2662, %v2663
      %v2667 = vshrl.u32 %v2600, 16
      %v2669 = vrot.slane %v2667, 7
      %v2670 = vshll.u32 %v2600, 16
      %v2672 = vor.u32 %v2669, %v2670
      %v2674 = vshrl.u32 %v2601, 16
      %v2676 = vrot.slane %v2674, 7
      %v2677 = vshll.u32 %v2601, 16
      %v2679 = vor.u32 %v2676, %v2677
      %v2681 = vshrl.u32 %v2602, 16
      %v2683 = vrot.slane %v2681, 7
      %v2684 = vshll.u32 %v2602, 16
      %v2686 = vor.u32 %v2683, %v2684
      %v2688 = vshrl.u32 %v2603, 16
      %v2690 = vrot.slane %v2688, 7
      %v2691 = vshll.u32 %v2603, 16
      %v2693 = vor.u32 %v2690, %v2691
      %v2695 = vshrl.u32 %v2604, 16
      %v2697 = vrot.slane %v2695, 7
      %v2698 = vshll.u32 %v2604, 16
      %v2700 = vor.u32 %v2697, %v2698
      %v2702 = vshrl.u32 %v2605, 16
      %v2704 = vrot.slane %v2702, 7
      %v2705 = vshll.u32 %v2605, 16
      %v2707 = vor.u32 %v2704, %v2705
      %v2709 = vshrl.u32 %v2606, 16
      %v2711 = vrot.slane %v2709, 7
      %v2712 = vshll.u32 %v2606, 16
      %v2714 = vor.u32 %v2711, %v2712
      %v2716 = vshrl.u32 %v2607, 16
      %v2718 = vrot.slane %v2716, 7
      %v2719 = vshll.u32 %v2607, 16
      %v2721 = vor.u32 %v2718, %v2719
      %v2723 = vshrl.u32 %v2608, 16
      %v2725 = vrot.slane %v2723, 7
      %v2726 = vshll.u32 %v2608, 16
      %v2728 = vor.u32 %v2725, %v2726
      %v2730 = vshrl.u32 %v2609, 16
      %v2732 = vrot.slane %v2730, 7
      %v2733 = vshll.u32 %v2609, 16
      %v2735 = vor.u32 %v2732, %v2733
      %v2772 = vsel %vm736, 0, %v2616
      %v2773 = vsel %vm736, 0, %v2623
      %v2774 = vsel %vm736, 0, %v2630
      %v2775 = vsel %vm736, 0, %v2637
      %v2776 = vsel %vm736, 0, %v2644
      %v2777 = vsel %vm736, 0, %v2651
      %v2778 = vsel %vm736, 0, %v2658
      %v2779 = vsel %vm736, 0, %v2665
      %v2780 = vsel %vm736, 0, %v2672
      %v2781 = vsel %vm736, 0, %v2679
      %v2782 = vsel %vm736, 0, %v2686
      %v2783 = vsel %vm736, 0, %v2693
      %v2784 = vsel %vm736, 0, %v2700
      %v2785 = vsel %vm736, 0, %v2707
      %v2786 = vsel %vm736, 0, %v2714
      %v2787 = vsel %vm736, 0, %v2721
      %v2788 = vsel %vm736, 0, %v2728
      %v2789 = vsel %vm736, 0, %v2735
      %v2790 = vsel %vm736, %v2613, 0
      %v2791 = vsel %vm736, %v2620, 0
      %v2792 = vsel %vm736, %v2627, 0
      %v2793 = vsel %vm736, %v2634, 0
      %v2794 = vsel %vm736, %v2641, 0
      %v2795 = vsel %vm736, %v2648, 0
      %v2796 = vsel %vm736, %v2655, 0
      %v2797 = vsel %vm736, %v2662, 0
      %v2798 = vsel %vm736, %v2669, 0
      %v2799 = vsel %vm736, %v2676, 0
      %v2800 = vsel %vm736, %v2683, 0
      %v2801 = vsel %vm736, %v2690, 0
      %v2802 = vsel %vm736, %v2697, 0
      %v2803 = vsel %vm736, %v2704, 0
      %v2804 = vsel %vm736, %v2711, 0
      %v2805 = vsel %vm736, %v2718, 0
      %v2806 = vsel %vm736, %v2725, 0
      %v2807 = vsel %vm736, %v2732, 0
      %2824 = vrot.lane.b32.xlu0 %v2773, 16
      %v2825 = vpop.permute.xlu0 %2824
      %2826 = vrot.lane.b32.xlu0 %v2774, 16
      %v2827 = vpop.permute.xlu0 %2826
      %2828 = vrot.lane.b32.xlu0 %v2775, 16
      %v2829 = vpop.permute.xlu0 %2828
      %2830 = vrot.lane.b32.xlu0 %v2776, 16
      %v2831 = vpop.permute.xlu0 %2830
      %2832 = vrot.lane.b32.xlu0 %v2777, 16
      %v2833 = vpop.permute.xlu0 %2832
      %2834 = vrot.lane.b32.xlu0 %v2778, 16
      %v2835 = vpop.permute.xlu0 %2834
      %2836 = vrot.lane.b32.xlu0 %v2779, 16
      %v2837 = vpop.permute.xlu0 %2836
      %2838 = vrot.lane.b32.xlu0 %v2780, 16
      %v2839 = vpop.permute.xlu0 %2838
      %2840 = vrot.lane.b32.xlu0 %v2781, 16
      %v2841 = vpop.permute.xlu0 %2840
      %2842 = vrot.lane.b32.xlu0 %v2782, 16
      %v2843 = vpop.permute.xlu0 %2842
      %2844 = vrot.lane.b32.xlu0 %v2783, 16
      %v2845 = vpop.permute.xlu0 %2844
      %2846 = vrot.lane.b32.xlu0 %v2784, 16
      %v2847 = vpop.permute.xlu0 %2846
      %2848 = vrot.lane.b32.xlu0 %v2785, 16
      %v2849 = vpop.permute.xlu0 %2848
      %2850 = vrot.lane.b32.xlu0 %v2786, 16
      %v2851 = vpop.permute.xlu0 %2850
      %2852 = vrot.lane.b32.xlu0 %v2787, 16
      %v2853 = vpop.permute.xlu0 %2852
      %2854 = vrot.lane.b32.xlu0 %v2788, 16
      %v2855 = vpop.permute.xlu0 %2854
      %2857 = vrot.lane.b32.xlu0 %v2774, 32
      %v2858 = vpop.permute.xlu0 %2857
      %2859 = vrot.lane.b32.xlu0 %v2775, 32
      %v2860 = vpop.permute.xlu0 %2859
      %2861 = vrot.lane.b32.xlu0 %v2776, 32
      %v2862 = vpop.permute.xlu0 %2861
      %2863 = vrot.lane.b32.xlu0 %v2777, 32
      %v2864 = vpop.permute.xlu0 %2863
      %2865 = vrot.lane.b32.xlu0 %v2778, 32
      %v2866 = vpop.permute.xlu0 %2865
      %2867 = vrot.lane.b32.xlu0 %v2779, 32
      %v2868 = vpop.permute.xlu0 %2867
      %2869 = vrot.lane.b32.xlu0 %v2780, 32
      %v2870 = vpop.permute.xlu0 %2869
      %2871 = vrot.lane.b32.xlu0 %v2781, 32
      %v2872 = vpop.permute.xlu0 %2871
      %2873 = vrot.lane.b32.xlu0 %v2782, 32
      %v2874 = vpop.permute.xlu0 %2873
      %2875 = vrot.lane.b32.xlu0 %v2783, 32
      %v2876 = vpop.permute.xlu0 %2875
      %2877 = vrot.lane.b32.xlu0 %v2784, 32
      %v2878 = vpop.permute.xlu0 %2877
      %2879 = vrot.lane.b32.xlu0 %v2785, 32
      %v2880 = vpop.permute.xlu0 %2879
      %2881 = vrot.lane.b32.xlu0 %v2786, 32
      %v2882 = vpop.permute.xlu0 %2881
      %2883 = vrot.lane.b32.xlu0 %v2787, 32
      %v2884 = vpop.permute.xlu0 %2883
      %2885 = vrot.lane.b32.xlu0 %v2788, 32
      %v2886 = vpop.permute.xlu0 %2885
      %2887 = vrot.lane.b32.xlu0 %v2789, 32
      %v2888 = vpop.permute.xlu0 %2887
      %v2891 = vsel %vm868, %v2772, %v2825
      %v2894 = vsel %vm868, %v2773, %v2827
      %v2897 = vsel %vm868, %v2774, %v2829
      %v2900 = vsel %vm868, %v2775, %v2831
      %v2903 = vsel %vm868, %v2776, %v2833
      %v2906 = vsel %vm868, %v2777, %v2835
      %v2909 = vsel %vm868, %v2778, %v2837
      %v2912 = vsel %vm868, %v2779, %v2839
      %v2915 = vsel %vm868, %v2780, %v2841
      %v2918 = vsel %vm868, %v2781, %v2843
      %v2921 = vsel %vm868, %v2782, %v2845
      %v2924 = vsel %vm868, %v2783, %v2847
      %v2927 = vsel %vm868, %v2784, %v2849
      %v2930 = vsel %vm868, %v2785, %v2851
      %v2933 = vsel %vm868, %v2786, %v2853
      %v2936 = vsel %vm868, %v2787, %v2855
      %v2938 = vsel %vm923, %v2891, %v2858
      %v2940 = vsel %vm923, %v2894, %v2860
      %v2942 = vsel %vm923, %v2897, %v2862
      %v2944 = vsel %vm923, %v2900, %v2864
      %v2946 = vsel %vm923, %v2903, %v2866
      %v2948 = vsel %vm923, %v2906, %v2868
      %v2950 = vsel %vm923, %v2909, %v2870
      %v2952 = vsel %vm923, %v2912, %v2872
      %v2954 = vsel %vm923, %v2915, %v2874
      %v2956 = vsel %vm923, %v2918, %v2876
      %v2958 = vsel %vm923, %v2921, %v2878
      %v2960 = vsel %vm923, %v2924, %v2880
      %v2962 = vsel %vm923, %v2927, %v2882
      %v2964 = vsel %vm923, %v2930, %v2884
      %v2966 = vsel %vm923, %v2933, %v2886
      %v2968 = vsel %vm923, %v2936, %v2888
      %v2969 = vld [vmem:[%s4] sm:$0xf]
      %v2970 = vld [vmem:[%s4 + $0x4] sm:$0xf]
      %v2971 = vld [vmem:[%s4 + $0x8] sm:$0xf]
      %v2972 = vld [vmem:[%s4 + $0xc] sm:$0xf]
      %v2973 = vld [vmem:[%s4 + $0x10] sm:$0xf]
      %v2974 = vld [vmem:[%s4 + $0x14] sm:$0xf]
      %2991 = vrot.lane.b32.xlu0 %v2791, 16
      %v2992 = vpop.permute.xlu0 %2991
      %2993 = vrot.lane.b32.xlu0 %v2792, 16
      %v2994 = vpop.permute.xlu0 %2993
      %2995 = vrot.lane.b32.xlu0 %v2793, 16
      %v2996 = vpop.permute.xlu0 %2995
      %2997 = vrot.lane.b32.xlu0 %v2794, 16
      %v2998 = vpop.permute.xlu0 %2997
      %2999 = vrot.lane.b32.xlu0 %v2795, 16
      %v3000 = vpop.permute.xlu0 %2999
      %3001 = vrot.lane.b32.xlu0 %v2796, 16
      %v3002 = vpop.permute.xlu0 %3001
      %3003 = vrot.lane.b32.xlu0 %v2797, 16
      %v3004 = vpop.permute.xlu0 %3003
      %3005 = vrot.lane.b32.xlu0 %v2798, 16
      %v3006 = vpop.permute.xlu0 %3005
      %3007 = vrot.lane.b32.xlu0 %v2799, 16
      %v3008 = vpop.permute.xlu0 %3007
      %3009 = vrot.lane.b32.xlu0 %v2800, 16
      %v3010 = vpop.permute.xlu0 %3009
      %3011 = vrot.lane.b32.xlu0 %v2801, 16
      %v3012 = vpop.permute.xlu0 %3011
      %3013 = vrot.lane.b32.xlu0 %v2802, 16
      %v3014 = vpop.permute.xlu0 %3013
      %3015 = vrot.lane.b32.xlu0 %v2803, 16
      %v3016 = vpop.permute.xlu0 %3015
      %3017 = vrot.lane.b32.xlu0 %v2804, 16
      %v3018 = vpop.permute.xlu0 %3017
      %3019 = vrot.lane.b32.xlu0 %v2805, 16
      %v3020 = vpop.permute.xlu0 %3019
      %3021 = vrot.lane.b32.xlu0 %v2806, 16
      %v3022 = vpop.permute.xlu0 %3021
      %3024 = vrot.lane.b32.xlu0 %v2792, 32
      %v3025 = vpop.permute.xlu0 %3024
      %3026 = vrot.lane.b32.xlu0 %v2793, 32
      %v3027 = vpop.permute.xlu0 %3026
      %3028 = vrot.lane.b32.xlu0 %v2794, 32
      %v3029 = vpop.permute.xlu0 %3028
      %3030 = vrot.lane.b32.xlu0 %v2795, 32
      %v3031 = vpop.permute.xlu0 %3030
      %3032 = vrot.lane.b32.xlu0 %v2796, 32
      %v3033 = vpop.permute.xlu0 %3032
      %3034 = vrot.lane.b32.xlu0 %v2797, 32
      %v3035 = vpop.permute.xlu0 %3034
      %3036 = vrot.lane.b32.xlu0 %v2798, 32
      %v3037 = vpop.permute.xlu0 %3036
      %3038 = vrot.lane.b32.xlu0 %v2799, 32
      %v3039 = vpop.permute.xlu0 %3038
      %3040 = vrot.lane.b32.xlu0 %v2800, 32
      %v3041 = vpop.permute.xlu0 %3040
      %3042 = vrot.lane.b32.xlu0 %v2801, 32
      %v3043 = vpop.permute.xlu0 %3042
      %3044 = vrot.lane.b32.xlu0 %v2802, 32
      %v3045 = vpop.permute.xlu0 %3044
      %3046 = vrot.lane.b32.xlu0 %v2803, 32
      %v3047 = vpop.permute.xlu0 %3046
      %3048 = vrot.lane.b32.xlu0 %v2804, 32
      %v3049 = vpop.permute.xlu0 %3048
      %3050 = vrot.lane.b32.xlu0 %v2805, 32
      %v3051 = vpop.permute.xlu0 %3050
      %3052 = vrot.lane.b32.xlu0 %v2806, 32
      %v3053 = vpop.permute.xlu0 %3052
      %3054 = vrot.lane.b32.xlu0 %v2807, 32
      %v3055 = vpop.permute.xlu0 %3054
      %v3058 = vsel %vm868, %v2790, %v2992
      %v3061 = vsel %vm868, %v2791, %v2994
      %v3064 = vsel %vm868, %v2792, %v2996
      %v3067 = vsel %vm868, %v2793, %v2998
      %v3070 = vsel %vm868, %v2794, %v3000
      %v3073 = vsel %vm868, %v2795, %v3002
      %v3076 = vsel %vm868, %v2796, %v3004
      %v3079 = vsel %vm868, %v2797, %v3006
      %v3082 = vsel %vm868, %v2798, %v3008
      %v3085 = vsel %vm868, %v2799, %v3010
      %v3088 = vsel %vm868, %v2800, %v3012
      %v3091 = vsel %vm868, %v2801, %v3014
      %v3094 = vsel %vm868, %v2802, %v3016
      %v3097 = vsel %vm868, %v2803, %v3018
      %v3100 = vsel %vm868, %v2804, %v3020
      %v3103 = vsel %vm868, %v2805, %v3022
      %v3105 = vsel %vm923, %v3058, %v3025
      %v3107 = vsel %vm923, %v3061, %v3027
      %v3109 = vsel %vm923, %v3064, %v3029
      %v3111 = vsel %vm923, %v3067, %v3031
      %v3113 = vsel %vm923, %v3070, %v3033
      %v3115 = vsel %vm923, %v3073, %v3035
      %v3117 = vsel %vm923, %v3076, %v3037
      %v3119 = vsel %vm923, %v3079, %v3039
      %v3121 = vsel %vm923, %v3082, %v3041
      %v3123 = vsel %vm923, %v3085, %v3043
      %v3125 = vsel %vm923, %v3088, %v3045
      %v3127 = vsel %vm923, %v3091, %v3047
      %v3129 = vsel %vm923, %v3094, %v3049
      %v3131 = vsel %vm923, %v3097, %v3051
      %v3133 = vsel %vm923, %v3100, %v3053
      %v3135 = vsel %vm923, %v3103, %v3055
      %v3136 = vshrl.u32 %v2938, 16
      %v3138 = vshll.u32 %v2938, 16
      %v3140 = vrot.slane %v3138, 1
      %v3141 = vor.u32 %v3136, %v3140
      %v3142 = vshll.u32 %v3105, 16
      %v3144 = vrot.slane %v3142, 1
      %v3145 = vsel %vm1147, %v3141, %v3144
      %v3146 = vshrl.u32 %v2940, 16
      %v3148 = vshll.u32 %v2940, 16
      %v3150 = vrot.slane %v3148, 1
      %v3151 = vor.u32 %v3146, %v3150
      %v3152 = vshll.u32 %v3107, 16
      %v3154 = vrot.slane %v3152, 1
      %v3155 = vsel %vm1147, %v3151, %v3154
      %v3156 = vshrl.u32 %v2942, 16
      %v3158 = vshll.u32 %v2942, 16
      %v3160 = vrot.slane %v3158, 1
      %v3161 = vor.u32 %v3156, %v3160
      %v3162 = vshll.u32 %v3109, 16
      %v3164 = vrot.slane %v3162, 1
      %v3165 = vsel %vm1147, %v3161, %v3164
      %v3166 = vshrl.u32 %v2944, 16
      %v3168 = vshll.u32 %v2944, 16
      %v3170 = vrot.slane %v3168, 1
      %v3171 = vor.u32 %v3166, %v3170
      %v3172 = vshll.u32 %v3111, 16
      %v3174 = vrot.slane %v3172, 1
      %v3175 = vsel %vm1147, %v3171, %v3174
      %v3176 = vshrl.u32 %v2946, 16
      %v3178 = vshll.u32 %v2946, 16
      %v3180 = vrot.slane %v3178, 1
      %v3181 = vor.u32 %v3176, %v3180
      %v3182 = vshll.u32 %v3113, 16
      %v3184 = vrot.slane %v3182, 1
      %v3185 = vsel %vm1147, %v3181, %v3184
      %v3186 = vshrl.u32 %v2948, 16
      %v3188 = vshll.u32 %v2948, 16
      %v3190 = vrot.slane %v3188, 1
      %v3191 = vor.u32 %v3186, %v3190
      %v3192 = vshll.u32 %v3115, 16
      %v3194 = vrot.slane %v3192, 1
      %v3195 = vsel %vm1147, %v3191, %v3194
      %v3196 = vshrl.u32 %v2950, 16
      %v3198 = vshll.u32 %v2950, 16
      %v3200 = vrot.slane %v3198, 1
      %v3201 = vor.u32 %v3196, %v3200
      %v3202 = vshll.u32 %v3117, 16
      %v3204 = vrot.slane %v3202, 1
      %v3205 = vsel %vm1147, %v3201, %v3204
      %v3206 = vshrl.u32 %v2952, 16
      %v3208 = vshll.u32 %v2952, 16
      %v3210 = vrot.slane %v3208, 1
      %v3211 = vor.u32 %v3206, %v3210
      %v3212 = vshll.u32 %v3119, 16
      %v3214 = vrot.slane %v3212, 1
      %v3215 = vsel %vm1147, %v3211, %v3214
      %v3216 = vshrl.u32 %v2954, 16
      %v3218 = vshll.u32 %v2954, 16
      %v3220 = vrot.slane %v3218, 1
      %v3221 = vor.u32 %v3216, %v3220
      %v3222 = vshll.u32 %v3121, 16
      %v3224 = vrot.slane %v3222, 1
      %v3225 = vsel %vm1147, %v3221, %v3224
      %v3226 = vshrl.u32 %v2956, 16
      %v3228 = vshll.u32 %v2956, 16
      %v3230 = vrot.slane %v3228, 1
      %v3231 = vor.u32 %v3226, %v3230
      %v3232 = vshll.u32 %v3123, 16
      %v3234 = vrot.slane %v3232, 1
      %v3235 = vsel %vm1147, %v3231, %v3234
      %v3236 = vshrl.u32 %v2958, 16
      %v3238 = vshll.u32 %v2958, 16
      %v3240 = vrot.slane %v3238, 1
      %v3241 = vor.u32 %v3236, %v3240
      %v3242 = vshll.u32 %v3125, 16
      %v3244 = vrot.slane %v3242, 1
      %v3245 = vsel %vm1147, %v3241, %v3244
      %v3246 = vshrl.u32 %v2960, 16
      %v3248 = vshll.u32 %v2960, 16
      %v3250 = vrot.slane %v3248, 1
      %v3251 = vor.u32 %v3246, %v3250
      %v3252 = vshll.u32 %v3127, 16
      %v3254 = vrot.slane %v3252, 1
      %v3255 = vsel %vm1147, %v3251, %v3254
      %v3256 = vshrl.u32 %v2962, 16
      %v3258 = vshll.u32 %v2962, 16
      %v3260 = vrot.slane %v3258, 1
      %v3261 = vor.u32 %v3256, %v3260
      %v3262 = vshll.u32 %v3129, 16
      %v3264 = vrot.slane %v3262, 1
      %v3265 = vsel %vm1147, %v3261, %v3264
      %v3266 = vshrl.u32 %v2964, 16
      %v3268 = vshll.u32 %v2964, 16
      %v3270 = vrot.slane %v3268, 1
      %v3271 = vor.u32 %v3266, %v3270
      %v3272 = vshll.u32 %v3131, 16
      %v3274 = vrot.slane %v3272, 1
      %v3275 = vsel %vm1147, %v3271, %v3274
      %v3276 = vshrl.u32 %v2966, 16
      %v3278 = vshll.u32 %v2966, 16
      %v3280 = vrot.slane %v3278, 1
      %v3281 = vor.u32 %v3276, %v3280
      %v3282 = vshll.u32 %v3133, 16
      %v3284 = vrot.slane %v3282, 1
      %v3285 = vsel %vm1147, %v3281, %v3284
      %v3286 = vshrl.u32 %v2968, 16
      %v3288 = vshll.u32 %v2968, 16
      %v3290 = vrot.slane %v3288, 1
      %v3291 = vor.u32 %v3286, %v3290
      %v3292 = vshll.u32 %v3135, 16
      %v3294 = vrot.slane %v3292, 1
      %v3295 = vsel %vm1147, %v3291, %v3294
      %s3296 = scalar_lea.vmem %s4, 24
      %v3297 = vld [vmem:[%s3296] sm:$0xf]
      %v3298 = vld [vmem:[%s3296 + $0x4] sm:$0xf]
      %v3299 = vld [vmem:[%s3296 + $0x8] sm:$0xf]
      %v3300 = vld [vmem:[%s3296 + $0xc] sm:$0xf]
      %v3301 = vld [vmem:[%s3296 + $0x10] sm:$0xf]
      %v3302 = vld [vmem:[%s3296 + $0x14] sm:$0xf]
      %v3309 = vunpack.c.l.b16 %v3297
      %v3310 = vunpack.c.l.b16 %v3298
      %v3311 = vunpack.c.l.b16 %v3299
      %v3312 = vunpack.c.l.b16 %v3300
      %v3313 = vunpack.c.l.b16 %v3301
      %v3314 = vunpack.c.l.b16 %v3302
      %v3315 = vpack.c.b16 %v3310, %v3309
      %v3316 = vpack.c.b16 %v3312, %v3311
      %v3317 = vpack.c.b16 %v3314, %v3313
      %v3322 = vsel %vm1353, %v3145, 0
      %v3325 = vsel %vm1353, %v3155, 0
      %v3328 = vsel %vm1353, %v3165, 0
      %v3331 = vsel %vm1353, %v3175, 0
      %v3334 = vsel %vm1353, %v3185, 0
      %v3337 = vsel %vm1353, %v3195, 0
      %v3340 = vsel %vm1353, %v3205, 0
      %v3343 = vsel %vm1353, %v3215, 0
      %v3346 = vsel %vm1353, %v3225, 0
      %v3349 = vsel %vm1353, %v3235, 0
      %v3352 = vsel %vm1353, %v3245, 0
      %v3355 = vsel %vm1353, %v3255, 0
      %v3358 = vsel %vm1353, %v3265, 0
      %v3361 = vsel %vm1353, %v3275, 0
      %v3364 = vsel %vm1353, %v3285, 0
      %v3367 = vsel %vm1353, %v3295, 0
      %3369 = vmatprep.subr.bf16.mxu0 0
      %3370 = vmatpush1.bf16.msra.mxu0 0
      %3371 = vmatprep.subr.bf16.mxu0 0
      %3372 = vmatpush1.bf16.msra.mxu0 0
      %3373 = vmatprep.subr.bf16.mxu0 0
      %3374 = vmatpush1.bf16.msra.mxu0 0
      %3375 = vmatprep.subr.bf16.mxu0 0
      %3376 = vmatpush1.bf16.msra.mxu0 0
      %3377 = vmatprep.subr.bf16.mxu0 0
      %3378 = vmatpush1.bf16.msra.mxu0 0
      %3379 = vmatprep.subr.bf16.mxu0 0
      %3380 = vmatpush1.bf16.msra.mxu0 %v3317
      %3381 = vmatprep.subr.bf16.mxu0 0
      %3382 = vmatpush1.bf16.msra.mxu0 %v3316
      %3383 = vmatprep.subr.bf16.mxu0 0
      %3384 = vmatpush1.bf16.msra.mxu0 %v3315
      %3385 = vmatprep.subr.bf16.mxu0 0
      %3386 = vmatpush2.bf16.msra.mxu0 0
      %3387 = vmatprep.subr.bf16.mxu0 0
      %3388 = vmatpush2.bf16.msra.mxu0 0
      %3389 = vmatprep.subr.bf16.mxu0 0
      %3390 = vmatpush2.bf16.msra.mxu0 0
      %3391 = vmatprep.subr.bf16.mxu0 0
      %3392 = vmatpush2.bf16.msra.mxu0 0
      %3393 = vmatprep.subr.bf16.mxu0 0
      %3394 = vmatpush2.bf16.msra.mxu0 0
      %3395 = vmatprep.subr.bf16.mxu0 0
      %3396 = vmatpush2.bf16.msra.mxu0 0
      %3397 = vmatprep.subr.bf16.mxu0 0
      %3398 = vmatpush2.bf16.msra.mxu0 0
      %3399 = vmatprep.subr.bf16.mxu0 0
      %3400 = vmatpush2.bf16.msra.mxu0 0
      %3401 = vmatprep.mubr.bf16.mxu0 0
      %3402 = vmatmul.mubr.bf16.gmra.mxu0 %v3322
      %v3403 = vpop.f32.mrf.mxu0
      %v3404 = vadd.f32 0.0, %v3403
      %v3405 = vpop.f32.mrf.mxu0
      %v3406 = vpop.f32.mrf.mxu0
      %v3407 = vadd.f32 0.0, %v3406
      %v3408 = vpop.f32.mrf.mxu0
      %3409 = vmatprep.mubr.bf16.mxu0 0
      %3410 = vmatmul.mubr.bf16.gmra.mxu0 %v3325
      %v3411 = vpop.f32.mrf.mxu0
      %v3412 = vadd.f32 0.0, %v3411
      %v3413 = vpop.f32.mrf.mxu0
      %v3414 = vpop.f32.mrf.mxu0
      %v3415 = vadd.f32 0.0, %v3414
      %v3416 = vpop.f32.mrf.mxu0
      %3417 = vmatprep.mubr.bf16.mxu0 0
      %3418 = vmatmul.mubr.bf16.gmra.mxu0 %v3328
      %v3419 = vpop.f32.mrf.mxu0
      %v3420 = vadd.f32 0.0, %v3419
      %v3421 = vpop.f32.mrf.mxu0
      %v3422 = vpop.f32.mrf.mxu0
      %v3423 = vadd.f32 0.0, %v3422
      %v3424 = vpop.f32.mrf.mxu0
      %3425 = vmatprep.mubr.bf16.mxu0 0
      %3426 = vmatmul.mubr.bf16.gmra.mxu0 %v3331
      %v3427 = vpop.f32.mrf.mxu0
      %v3428 = vadd.f32 0.0, %v3427
      %v3429 = vpop.f32.mrf.mxu0
      %v3430 = vpop.f32.mrf.mxu0
      %v3431 = vadd.f32 0.0, %v3430
      %v3432 = vpop.f32.mrf.mxu0
      %3433 = vmatprep.mubr.bf16.mxu0 0
      %3434 = vmatmul.mubr.bf16.gmra.mxu0 %v3334
      %v3435 = vpop.f32.mrf.mxu0
      %v3436 = vadd.f32 0.0, %v3435
      %v3437 = vpop.f32.mrf.mxu0
      %v3438 = vpop.f32.mrf.mxu0
      %v3439 = vadd.f32 0.0, %v3438
      %v3440 = vpop.f32.mrf.mxu0
      %3441 = vmatprep.mubr.bf16.mxu0 0
      %3442 = vmatmul.mubr.bf16.gmra.mxu0 %v3337
      %v3443 = vpop.f32.mrf.mxu0
      %v3444 = vadd.f32 0.0, %v3443
      %v3445 = vpop.f32.mrf.mxu0
      %v3446 = vpop.f32.mrf.mxu0
      %v3447 = vadd.f32 0.0, %v3446
      %v3448 = vpop.f32.mrf.mxu0
      %3449 = vmatprep.mubr.bf16.mxu0 0
      %3450 = vmatmul.mubr.bf16.gmra.mxu0 %v3340
      %v3451 = vpop.f32.mrf.mxu0
      %v3452 = vadd.f32 0.0, %v3451
      %v3453 = vpop.f32.mrf.mxu0
      %v3454 = vpop.f32.mrf.mxu0
      %v3455 = vadd.f32 0.0, %v3454
      %v3456 = vpop.f32.mrf.mxu0
      %3457 = vmatprep.mubr.bf16.mxu0 0
      %3458 = vmatmul.mubr.bf16.gmra.mxu0 %v3343
      %v3459 = vpop.f32.mrf.mxu0
      %v3460 = vadd.f32 0.0, %v3459
      %v3461 = vpop.f32.mrf.mxu0
      %v3462 = vpop.f32.mrf.mxu0
      %v3463 = vadd.f32 0.0, %v3462
      %v3464 = vpop.f32.mrf.mxu0
      %3465 = vmatprep.mubr.bf16.mxu0 0
      %3466 = vmatmul.mubr.bf16.gmra.mxu0 %v3346
      %v3467 = vpop.f32.mrf.mxu0
      %v3468 = vadd.f32 0.0, %v3467
      %v3469 = vpop.f32.mrf.mxu0
      %v3470 = vpop.f32.mrf.mxu0
      %v3471 = vadd.f32 0.0, %v3470
      %v3472 = vpop.f32.mrf.mxu0
      %3473 = vmatprep.mubr.bf16.mxu0 0
      %3474 = vmatmul.mubr.bf16.gmra.mxu0 %v3349
      %v3475 = vpop.f32.mrf.mxu0
      %v3476 = vadd.f32 0.0, %v3475
      %v3477 = vpop.f32.mrf.mxu0
      %v3478 = vpop.f32.mrf.mxu0
      %v3479 = vadd.f32 0.0, %v3478
      %v3480 = vpop.f32.mrf.mxu0
      %3481 = vmatprep.mubr.bf16.mxu0 0
      %3482 = vmatmul.mubr.bf16.gmra.mxu0 %v3352
      %v3483 = vpop.f32.mrf.mxu0
      %v3484 = vadd.f32 0.0, %v3483
      %v3485 = vpop.f32.mrf.mxu0
      %v3486 = vpop.f32.mrf.mxu0
      %v3487 = vadd.f32 0.0, %v3486
      %v3488 = vpop.f32.mrf.mxu0
      %3489 = vmatprep.mubr.bf16.mxu0 0
      %3490 = vmatmul.mubr.bf16.gmra.mxu0 %v3355
      %v3491 = vpop.f32.mrf.mxu0
      %v3492 = vadd.f32 0.0, %v3491
      %v3493 = vpop.f32.mrf.mxu0
      %v3494 = vpop.f32.mrf.mxu0
      %v3495 = vadd.f32 0.0, %v3494
      %v3496 = vpop.f32.mrf.mxu0
      %3497 = vmatprep.mubr.bf16.mxu0 0
      %3498 = vmatmul.mubr.bf16.gmra.mxu0 %v3358
      %v3499 = vpop.f32.mrf.mxu0
      %v3500 = vadd.f32 0.0, %v3499
      %v3501 = vpop.f32.mrf.mxu0
      %v3502 = vpop.f32.mrf.mxu0
      %v3503 = vadd.f32 0.0, %v3502
      %v3504 = vpop.f32.mrf.mxu0
      %3505 = vmatprep.mubr.bf16.mxu0 0
      %3506 = vmatmul.mubr.bf16.gmra.mxu0 %v3361
      %v3507 = vpop.f32.mrf.mxu0
      %v3508 = vadd.f32 0.0, %v3507
      %v3509 = vpop.f32.mrf.mxu0
      %v3510 = vpop.f32.mrf.mxu0
      %v3511 = vadd.f32 0.0, %v3510
      %v3512 = vpop.f32.mrf.mxu0
      %3513 = vmatprep.mubr.bf16.mxu0 0
      %3514 = vmatmul.mubr.bf16.gmra.mxu0 %v3364
      %v3515 = vpop.f32.mrf.mxu0
      %v3516 = vadd.f32 0.0, %v3515
      %v3517 = vpop.f32.mrf.mxu0
      %v3518 = vpop.f32.mrf.mxu0
      %v3519 = vadd.f32 0.0, %v3518
      %v3520 = vpop.f32.mrf.mxu0
      %3521 = vmatprep.mubr.bf16.mxu0 0
      %3522 = vmatmul.mubr.bf16.gmra.mxu0 %v3367
      %v3523 = vpop.f32.mrf.mxu0
      %v3524 = vadd.f32 0.0, %v3523
      %v3525 = vpop.f32.mrf.mxu0
      %v3526 = vpop.f32.mrf.mxu0
      %v3527 = vadd.f32 0.0, %v3526
      %v3528 = vpop.f32.mrf.mxu0
      %3529 = vdwg.mxu0
      %v3536 = vunpack.c.l.b16 %v2969
      %v3537 = vunpack.c.l.b16 %v2970
      %v3538 = vunpack.c.l.b16 %v2971
      %v3539 = vunpack.c.l.b16 %v2972
      %v3540 = vunpack.c.l.b16 %v2973
      %v3541 = vunpack.c.l.b16 %v2974
      %v3542 = vpack.c.b16 %v3537, %v3536
      %v3543 = vpack.c.b16 %v3539, %v3538
      %v3544 = vpack.c.b16 %v3541, %v3540
      %v3548 = vsel %vm1353, %v2938, 0
      %v3550 = vsel %vm1353, %v2940, 0
      %v3552 = vsel %vm1353, %v2942, 0
      %v3554 = vsel %vm1353, %v2944, 0
      %v3556 = vsel %vm1353, %v2946, 0
      %v3558 = vsel %vm1353, %v2948, 0
      %v3560 = vsel %vm1353, %v2950, 0
      %v3562 = vsel %vm1353, %v2952, 0
      %v3564 = vsel %vm1353, %v2954, 0
      %v3566 = vsel %vm1353, %v2956, 0
      %v3568 = vsel %vm1353, %v2958, 0
      %v3570 = vsel %vm1353, %v2960, 0
      %v3572 = vsel %vm1353, %v2962, 0
      %v3574 = vsel %vm1353, %v2964, 0
      %v3576 = vsel %vm1353, %v2966, 0
      %v3578 = vsel %vm1353, %v2968, 0
      %3580 = vmatprep.subr.bf16.mxu0 0
      %3581 = vmatpush1.bf16.msra.mxu0 0
      %3582 = vmatprep.subr.bf16.mxu0 0
      %3583 = vmatpush1.bf16.msra.mxu0 0
      %3584 = vmatprep.subr.bf16.mxu0 0
      %3585 = vmatpush1.bf16.msra.mxu0 0
      %3586 = vmatprep.subr.bf16.mxu0 0
      %3587 = vmatpush1.bf16.msra.mxu0 0
      %3588 = vmatprep.subr.bf16.mxu0 0
      %3589 = vmatpush1.bf16.msra.mxu0 0
      %3590 = vmatprep.subr.bf16.mxu0 0
      %3591 = vmatpush1.bf16.msra.mxu0 %v3544
      %3592 = vmatprep.subr.bf16.mxu0 0
      %3593 = vmatpush1.bf16.msra.mxu0 %v3543
      %3594 = vmatprep.subr.bf16.mxu0 0
      %3595 = vmatpush1.bf16.msra.mxu0 %v3542
      %3596 = vmatprep.subr.bf16.mxu0 0
      %3597 = vmatpush2.bf16.msra.mxu0 0
      %3598 = vmatprep.subr.bf16.mxu0 0
      %3599 = vmatpush2.bf16.msra.mxu0 0
      %3600 = vmatprep.subr.bf16.mxu0 0
      %3601 = vmatpush2.bf16.msra.mxu0 0
      %3602 = vmatprep.subr.bf16.mxu0 0
      %3603 = vmatpush2.bf16.msra.mxu0 0
      %3604 = vmatprep.subr.bf16.mxu0 0
      %3605 = vmatpush2.bf16.msra.mxu0 0
      %3606 = vmatprep.subr.bf16.mxu0 0
      %3607 = vmatpush2.bf16.msra.mxu0 0
      %3608 = vmatprep.subr.bf16.mxu0 0
      %3609 = vmatpush2.bf16.msra.mxu0 0
      %3610 = vmatprep.subr.bf16.mxu0 0
      %3611 = vmatpush2.bf16.msra.mxu0 0
      %3612 = vmatprep.mubr.bf16.mxu0 0
      %3613 = vmatmul.mubr.bf16.gmra.mxu0 %v3548
      %v3614 = vpop.f32.mrf.mxu0
      %v3615 = vadd.f32 %v3404, %v3614
      %v3616 = vpop.f32.mrf.mxu0
      %v3617 = vpop.f32.mrf.mxu0
      %v3618 = vadd.f32 %v3407, %v3617
      %v3619 = vpop.f32.mrf.mxu0
      %3620 = vmatprep.mubr.bf16.mxu0 0
      %3621 = vmatmul.mubr.bf16.gmra.mxu0 %v3550
      %v3622 = vpop.f32.mrf.mxu0
      %v3623 = vadd.f32 %v3412, %v3622
      %v3624 = vpop.f32.mrf.mxu0
      %v3625 = vpop.f32.mrf.mxu0
      %v3626 = vadd.f32 %v3415, %v3625
      %v3627 = vpop.f32.mrf.mxu0
      %3628 = vmatprep.mubr.bf16.mxu0 0
      %3629 = vmatmul.mubr.bf16.gmra.mxu0 %v3552
      %v3630 = vpop.f32.mrf.mxu0
      %v3631 = vadd.f32 %v3420, %v3630
      %v3632 = vpop.f32.mrf.mxu0
      %v3633 = vpop.f32.mrf.mxu0
      %v3634 = vadd.f32 %v3423, %v3633
      %v3635 = vpop.f32.mrf.mxu0
      %3636 = vmatprep.mubr.bf16.mxu0 0
      %3637 = vmatmul.mubr.bf16.gmra.mxu0 %v3554
      %v3638 = vpop.f32.mrf.mxu0
      %v3639 = vadd.f32 %v3428, %v3638
      %v3640 = vpop.f32.mrf.mxu0
      %v3641 = vpop.f32.mrf.mxu0
      %v3642 = vadd.f32 %v3431, %v3641
      %v3643 = vpop.f32.mrf.mxu0
      %3644 = vmatprep.mubr.bf16.mxu0 0
      %3645 = vmatmul.mubr.bf16.gmra.mxu0 %v3556
      %v3646 = vpop.f32.mrf.mxu0
      %v3647 = vadd.f32 %v3436, %v3646
      %v3648 = vpop.f32.mrf.mxu0
      %v3649 = vpop.f32.mrf.mxu0
      %v3650 = vadd.f32 %v3439, %v3649
      %v3651 = vpop.f32.mrf.mxu0
      %3652 = vmatprep.mubr.bf16.mxu0 0
      %3653 = vmatmul.mubr.bf16.gmra.mxu0 %v3558
      %v3654 = vpop.f32.mrf.mxu0
      %v3655 = vadd.f32 %v3444, %v3654
      %v3656 = vpop.f32.mrf.mxu0
      %v3657 = vpop.f32.mrf.mxu0
      %v3658 = vadd.f32 %v3447, %v3657
      %v3659 = vpop.f32.mrf.mxu0
      %3660 = vmatprep.mubr.bf16.mxu0 0
      %3661 = vmatmul.mubr.bf16.gmra.mxu0 %v3560
      %v3662 = vpop.f32.mrf.mxu0
      %v3663 = vadd.f32 %v3452, %v3662
      %v3664 = vpop.f32.mrf.mxu0
      %v3665 = vpop.f32.mrf.mxu0
      %v3666 = vadd.f32 %v3455, %v3665
      %v3667 = vpop.f32.mrf.mxu0
      %3668 = vmatprep.mubr.bf16.mxu0 0
      %3669 = vmatmul.mubr.bf16.gmra.mxu0 %v3562
      %v3670 = vpop.f32.mrf.mxu0
      %v3671 = vadd.f32 %v3460, %v3670
      %v3672 = vpop.f32.mrf.mxu0
      %v3673 = vpop.f32.mrf.mxu0
      %v3674 = vadd.f32 %v3463, %v3673
      %v3675 = vpop.f32.mrf.mxu0
      %3676 = vmatprep.mubr.bf16.mxu0 0
      %3677 = vmatmul.mubr.bf16.gmra.mxu0 %v3564
      %v3678 = vpop.f32.mrf.mxu0
      %v3679 = vadd.f32 %v3468, %v3678
      %v3680 = vpop.f32.mrf.mxu0
      %v3681 = vpop.f32.mrf.mxu0
      %v3682 = vadd.f32 %v3471, %v3681
      %v3683 = vpop.f32.mrf.mxu0
      %3684 = vmatprep.mubr.bf16.mxu0 0
      %3685 = vmatmul.mubr.bf16.gmra.mxu0 %v3566
      %v3686 = vpop.f32.mrf.mxu0
      %v3687 = vadd.f32 %v3476, %v3686
      %v3688 = vpop.f32.mrf.mxu0
      %v3689 = vpop.f32.mrf.mxu0
      %v3690 = vadd.f32 %v3479, %v3689
      %v3691 = vpop.f32.mrf.mxu0
      %3692 = vmatprep.mubr.bf16.mxu0 0
      %3693 = vmatmul.mubr.bf16.gmra.mxu0 %v3568
      %v3694 = vpop.f32.mrf.mxu0
      %v3695 = vadd.f32 %v3484, %v3694
      %v3696 = vpop.f32.mrf.mxu0
      %v3697 = vpop.f32.mrf.mxu0
      %v3698 = vadd.f32 %v3487, %v3697
      %v3699 = vpop.f32.mrf.mxu0
      %3700 = vmatprep.mubr.bf16.mxu0 0
      %3701 = vmatmul.mubr.bf16.gmra.mxu0 %v3570
      %v3702 = vpop.f32.mrf.mxu0
      %v3703 = vadd.f32 %v3492, %v3702
      %v3704 = vpop.f32.mrf.mxu0
      %v3705 = vpop.f32.mrf.mxu0
      %v3706 = vadd.f32 %v3495, %v3705
      %v3707 = vpop.f32.mrf.mxu0
      %3708 = vmatprep.mubr.bf16.mxu0 0
      %3709 = vmatmul.mubr.bf16.gmra.mxu0 %v3572
      %v3710 = vpop.f32.mrf.mxu0
      %v3711 = vadd.f32 %v3500, %v3710
      %v3712 = vpop.f32.mrf.mxu0
      %v3713 = vpop.f32.mrf.mxu0
      %v3714 = vadd.f32 %v3503, %v3713
      %v3715 = vpop.f32.mrf.mxu0
      %3716 = vmatprep.mubr.bf16.mxu0 0
      %3717 = vmatmul.mubr.bf16.gmra.mxu0 %v3574
      %v3718 = vpop.f32.mrf.mxu0
      %v3719 = vadd.f32 %v3508, %v3718
      %v3720 = vpop.f32.mrf.mxu0
      %v3721 = vpop.f32.mrf.mxu0
      %v3722 = vadd.f32 %v3511, %v3721
      %v3723 = vpop.f32.mrf.mxu0
      %3724 = vmatprep.mubr.bf16.mxu0 0
      %3725 = vmatmul.mubr.bf16.gmra.mxu0 %v3576
      %v3726 = vpop.f32.mrf.mxu0
      %v3727 = vadd.f32 %v3516, %v3726
      %v3728 = vpop.f32.mrf.mxu0
      %v3729 = vpop.f32.mrf.mxu0
      %v3730 = vadd.f32 %v3519, %v3729
      %v3731 = vpop.f32.mrf.mxu0
      %3732 = vmatprep.mubr.bf16.mxu0 0
      %3733 = vmatmul.mubr.bf16.gmra.mxu0 %v3578
      %v3734 = vpop.f32.mrf.mxu0
      %v3735 = vadd.f32 %v3524, %v3734
      %v3736 = vpop.f32.mrf.mxu0
      %v3737 = vpop.f32.mrf.mxu0
      %v3738 = vadd.f32 %v3527, %v3737
      %v3739 = vpop.f32.mrf.mxu0
      %3740 = vdwg.mxu0
      %v3773 = vrot.slane %v2938, 1
      %v3774 = vrot.slane %v3105, 1
      %v3775 = vsel %vm1852, %v3773, %v3774
      %v3776 = vrot.slane %v2940, 1
      %v3777 = vrot.slane %v3107, 1
      %v3778 = vsel %vm1852, %v3776, %v3777
      %v3779 = vrot.slane %v2942, 1
      %v3780 = vrot.slane %v3109, 1
      %v3781 = vsel %vm1852, %v3779, %v3780
      %v3782 = vrot.slane %v2944, 1
      %v3783 = vrot.slane %v3111, 1
      %v3784 = vsel %vm1852, %v3782, %v3783
      %v3785 = vrot.slane %v2946, 1
      %v3786 = vrot.slane %v3113, 1
      %v3787 = vsel %vm1852, %v3785, %v3786
      %v3788 = vrot.slane %v2948, 1
      %v3789 = vrot.slane %v3115, 1
      %v3790 = vsel %vm1852, %v3788, %v3789
      %v3791 = vrot.slane %v2950, 1
      %v3792 = vrot.slane %v3117, 1
      %v3793 = vsel %vm1852, %v3791, %v3792
      %v3794 = vrot.slane %v2952, 1
      %v3795 = vrot.slane %v3119, 1
      %v3796 = vsel %vm1852, %v3794, %v3795
      %v3797 = vrot.slane %v2954, 1
      %v3798 = vrot.slane %v3121, 1
      %v3799 = vsel %vm1852, %v3797, %v3798
      %v3800 = vrot.slane %v2956, 1
      %v3801 = vrot.slane %v3123, 1
      %v3802 = vsel %vm1852, %v3800, %v3801
      %v3803 = vrot.slane %v2958, 1
      %v3804 = vrot.slane %v3125, 1
      %v3805 = vsel %vm1852, %v3803, %v3804
      %v3806 = vrot.slane %v2960, 1
      %v3807 = vrot.slane %v3127, 1
      %v3808 = vsel %vm1852, %v3806, %v3807
      %v3809 = vrot.slane %v2962, 1
      %v3810 = vrot.slane %v3129, 1
      %v3811 = vsel %vm1852, %v3809, %v3810
      %v3812 = vrot.slane %v2964, 1
      %v3813 = vrot.slane %v3131, 1
      %v3814 = vsel %vm1852, %v3812, %v3813
      %v3815 = vrot.slane %v2966, 1
      %v3816 = vrot.slane %v3133, 1
      %v3817 = vsel %vm1852, %v3815, %v3816
      %v3818 = vrot.slane %v2968, 1
      %v3819 = vrot.slane %v3135, 1
      %v3820 = vsel %vm1852, %v3818, %v3819
      %s3821 = scalar_lea.vmem %s4, 48
      %v3822 = vld [vmem:[%s3821] sm:$0xf]
      %v3823 = vld [vmem:[%s3821 + $0x4] sm:$0xf]
      %v3824 = vld [vmem:[%s3821 + $0x8] sm:$0xf]
      %v3825 = vld [vmem:[%s3821 + $0xc] sm:$0xf]
      %v3826 = vld [vmem:[%s3821 + $0x10] sm:$0xf]
      %v3827 = vld [vmem:[%s3821 + $0x14] sm:$0xf]
      %v3834 = vunpack.c.l.b16 %v3822
      %v3835 = vunpack.c.l.b16 %v3823
      %v3836 = vunpack.c.l.b16 %v3824
      %v3837 = vunpack.c.l.b16 %v3825
      %v3838 = vunpack.c.l.b16 %v3826
      %v3839 = vunpack.c.l.b16 %v3827
      %v3840 = vpack.c.b16 %v3835, %v3834
      %v3841 = vpack.c.b16 %v3837, %v3836
      %v3842 = vpack.c.b16 %v3839, %v3838
      %v3847 = vsel %vm1353, %v3775, 0
      %v3850 = vsel %vm1353, %v3778, 0
      %v3853 = vsel %vm1353, %v3781, 0
      %v3856 = vsel %vm1353, %v3784, 0
      %v3859 = vsel %vm1353, %v3787, 0
      %v3862 = vsel %vm1353, %v3790, 0
      %v3865 = vsel %vm1353, %v3793, 0
      %v3868 = vsel %vm1353, %v3796, 0
      %v3871 = vsel %vm1353, %v3799, 0
      %v3874 = vsel %vm1353, %v3802, 0
      %v3877 = vsel %vm1353, %v3805, 0
      %v3880 = vsel %vm1353, %v3808, 0
      %v3883 = vsel %vm1353, %v3811, 0
      %v3886 = vsel %vm1353, %v3814, 0
      %v3889 = vsel %vm1353, %v3817, 0
      %v3892 = vsel %vm1353, %v3820, 0
      %3894 = vmatprep.subr.bf16.mxu0 0
      %3895 = vmatpush1.bf16.msra.mxu0 0
      %3896 = vmatprep.subr.bf16.mxu0 0
      %3897 = vmatpush1.bf16.msra.mxu0 0
      %3898 = vmatprep.subr.bf16.mxu0 0
      %3899 = vmatpush1.bf16.msra.mxu0 0
      %3900 = vmatprep.subr.bf16.mxu0 0
      %3901 = vmatpush1.bf16.msra.mxu0 0
      %3902 = vmatprep.subr.bf16.mxu0 0
      %3903 = vmatpush1.bf16.msra.mxu0 0
      %3904 = vmatprep.subr.bf16.mxu0 0
      %3905 = vmatpush1.bf16.msra.mxu0 %v3842
      %3906 = vmatprep.subr.bf16.mxu0 0
      %3907 = vmatpush1.bf16.msra.mxu0 %v3841
      %3908 = vmatprep.subr.bf16.mxu0 0
      %3909 = vmatpush1.bf16.msra.mxu0 %v3840
      %3910 = vmatprep.subr.bf16.mxu0 0
      %3911 = vmatpush2.bf16.msra.mxu0 0
      %3912 = vmatprep.subr.bf16.mxu0 0
      %3913 = vmatpush2.bf16.msra.mxu0 0
      %3914 = vmatprep.subr.bf16.mxu0 0
      %3915 = vmatpush2.bf16.msra.mxu0 0
      %3916 = vmatprep.subr.bf16.mxu0 0
      %3917 = vmatpush2.bf16.msra.mxu0 0
      %3918 = vmatprep.subr.bf16.mxu0 0
      %3919 = vmatpush2.bf16.msra.mxu0 0
      %3920 = vmatprep.subr.bf16.mxu0 0
      %3921 = vmatpush2.bf16.msra.mxu0 0
      %3922 = vmatprep.subr.bf16.mxu0 0
      %3923 = vmatpush2.bf16.msra.mxu0 0
      %3924 = vmatprep.subr.bf16.mxu0 0
      %3925 = vmatpush2.bf16.msra.mxu0 0
      %3926 = vmatprep.mubr.bf16.mxu0 0
      %3927 = vmatmul.mubr.bf16.gmra.mxu0 %v3847
      %v3928 = vpop.f32.mrf.mxu0
      %v3929 = vadd.f32 0.0, %v3928
      %v3930 = vpop.f32.mrf.mxu0
      %v3931 = vpop.f32.mrf.mxu0
      %v3932 = vadd.f32 0.0, %v3931
      %v3933 = vpop.f32.mrf.mxu0
      %3934 = vmatprep.mubr.bf16.mxu0 0
      %3935 = vmatmul.mubr.bf16.gmra.mxu0 %v3850
      %v3936 = vpop.f32.mrf.mxu0
      %v3937 = vadd.f32 0.0, %v3936
      %v3938 = vpop.f32.mrf.mxu0
      %v3939 = vpop.f32.mrf.mxu0
      %v3940 = vadd.f32 0.0, %v3939
      %v3941 = vpop.f32.mrf.mxu0
      %3942 = vmatprep.mubr.bf16.mxu0 0
      %3943 = vmatmul.mubr.bf16.gmra.mxu0 %v3853
      %v3944 = vpop.f32.mrf.mxu0
      %v3945 = vadd.f32 0.0, %v3944
      %v3946 = vpop.f32.mrf.mxu0
      %v3947 = vpop.f32.mrf.mxu0
      %v3948 = vadd.f32 0.0, %v3947
      %v3949 = vpop.f32.mrf.mxu0
      %3950 = vmatprep.mubr.bf16.mxu0 0
      %3951 = vmatmul.mubr.bf16.gmra.mxu0 %v3856
      %v3952 = vpop.f32.mrf.mxu0
      %v3953 = vadd.f32 0.0, %v3952
      %v3954 = vpop.f32.mrf.mxu0
      %v3955 = vpop.f32.mrf.mxu0
      %v3956 = vadd.f32 0.0, %v3955
      %v3957 = vpop.f32.mrf.mxu0
      %3958 = vmatprep.mubr.bf16.mxu0 0
      %3959 = vmatmul.mubr.bf16.gmra.mxu0 %v3859
      %v3960 = vpop.f32.mrf.mxu0
      %v3961 = vadd.f32 0.0, %v3960
      %v3962 = vpop.f32.mrf.mxu0
      %v3963 = vpop.f32.mrf.mxu0
      %v3964 = vadd.f32 0.0, %v3963
      %v3965 = vpop.f32.mrf.mxu0
      %3966 = vmatprep.mubr.bf16.mxu0 0
      %3967 = vmatmul.mubr.bf16.gmra.mxu0 %v3862
      %v3968 = vpop.f32.mrf.mxu0
      %v3969 = vadd.f32 0.0, %v3968
      %v3970 = vpop.f32.mrf.mxu0
      %v3971 = vpop.f32.mrf.mxu0
      %v3972 = vadd.f32 0.0, %v3971
      %v3973 = vpop.f32.mrf.mxu0
      %3974 = vmatprep.mubr.bf16.mxu0 0
      %3975 = vmatmul.mubr.bf16.gmra.mxu0 %v3865
      %v3976 = vpop.f32.mrf.mxu0
      %v3977 = vadd.f32 0.0, %v3976
      %v3978 = vpop.f32.mrf.mxu0
      %v3979 = vpop.f32.mrf.mxu0
      %v3980 = vadd.f32 0.0, %v3979
      %v3981 = vpop.f32.mrf.mxu0
      %3982 = vmatprep.mubr.bf16.mxu0 0
      %3983 = vmatmul.mubr.bf16.gmra.mxu0 %v3868
      %v3984 = vpop.f32.mrf.mxu0
      %v3985 = vadd.f32 0.0, %v3984
      %v3986 = vpop.f32.mrf.mxu0
      %v3987 = vpop.f32.mrf.mxu0
      %v3988 = vadd.f32 0.0, %v3987
      %v3989 = vpop.f32.mrf.mxu0
      %3990 = vmatprep.mubr.bf16.mxu0 0
      %3991 = vmatmul.mubr.bf16.gmra.mxu0 %v3871
      %v3992 = vpop.f32.mrf.mxu0
      %v3993 = vadd.f32 0.0, %v3992
      %v3994 = vpop.f32.mrf.mxu0
      %v3995 = vpop.f32.mrf.mxu0
      %v3996 = vadd.f32 0.0, %v3995
      %v3997 = vpop.f32.mrf.mxu0
      %3998 = vmatprep.mubr.bf16.mxu0 0
      %3999 = vmatmul.mubr.bf16.gmra.mxu0 %v3874
      %v4000 = vpop.f32.mrf.mxu0
      %v4001 = vadd.f32 0.0, %v4000
      %v4002 = vpop.f32.mrf.mxu0
      %v4003 = vpop.f32.mrf.mxu0
      %v4004 = vadd.f32 0.0, %v4003
      %v4005 = vpop.f32.mrf.mxu0
      %4006 = vmatprep.mubr.bf16.mxu0 0
      %4007 = vmatmul.mubr.bf16.gmra.mxu0 %v3877
      %v4008 = vpop.f32.mrf.mxu0
      %v4009 = vadd.f32 0.0, %v4008
      %v4010 = vpop.f32.mrf.mxu0
      %v4011 = vpop.f32.mrf.mxu0
      %v4012 = vadd.f32 0.0, %v4011
      %v4013 = vpop.f32.mrf.mxu0
      %4014 = vmatprep.mubr.bf16.mxu0 0
      %4015 = vmatmul.mubr.bf16.gmra.mxu0 %v3880
      %v4016 = vpop.f32.mrf.mxu0
      %v4017 = vadd.f32 0.0, %v4016
      %v4018 = vpop.f32.mrf.mxu0
      %v4019 = vpop.f32.mrf.mxu0
      %v4020 = vadd.f32 0.0, %v4019
      %v4021 = vpop.f32.mrf.mxu0
      %4022 = vmatprep.mubr.bf16.mxu0 0
      %4023 = vmatmul.mubr.bf16.gmra.mxu0 %v3883
      %v4024 = vpop.f32.mrf.mxu0
      %v4025 = vadd.f32 0.0, %v4024
      %v4026 = vpop.f32.mrf.mxu0
      %v4027 = vpop.f32.mrf.mxu0
      %v4028 = vadd.f32 0.0, %v4027
      %v4029 = vpop.f32.mrf.mxu0
      %4030 = vmatprep.mubr.bf16.mxu0 0
      %4031 = vmatmul.mubr.bf16.gmra.mxu0 %v3886
      %v4032 = vpop.f32.mrf.mxu0
      %v4033 = vadd.f32 0.0, %v4032
      %v4034 = vpop.f32.mrf.mxu0
      %v4035 = vpop.f32.mrf.mxu0
      %v4036 = vadd.f32 0.0, %v4035
      %v4037 = vpop.f32.mrf.mxu0
      %4038 = vmatprep.mubr.bf16.mxu0 0
      %4039 = vmatmul.mubr.bf16.gmra.mxu0 %v3889
      %v4040 = vpop.f32.mrf.mxu0
      %v4041 = vadd.f32 0.0, %v4040
      %v4042 = vpop.f32.mrf.mxu0
      %v4043 = vpop.f32.mrf.mxu0
      %v4044 = vadd.f32 0.0, %v4043
      %v4045 = vpop.f32.mrf.mxu0
      %4046 = vmatprep.mubr.bf16.mxu0 0
      %4047 = vmatmul.mubr.bf16.gmra.mxu0 %v3892
      %v4048 = vpop.f32.mrf.mxu0
      %v4049 = vadd.f32 0.0, %v4048
      %v4050 = vpop.f32.mrf.mxu0
      %v4051 = vpop.f32.mrf.mxu0
      %v4052 = vadd.f32 0.0, %v4051
      %v4053 = vpop.f32.mrf.mxu0
      %4054 = vdwg.mxu0
      %v4055 = vadd.f32 %v3615, %v3929
      %v4056 = vadd.f32 %v3618, %v3932
      %v4057 = vadd.f32 %v3623, %v3937
      %v4058 = vadd.f32 %v3626, %v3940
      %v4059 = vadd.f32 %v3631, %v3945
      %v4060 = vadd.f32 %v3634, %v3948
      %v4061 = vadd.f32 %v3639, %v3953
      %v4062 = vadd.f32 %v3642, %v3956
      %v4063 = vadd.f32 %v3647, %v3961
      %v4064 = vadd.f32 %v3650, %v3964
      %v4065 = vadd.f32 %v3655, %v3969
      %v4066 = vadd.f32 %v3658, %v3972
      %v4067 = vadd.f32 %v3663, %v3977
      %v4068 = vadd.f32 %v3666, %v3980
      %v4069 = vadd.f32 %v3671, %v3985
      %v4070 = vadd.f32 %v3674, %v3988
      %v4071 = vadd.f32 %v3679, %v3993
      %v4072 = vadd.f32 %v3682, %v3996
      %v4073 = vadd.f32 %v3687, %v4001
      %v4074 = vadd.f32 %v3690, %v4004
      %v4075 = vadd.f32 %v3695, %v4009
      %v4076 = vadd.f32 %v3698, %v4012
      %v4077 = vadd.f32 %v3703, %v4017
      %v4078 = vadd.f32 %v3706, %v4020
      %v4079 = vadd.f32 %v3711, %v4025
      %v4080 = vadd.f32 %v3714, %v4028
      %v4081 = vadd.f32 %v3719, %v4033
      %v4082 = vadd.f32 %v3722, %v4036
      %v4083 = vadd.f32 %v3727, %v4041
      %v4084 = vadd.f32 %v3730, %v4044
      %v4085 = vadd.f32 %v3735, %v4049
      %v4086 = vadd.f32 %v3738, %v4052
      %v4087 = vld [vmem:[%s5] sm:$0x1]
      %v4088 = vld [vmem:[%s6] sm:$0x1]
      %v4090 = vlaneseq
      %v4091 = vshrl.u32 %v4090, 7
      %v4092 = vsub.s32 0, %v4091
      %v4093 = vrot.slane %v4087, %v4092
      %v4095 = vmul.f32 %v4055, %v4093
      %v4096 = vmul.f32 %v4056, %v4093
      %v4097 = vmul.f32 %v4057, %v4093
      %v4098 = vmul.f32 %v4058, %v4093
      %v4099 = vmul.f32 %v4059, %v4093
      %v4100 = vmul.f32 %v4060, %v4093
      %v4101 = vmul.f32 %v4061, %v4093
      %v4102 = vmul.f32 %v4062, %v4093
      %v4103 = vmul.f32 %v4063, %v4093
      %v4104 = vmul.f32 %v4064, %v4093
      %v4105 = vmul.f32 %v4065, %v4093
      %v4106 = vmul.f32 %v4066, %v4093
      %v4107 = vmul.f32 %v4067, %v4093
      %v4108 = vmul.f32 %v4068, %v4093
      %v4109 = vmul.f32 %v4069, %v4093
      %v4110 = vmul.f32 %v4070, %v4093
      %v4111 = vmul.f32 %v4071, %v4093
      %v4112 = vmul.f32 %v4072, %v4093
      %v4113 = vmul.f32 %v4073, %v4093
      %v4114 = vmul.f32 %v4074, %v4093
      %v4115 = vmul.f32 %v4075, %v4093
      %v4116 = vmul.f32 %v4076, %v4093
      %v4117 = vmul.f32 %v4077, %v4093
      %v4118 = vmul.f32 %v4078, %v4093
      %v4119 = vmul.f32 %v4079, %v4093
      %v4120 = vmul.f32 %v4080, %v4093
      %v4121 = vmul.f32 %v4081, %v4093
      %v4122 = vmul.f32 %v4082, %v4093
      %v4123 = vmul.f32 %v4083, %v4093
      %v4124 = vmul.f32 %v4084, %v4093
      %v4125 = vmul.f32 %v4085, %v4093
      %v4126 = vmul.f32 %v4086, %v4093
      %v4128 = vlaneseq
      %v4129 = vshrl.u32 %v4128, 7
      %v4130 = vsub.s32 0, %v4129
      %v4131 = vrot.slane %v4088, %v4130
      %v4133 = vadd.f32 %v4131, %v2287
      %v4134 = vadd.f32 %v4131, %v2288
      %v4135 = vadd.f32 %v4131, %v2289
      %v4136 = vadd.f32 %v4131, %v2290
      %v4137 = vadd.f32 %v4131, %v2291
      %v4138 = vadd.f32 %v4131, %v2292
      %v4139 = vadd.f32 %v4131, %v2293
      %v4140 = vadd.f32 %v4131, %v2294
      %v4141 = vadd.f32 %v4131, %v2295
      %v4142 = vadd.f32 %v4131, %v2296
      %v4143 = vadd.f32 %v4131, %v2297
      %v4144 = vadd.f32 %v4131, %v2298
      %v4145 = vadd.f32 %v4131, %v2299
      %v4146 = vadd.f32 %v4131, %v2300
      %v4147 = vadd.f32 %v4131, %v2301
      %v4148 = vadd.f32 %v4131, %v2302
      %v4149 = vadd.f32 %v4131, %v2303
      %v4150 = vadd.f32 %v4131, %v2304
      %v4151 = vadd.f32 %v4131, %v2305
      %v4152 = vadd.f32 %v4131, %v2306
      %v4153 = vadd.f32 %v4131, %v2307
      %v4154 = vadd.f32 %v4131, %v2308
      %v4155 = vadd.f32 %v4131, %v2309
      %v4156 = vadd.f32 %v4131, %v2310
      %v4157 = vadd.f32 %v4131, %v2311
      %v4158 = vadd.f32 %v4131, %v2312
      %v4159 = vadd.f32 %v4131, %v2313
      %v4160 = vadd.f32 %v4131, %v2314
      %v4161 = vadd.f32 %v4131, %v2315
      %v4162 = vadd.f32 %v4131, %v2316
      %v4163 = vadd.f32 %v4131, %v2317
      %v4164 = vadd.f32 %v4131, %v2318
      %v4165 = vadd.f32 %v4095, %v4133
      %v4166 = vadd.f32 %v4096, %v4134
      %v4167 = vadd.f32 %v4097, %v4135
      %v4168 = vadd.f32 %v4098, %v4136
      %v4169 = vadd.f32 %v4099, %v4137
      %v4170 = vadd.f32 %v4100, %v4138
      %v4171 = vadd.f32 %v4101, %v4139
      %v4172 = vadd.f32 %v4102, %v4140
      %v4173 = vadd.f32 %v4103, %v4141
      %v4174 = vadd.f32 %v4104, %v4142
      %v4175 = vadd.f32 %v4105, %v4143
      %v4176 = vadd.f32 %v4106, %v4144
      %v4177 = vadd.f32 %v4107, %v4145
      %v4178 = vadd.f32 %v4108, %v4146
      %v4179 = vadd.f32 %v4109, %v4147
      %v4180 = vadd.f32 %v4110, %v4148
      %v4181 = vadd.f32 %v4111, %v4149
      %v4182 = vadd.f32 %v4112, %v4150
      %v4183 = vadd.f32 %v4113, %v4151
      %v4184 = vadd.f32 %v4114, %v4152
      %v4185 = vadd.f32 %v4115, %v4153
      %v4186 = vadd.f32 %v4116, %v4154
      %v4187 = vadd.f32 %v4117, %v4155
      %v4188 = vadd.f32 %v4118, %v4156
      %v4189 = vadd.f32 %v4119, %v4157
      %v4190 = vadd.f32 %v4120, %v4158
      %v4191 = vadd.f32 %v4121, %v4159
      %v4192 = vadd.f32 %v4122, %v4160
      %v4193 = vadd.f32 %v4123, %v4161
      %v4194 = vadd.f32 %v4124, %v4162
      %v4195 = vadd.f32 %v4125, %v4163
      %v4196 = vadd.f32 %v4126, %v4164
      %v4197 = vcombine.low %v4165, %v4169
      %v4198 = vcombine.high %v4165, %v4169
      %v4200 = vunpack.c.l.s4 1983009808
      %v4201 = vunpack.c.0.s8 %v4200
      %v4202 = vlaneseq
      %v4203 = vshrl.u32 %v4202, 7
      %v4204 = vsub.s32 %v4201, %v4203
      %v4205 = vrot.slane %v4197, %v4204
      %v4207 = vunpack.c.l.s4 1983009808
      %v4208 = vunpack.c.0.s8 %v4207
      %v4209 = vlaneseq
      %v4210 = vshrl.u32 %v4209, 7
      %v4211 = vsub.s32 %v4208, %v4210
      %v4212 = vrot.slane %v4198, %v4211
      %v4213 = vcombine.low %v4167, %v4171
      %v4214 = vcombine.high %v4167, %v4171
      %v4216 = vunpack.c.l.s4 1983009808
      %v4217 = vunpack.c.0.s8 %v4216
      %v4218 = vlaneseq
      %v4219 = vshrl.u32 %v4218, 7
      %v4220 = vsub.s32 %v4217, %v4219
      %v4221 = vrot.slane %v4213, %v4220
      %v4223 = vunpack.c.l.s4 1983009808
      %v4224 = vunpack.c.0.s8 %v4223
      %v4225 = vlaneseq
      %v4226 = vshrl.u32 %v4225, 7
      %v4227 = vsub.s32 %v4224, %v4226
      %v4228 = vrot.slane %v4214, %v4227
      %v4229 = vcombine.low %v4173, %v4177
      %v4230 = vcombine.high %v4173, %v4177
      %v4232 = vunpack.c.l.s4 1983009808
      %v4233 = vunpack.c.0.s8 %v4232
      %v4234 = vlaneseq
      %v4235 = vshrl.u32 %v4234, 7
      %v4236 = vsub.s32 %v4233, %v4235
      %v4237 = vrot.slane %v4229, %v4236
      %v4239 = vunpack.c.l.s4 1983009808
      %v4240 = vunpack.c.0.s8 %v4239
      %v4241 = vlaneseq
      %v4242 = vshrl.u32 %v4241, 7
      %v4243 = vsub.s32 %v4240, %v4242
      %v4244 = vrot.slane %v4230, %v4243
      %v4245 = vcombine.low %v4175, %v4179
      %v4246 = vcombine.high %v4175, %v4179
      %v4248 = vunpack.c.l.s4 1983009808
      %v4249 = vunpack.c.0.s8 %v4248
      %v4250 = vlaneseq
      %v4251 = vshrl.u32 %v4250, 7
      %v4252 = vsub.s32 %v4249, %v4251
      %v4253 = vrot.slane %v4245, %v4252
      %v4255 = vunpack.c.l.s4 1983009808
      %v4256 = vunpack.c.0.s8 %v4255
      %v4257 = vlaneseq
      %v4258 = vshrl.u32 %v4257, 7
      %v4259 = vsub.s32 %v4256, %v4258
      %v4260 = vrot.slane %v4246, %v4259
      %v4261 = vcombine.low %v4205, %v4221
      %v4262 = vcombine.high %v4205, %v4221
      %v4264 = vunpack.c.l.s4 1934713408
      %v4265 = vunpack.c.0.s8 %v4264
      %v4266 = vlaneseq
      %v4267 = vshrl.u32 %v4266, 7
      %v4268 = vsub.s32 %v4265, %v4267
      %v4269 = vrot.slane %v4261, %v4268
      %v4271 = vunpack.c.l.s4 1934713408
      %v4272 = vunpack.c.0.s8 %v4271
      %v4273 = vlaneseq
      %v4274 = vshrl.u32 %v4273, 7
      %v4275 = vsub.s32 %v4272, %v4274
      %v4276 = vrot.slane %v4262, %v4275
      %v4277 = vcombine.low %v4212, %v4228
      %v4278 = vcombine.high %v4212, %v4228
      %v4280 = vunpack.c.l.s4 1934713408
      %v4281 = vunpack.c.0.s8 %v4280
      %v4282 = vlaneseq
      %v4283 = vshrl.u32 %v4282, 7
      %v4284 = vsub.s32 %v4281, %v4283
      %v4285 = vrot.slane %v4277, %v4284
      %v4287 = vunpack.c.l.s4 1934713408
      %v4288 = vunpack.c.0.s8 %v4287
      %v4289 = vlaneseq
      %v4290 = vshrl.u32 %v4289, 7
      %v4291 = vsub.s32 %v4288, %v4290
      %v4292 = vrot.slane %v4278, %v4291
      %v4293 = vcombine.low %v4237, %v4253
      %v4294 = vcombine.high %v4237, %v4253
      %v4296 = vunpack.c.l.s4 1934713408
      %v4297 = vunpack.c.0.s8 %v4296
      %v4298 = vlaneseq
      %v4299 = vshrl.u32 %v4298, 7
      %v4300 = vsub.s32 %v4297, %v4299
      %v4301 = vrot.slane %v4293, %v4300
      %v4303 = vunpack.c.l.s4 1934713408
      %v4304 = vunpack.c.0.s8 %v4303
      %v4305 = vlaneseq
      %v4306 = vshrl.u32 %v4305, 7
      %v4307 = vsub.s32 %v4304, %v4306
      %v4308 = vrot.slane %v4294, %v4307
      %v4309 = vcombine.low %v4244, %v4260
      %v4310 = vcombine.high %v4244, %v4260
      %v4312 = vunpack.c.l.s4 1934713408
      %v4313 = vunpack.c.0.s8 %v4312
      %v4314 = vlaneseq
      %v4315 = vshrl.u32 %v4314, 7
      %v4316 = vsub.s32 %v4313, %v4315
      %v4317 = vrot.slane %v4309, %v4316
      %v4319 = vunpack.c.l.s4 1934713408
      %v4320 = vunpack.c.0.s8 %v4319
      %v4321 = vlaneseq
      %v4322 = vshrl.u32 %v4321, 7
      %v4323 = vsub.s32 %v4320, %v4322
      %v4324 = vrot.slane %v4310, %v4323
      %v4325 = vcombine.low %v4269, %v4301
      %v4326 = vcombine.high %v4269, %v4301
      %v4327 = vcombine.low %v4276, %v4308
      %v4328 = vcombine.high %v4276, %v4308
      %v4329 = vcombine.low %v4285, %v4317
      %v4330 = vcombine.high %v4285, %v4317
      %v4331 = vcombine.low %v4292, %v4324
      %v4332 = vcombine.high %v4292, %v4324
      %v4333 = vcombine.low %v4181, %v4185
      %v4334 = vcombine.high %v4181, %v4185
      %v4336 = vunpack.c.l.s4 1983009808
      %v4337 = vunpack.c.0.s8 %v4336
      %v4338 = vlaneseq
      %v4339 = vshrl.u32 %v4338, 7
      %v4340 = vsub.s32 %v4337, %v4339
      %v4341 = vrot.slane %v4333, %v4340
      %v4343 = vunpack.c.l.s4 1983009808
      %v4344 = vunpack.c.0.s8 %v4343
      %v4345 = vlaneseq
      %v4346 = vshrl.u32 %v4345, 7
      %v4347 = vsub.s32 %v4344, %v4346
      %v4348 = vrot.slane %v4334, %v4347
      %v4349 = vcombine.low %v4183, %v4187
      %v4350 = vcombine.high %v4183, %v4187
      %v4352 = vunpack.c.l.s4 1983009808
      %v4353 = vunpack.c.0.s8 %v4352
      %v4354 = vlaneseq
      %v4355 = vshrl.u32 %v4354, 7
      %v4356 = vsub.s32 %v4353, %v4355
      %v4357 = vrot.slane %v4349, %v4356
      %v4359 = vunpack.c.l.s4 1983009808
      %v4360 = vunpack.c.0.s8 %v4359
      %v4361 = vlaneseq
      %v4362 = vshrl.u32 %v4361, 7
      %v4363 = vsub.s32 %v4360, %v4362
      %v4364 = vrot.slane %v4350, %v4363
      %v4365 = vcombine.low %v4189, %v4193
      %v4366 = vcombine.high %v4189, %v4193
      %v4368 = vunpack.c.l.s4 1983009808
      %v4369 = vunpack.c.0.s8 %v4368
      %v4370 = vlaneseq
      %v4371 = vshrl.u32 %v4370, 7
      %v4372 = vsub.s32 %v4369, %v4371
      %v4373 = vrot.slane %v4365, %v4372
      %v4375 = vunpack.c.l.s4 1983009808
      %v4376 = vunpack.c.0.s8 %v4375
      %v4377 = vlaneseq
      %v4378 = vshrl.u32 %v4377, 7
      %v4379 = vsub.s32 %v4376, %v4378
      %v4380 = vrot.slane %v4366, %v4379
      %v4381 = vcombine.low %v4191, %v4195
      %v4382 = vcombine.high %v4191, %v4195
      %v4384 = vunpack.c.l.s4 1983009808
      %v4385 = vunpack.c.0.s8 %v4384
      %v4386 = vlaneseq
      %v4387 = vshrl.u32 %v4386, 7
      %v4388 = vsub.s32 %v4385, %v4387
      %v4389 = vrot.slane %v4381, %v4388
      %v4391 = vunpack.c.l.s4 1983009808
      %v4392 = vunpack.c.0.s8 %v4391
      %v4393 = vlaneseq
      %v4394 = vshrl.u32 %v4393, 7
      %v4395 = vsub.s32 %v4392, %v4394
      %v4396 = vrot.slane %v4382, %v4395
      %v4397 = vcombine.low %v4341, %v4357
      %v4398 = vcombine.high %v4341, %v4357
      %v4400 = vunpack.c.l.s4 1934713408
      %v4401 = vunpack.c.0.s8 %v4400
      %v4402 = vlaneseq
      %v4403 = vshrl.u32 %v4402, 7
      %v4404 = vsub.s32 %v4401, %v4403
      %v4405 = vrot.slane %v4397, %v4404
      %v4407 = vunpack.c.l.s4 1934713408
      %v4408 = vunpack.c.0.s8 %v4407
      %v4409 = vlaneseq
      %v4410 = vshrl.u32 %v4409, 7
      %v4411 = vsub.s32 %v4408, %v4410
      %v4412 = vrot.slane %v4398, %v4411
      %v4413 = vcombine.low %v4348, %v4364
      %v4414 = vcombine.high %v4348, %v4364
      %v4416 = vunpack.c.l.s4 1934713408
      %v4417 = vunpack.c.0.s8 %v4416
      %v4418 = vlaneseq
      %v4419 = vshrl.u32 %v4418, 7
      %v4420 = vsub.s32 %v4417, %v4419
      %v4421 = vrot.slane %v4413, %v4420
      %v4423 = vunpack.c.l.s4 1934713408
      %v4424 = vunpack.c.0.s8 %v4423
      %v4425 = vlaneseq
      %v4426 = vshrl.u32 %v4425, 7
      %v4427 = vsub.s32 %v4424, %v4426
      %v4428 = vrot.slane %v4414, %v4427
      %v4429 = vcombine.low %v4373, %v4389
      %v4430 = vcombine.high %v4373, %v4389
      %v4432 = vunpack.c.l.s4 1934713408
      %v4433 = vunpack.c.0.s8 %v4432
      %v4434 = vlaneseq
      %v4435 = vshrl.u32 %v4434, 7
      %v4436 = vsub.s32 %v4433, %v4435
      %v4437 = vrot.slane %v4429, %v4436
      %v4439 = vunpack.c.l.s4 1934713408
      %v4440 = vunpack.c.0.s8 %v4439
      %v4441 = vlaneseq
      %v4442 = vshrl.u32 %v4441, 7
      %v4443 = vsub.s32 %v4440, %v4442
      %v4444 = vrot.slane %v4430, %v4443
      %v4445 = vcombine.low %v4380, %v4396
      %v4446 = vcombine.high %v4380, %v4396
      %v4448 = vunpack.c.l.s4 1934713408
      %v4449 = vunpack.c.0.s8 %v4448
      %v4450 = vlaneseq
      %v4451 = vshrl.u32 %v4450, 7
      %v4452 = vsub.s32 %v4449, %v4451
      %v4453 = vrot.slane %v4445, %v4452
      %v4455 = vunpack.c.l.s4 1934713408
      %v4456 = vunpack.c.0.s8 %v4455
      %v4457 = vlaneseq
      %v4458 = vshrl.u32 %v4457, 7
      %v4459 = vsub.s32 %v4456, %v4458
      %v4460 = vrot.slane %v4446, %v4459
      %v4461 = vcombine.low %v4405, %v4437
      %v4462 = vcombine.high %v4405, %v4437
      %v4463 = vcombine.low %v4412, %v4444
      %v4464 = vcombine.high %v4412, %v4444
      %v4465 = vcombine.low %v4421, %v4453
      %v4466 = vcombine.high %v4421, %v4453
      %v4467 = vcombine.low %v4428, %v4460
      %v4468 = vcombine.high %v4428, %v4460
      %v4469 = vcombine.low %v4166, %v4170
      %v4470 = vcombine.high %v4166, %v4170
      %v4472 = vunpack.c.l.s4 1983009808
      %v4473 = vunpack.c.0.s8 %v4472
      %v4474 = vlaneseq
      %v4475 = vshrl.u32 %v4474, 7
      %v4476 = vsub.s32 %v4473, %v4475
      %v4477 = vrot.slane %v4469, %v4476
      %v4479 = vunpack.c.l.s4 1983009808
      %v4480 = vunpack.c.0.s8 %v4479
      %v4481 = vlaneseq
      %v4482 = vshrl.u32 %v4481, 7
      %v4483 = vsub.s32 %v4480, %v4482
      %v4484 = vrot.slane %v4470, %v4483
      %v4485 = vcombine.low %v4168, %v4172
      %v4486 = vcombine.high %v4168, %v4172
      %v4488 = vunpack.c.l.s4 1983009808
      %v4489 = vunpack.c.0.s8 %v4488
      %v4490 = vlaneseq
      %v4491 = vshrl.u32 %v4490, 7
      %v4492 = vsub.s32 %v4489, %v4491
      %v4493 = vrot.slane %v4485, %v4492
      %v4495 = vunpack.c.l.s4 1983009808
      %v4496 = vunpack.c.0.s8 %v4495
      %v4497 = vlaneseq
      %v4498 = vshrl.u32 %v4497, 7
      %v4499 = vsub.s32 %v4496, %v4498
      %v4500 = vrot.slane %v4486, %v4499
      %v4501 = vcombine.low %v4174, %v4178
      %v4502 = vcombine.high %v4174, %v4178
      %v4504 = vunpack.c.l.s4 1983009808
      %v4505 = vunpack.c.0.s8 %v4504
      %v4506 = vlaneseq
      %v4507 = vshrl.u32 %v4506, 7
      %v4508 = vsub.s32 %v4505, %v4507
      %v4509 = vrot.slane %v4501, %v4508
      %v4511 = vunpack.c.l.s4 1983009808
      %v4512 = vunpack.c.0.s8 %v4511
      %v4513 = vlaneseq
      %v4514 = vshrl.u32 %v4513, 7
      %v4515 = vsub.s32 %v4512, %v4514
      %v4516 = vrot.slane %v4502, %v4515
      %v4517 = vcombine.low %v4176, %v4180
      %v4518 = vcombine.high %v4176, %v4180
      %v4520 = vunpack.c.l.s4 1983009808
      %v4521 = vunpack.c.0.s8 %v4520
      %v4522 = vlaneseq
      %v4523 = vshrl.u32 %v4522, 7
      %v4524 = vsub.s32 %v4521, %v4523
      %v4525 = vrot.slane %v4517, %v4524
      %v4527 = vunpack.c.l.s4 1983009808
      %v4528 = vunpack.c.0.s8 %v4527
      %v4529 = vlaneseq
      %v4530 = vshrl.u32 %v4529, 7
      %v4531 = vsub.s32 %v4528, %v4530
      %v4532 = vrot.slane %v4518, %v4531
      %v4533 = vcombine.low %v4477, %v4493
      %v4534 = vcombine.high %v4477, %v4493
      %v4536 = vunpack.c.l.s4 1934713408
      %v4537 = vunpack.c.0.s8 %v4536
      %v4538 = vlaneseq
      %v4539 = vshrl.u32 %v4538, 7
      %v4540 = vsub.s32 %v4537, %v4539
      %v4541 = vrot.slane %v4533, %v4540
      %v4543 = vunpack.c.l.s4 1934713408
      %v4544 = vunpack.c.0.s8 %v4543
      %v4545 = vlaneseq
      %v4546 = vshrl.u32 %v4545, 7
      %v4547 = vsub.s32 %v4544, %v4546
      %v4548 = vrot.slane %v4534, %v4547
      %v4549 = vcombine.low %v4484, %v4500
      %v4550 = vcombine.high %v4484, %v4500
      %v4552 = vunpack.c.l.s4 1934713408
      %v4553 = vunpack.c.0.s8 %v4552
      %v4554 = vlaneseq
      %v4555 = vshrl.u32 %v4554, 7
      %v4556 = vsub.s32 %v4553, %v4555
      %v4557 = vrot.slane %v4549, %v4556
      %v4559 = vunpack.c.l.s4 1934713408
      %v4560 = vunpack.c.0.s8 %v4559
      %v4561 = vlaneseq
      %v4562 = vshrl.u32 %v4561, 7
      %v4563 = vsub.s32 %v4560, %v4562
      %v4564 = vrot.slane %v4550, %v4563
      %v4565 = vcombine.low %v4509, %v4525
      %v4566 = vcombine.high %v4509, %v4525
      %v4568 = vunpack.c.l.s4 1934713408
      %v4569 = vunpack.c.0.s8 %v4568
      %v4570 = vlaneseq
      %v4571 = vshrl.u32 %v4570, 7
      %v4572 = vsub.s32 %v4569, %v4571
      %v4573 = vrot.slane %v4565, %v4572
      %v4575 = vunpack.c.l.s4 1934713408
      %v4576 = vunpack.c.0.s8 %v4575
      %v4577 = vlaneseq
      %v4578 = vshrl.u32 %v4577, 7
      %v4579 = vsub.s32 %v4576, %v4578
      %v4580 = vrot.slane %v4566, %v4579
      %v4581 = vcombine.low %v4516, %v4532
      %v4582 = vcombine.high %v4516, %v4532
      %v4584 = vunpack.c.l.s4 1934713408
      %v4585 = vunpack.c.0.s8 %v4584
      %v4586 = vlaneseq
      %v4587 = vshrl.u32 %v4586, 7
      %v4588 = vsub.s32 %v4585, %v4587
      %v4589 = vrot.slane %v4581, %v4588
      %v4591 = vunpack.c.l.s4 1934713408
      %v4592 = vunpack.c.0.s8 %v4591
      %v4593 = vlaneseq
      %v4594 = vshrl.u32 %v4593, 7
      %v4595 = vsub.s32 %v4592, %v4594
      %v4596 = vrot.slane %v4582, %v4595
      %v4597 = vcombine.low %v4541, %v4573
      %v4598 = vcombine.high %v4541, %v4573
      %v4599 = vcombine.low %v4548, %v4580
      %v4600 = vcombine.high %v4548, %v4580
      %v4601 = vcombine.low %v4557, %v4589
      %v4602 = vcombine.high %v4557, %v4589
      %v4603 = vcombine.low %v4564, %v4596
      %v4604 = vcombine.high %v4564, %v4596
      %v4605 = vcombine.low %v4182, %v4186
      %v4606 = vcombine.high %v4182, %v4186
      %v4608 = vunpack.c.l.s4 1983009808
      %v4609 = vunpack.c.0.s8 %v4608
      %v4610 = vlaneseq
      %v4611 = vshrl.u32 %v4610, 7
      %v4612 = vsub.s32 %v4609, %v4611
      %v4613 = vrot.slane %v4605, %v4612
      %v4615 = vunpack.c.l.s4 1983009808
      %v4616 = vunpack.c.0.s8 %v4615
      %v4617 = vlaneseq
      %v4618 = vshrl.u32 %v4617, 7
      %v4619 = vsub.s32 %v4616, %v4618
      %v4620 = vrot.slane %v4606, %v4619
      %v4621 = vcombine.low %v4184, %v4188
      %v4622 = vcombine.high %v4184, %v4188
      %v4624 = vunpack.c.l.s4 1983009808
      %v4625 = vunpack.c.0.s8 %v4624
      %v4626 = vlaneseq
      %v4627 = vshrl.u32 %v4626, 7
      %v4628 = vsub.s32 %v4625, %v4627
      %v4629 = vrot.slane %v4621, %v4628
      %v4631 = vunpack.c.l.s4 1983009808
      %v4632 = vunpack.c.0.s8 %v4631
      %v4633 = vlaneseq
      %v4634 = vshrl.u32 %v4633, 7
      %v4635 = vsub.s32 %v4632, %v4634
      %v4636 = vrot.slane %v4622, %v4635
      %v4637 = vcombine.low %v4190, %v4194
      %v4638 = vcombine.high %v4190, %v4194
      %v4640 = vunpack.c.l.s4 1983009808
      %v4641 = vunpack.c.0.s8 %v4640
      %v4642 = vlaneseq
      %v4643 = vshrl.u32 %v4642, 7
      %v4644 = vsub.s32 %v4641, %v4643
      %v4645 = vrot.slane %v4637, %v4644
      %v4647 = vunpack.c.l.s4 1983009808
      %v4648 = vunpack.c.0.s8 %v4647
      %v4649 = vlaneseq
      %v4650 = vshrl.u32 %v4649, 7
      %v4651 = vsub.s32 %v4648, %v4650
      %v4652 = vrot.slane %v4638, %v4651
      %v4653 = vcombine.low %v4192, %v4196
      %v4654 = vcombine.high %v4192, %v4196
      %v4656 = vunpack.c.l.s4 1983009808
      %v4657 = vunpack.c.0.s8 %v4656
      %v4658 = vlaneseq
      %v4659 = vshrl.u32 %v4658, 7
      %v4660 = vsub.s32 %v4657, %v4659
      %v4661 = vrot.slane %v4653, %v4660
      %v4663 = vunpack.c.l.s4 1983009808
      %v4664 = vunpack.c.0.s8 %v4663
      %v4665 = vlaneseq
      %v4666 = vshrl.u32 %v4665, 7
      %v4667 = vsub.s32 %v4664, %v4666
      %v4668 = vrot.slane %v4654, %v4667
      %v4669 = vcombine.low %v4613, %v4629
      %v4670 = vcombine.high %v4613, %v4629
      %v4672 = vunpack.c.l.s4 1934713408
      %v4673 = vunpack.c.0.s8 %v4672
      %v4674 = vlaneseq
      %v4675 = vshrl.u32 %v4674, 7
      %v4676 = vsub.s32 %v4673, %v4675
      %v4677 = vrot.slane %v4669, %v4676
      %v4679 = vunpack.c.l.s4 1934713408
      %v4680 = vunpack.c.0.s8 %v4679
      %v4681 = vlaneseq
      %v4682 = vshrl.u32 %v4681, 7
      %v4683 = vsub.s32 %v4680, %v4682
      %v4684 = vrot.slane %v4670, %v4683
      %v4685 = vcombine.low %v4620, %v4636
      %v4686 = vcombine.high %v4620, %v4636
      %v4688 = vunpack.c.l.s4 1934713408
      %v4689 = vunpack.c.0.s8 %v4688
      %v4690 = vlaneseq
      %v4691 = vshrl.u32 %v4690, 7
      %v4692 = vsub.s32 %v4689, %v4691
      %v4693 = vrot.slane %v4685, %v4692
      %v4695 = vunpack.c.l.s4 1934713408
      %v4696 = vunpack.c.0.s8 %v4695
      %v4697 = vlaneseq
      %v4698 = vshrl.u32 %v4697, 7
      %v4699 = vsub.s32 %v4696, %v4698
      %v4700 = vrot.slane %v4686, %v4699
      %v4701 = vcombine.low %v4645, %v4661
      %v4702 = vcombine.high %v4645, %v4661
      %v4704 = vunpack.c.l.s4 1934713408
      %v4705 = vunpack.c.0.s8 %v4704
      %v4706 = vlaneseq
      %v4707 = vshrl.u32 %v4706, 7
      %v4708 = vsub.s32 %v4705, %v4707
      %v4709 = vrot.slane %v4701, %v4708
      %v4711 = vunpack.c.l.s4 1934713408
      %v4712 = vunpack.c.0.s8 %v4711
      %v4713 = vlaneseq
      %v4714 = vshrl.u32 %v4713, 7
      %v4715 = vsub.s32 %v4712, %v4714
      %v4716 = vrot.slane %v4702, %v4715
      %v4717 = vcombine.low %v4652, %v4668
      %v4718 = vcombine.high %v4652, %v4668
      %v4720 = vunpack.c.l.s4 1934713408
      %v4721 = vunpack.c.0.s8 %v4720
      %v4722 = vlaneseq
      %v4723 = vshrl.u32 %v4722, 7
      %v4724 = vsub.s32 %v4721, %v4723
      %v4725 = vrot.slane %v4717, %v4724
      %v4727 = vunpack.c.l.s4 1934713408
      %v4728 = vunpack.c.0.s8 %v4727
      %v4729 = vlaneseq
      %v4730 = vshrl.u32 %v4729, 7
      %v4731 = vsub.s32 %v4728, %v4730
      %v4732 = vrot.slane %v4718, %v4731
      %v4733 = vcombine.low %v4677, %v4709
      %v4734 = vcombine.high %v4677, %v4709
      %v4735 = vcombine.low %v4684, %v4716
      %v4736 = vcombine.high %v4684, %v4716
      %v4737 = vcombine.low %v4693, %v4725
      %v4738 = vcombine.high %v4693, %v4725
      %v4739 = vcombine.low %v4700, %v4732
      %v4740 = vcombine.high %v4700, %v4732
      %4743 = vrot.lane.b32.xlu0 %v4326, 16
      %v4744 = vpop.permute.xlu0 %4743
      %4745 = vrot.lane.b32.xlu0 %v4462, 16
      %v4746 = vpop.permute.xlu0 %4745
      %4751 = vrot.lane.b32.xlu0 %v4327, 32
      %v4752 = vpop.permute.xlu0 %4751
      %4753 = vrot.lane.b32.xlu0 %v4463, 32
      %v4754 = vpop.permute.xlu0 %4753
      %4759 = vrot.lane.b32.xlu0 %v4328, 48
      %v4760 = vpop.permute.xlu0 %4759
      %4761 = vrot.lane.b32.xlu0 %v4464, 48
      %v4762 = vpop.permute.xlu0 %4761
      %4767 = vrot.lane.b32.xlu0 %v4329, 64
      %v4768 = vpop.permute.xlu0 %4767
      %4769 = vrot.lane.b32.xlu0 %v4465, 64
      %v4770 = vpop.permute.xlu0 %4769
      %4775 = vrot.lane.b32.xlu0 %v4330, 80
      %v4776 = vpop.permute.xlu0 %4775
      %4777 = vrot.lane.b32.xlu0 %v4466, 80
      %v4778 = vpop.permute.xlu0 %4777
      %4783 = vrot.lane.b32.xlu0 %v4331, 96
      %v4784 = vpop.permute.xlu0 %4783
      %4785 = vrot.lane.b32.xlu0 %v4467, 96
      %v4786 = vpop.permute.xlu0 %4785
      %4791 = vrot.lane.b32.xlu0 %v4332, 112
      %v4792 = vpop.permute.xlu0 %4791
      %4793 = vrot.lane.b32.xlu0 %v4468, 112
      %v4794 = vpop.permute.xlu0 %4793
      %4799 = vrot.lane.b32.xlu0 %v4598, 16
      %v4800 = vpop.permute.xlu0 %4799
      %4801 = vrot.lane.b32.xlu0 %v4734, 16
      %v4802 = vpop.permute.xlu0 %4801
      %4807 = vrot.lane.b32.xlu0 %v4599, 32
      %v4808 = vpop.permute.xlu0 %4807
      %4809 = vrot.lane.b32.xlu0 %v4735, 32
      %v4810 = vpop.permute.xlu0 %4809
      %4815 = vrot.lane.b32.xlu0 %v4600, 48
      %v4816 = vpop.permute.xlu0 %4815
      %4817 = vrot.lane.b32.xlu0 %v4736, 48
      %v4818 = vpop.permute.xlu0 %4817
      %4823 = vrot.lane.b32.xlu0 %v4601, 64
      %v4824 = vpop.permute.xlu0 %4823
      %4825 = vrot.lane.b32.xlu0 %v4737, 64
      %v4826 = vpop.permute.xlu0 %4825
      %4831 = vrot.lane.b32.xlu0 %v4602, 80
      %v4832 = vpop.permute.xlu0 %4831
      %4833 = vrot.lane.b32.xlu0 %v4738, 80
      %v4834 = vpop.permute.xlu0 %4833
      %4839 = vrot.lane.b32.xlu0 %v4603, 96
      %v4840 = vpop.permute.xlu0 %4839
      %4841 = vrot.lane.b32.xlu0 %v4739, 96
      %v4842 = vpop.permute.xlu0 %4841
      %4847 = vrot.lane.b32.xlu0 %v4604, 112
      %v4848 = vpop.permute.xlu0 %4847
      %4849 = vrot.lane.b32.xlu0 %v4740, 112
      %v4850 = vpop.permute.xlu0 %4849
      %v4853 = vsel %vm868, %v4325, %v4744
      %v4854 = vsel %vm868, %v4461, %v4746
      %v4855 = vsel %vm923, %v4853, %v4752
      %v4856 = vsel %vm923, %v4854, %v4754
      %v4857 = vsel %vm1353, %v4855, %v4760
      %v4858 = vsel %vm1353, %v4856, %v4762
      %vm4859 = vcmask 523264
      %v4860 = vsel %vm4859, %v4857, %v4768
      %v4861 = vsel %vm4859, %v4858, %v4770
      %vm4862 = vcmask 654336
      %v4863 = vsel %vm4862, %v4860, %v4776
      %v4864 = vsel %vm4862, %v4861, %v4778
      %vm4865 = vcmask 785408
      %v4866 = vsel %vm4865, %v4863, %v4784
      %v4867 = vsel %vm4865, %v4864, %v4786
      %vm4868 = vcmask 916480
      %v4869 = vsel %vm4868, %v4866, %v4792
      %v4870 = vsel %vm4868, %v4867, %v4794
      %v4871 = vsel %vm868, %v4597, %v4800
      %v4872 = vsel %vm868, %v4733, %v4802
      %v4873 = vsel %vm923, %v4871, %v4808
      %v4874 = vsel %vm923, %v4872, %v4810
      %v4875 = vsel %vm1353, %v4873, %v4816
      %v4876 = vsel %vm1353, %v4874, %v4818
      %v4877 = vsel %vm4859, %v4875, %v4824
      %v4878 = vsel %vm4859, %v4876, %v4826
      %v4879 = vsel %vm4862, %v4877, %v4832
      %v4880 = vsel %vm4862, %v4878, %v4834
      %v4881 = vsel %vm4865, %v4879, %v4840
      %v4882 = vsel %vm4865, %v4880, %v4842
      %v4883 = vsel %vm4868, %v4881, %v4848
      %v4884 = vsel %vm4868, %v4882, %v4850
      %4885 = vst [vmem:[%s302] sm:$0xff] %v4869
      %4886 = vst [vmem:[%s302 + $0x8] sm:$0xff] %v4883
      %4887 = vst [vmem:[%s302 + $0x10] sm:$0xff] %v4870
      %4888 = vst [vmem:[%s302 + $0x18] sm:$0xff] %v4884
      %s4889 = smul.u32 2, %s23
      %p4890 = scmp.lt.s32.totalorder %s22, 1
      %s4891 = scalar_select %p4890, %s22, 1
      %p4892 = scmp.lt.s32.totalorder %s4889, 1
      %s4893 = scalar_select %p4892, %s4889, 1
      %s4894 = smul.addr %s4893, 2
      %s4895 = smul.addr %s4891, 4
      %s4896 = sadd.s32 %s4894, %s4895
      %s4897 = smul.addr %s4896, 8
      %s4898 = scalar_lea.vmem %s7, %s4897
      // Predicated region
      $region49: #{birealnet_block.1} parent=47 // pred_check
        %p4899 = pneg %p202
      $region50: #{birealnet_block.1} parent=47 // pred_check_branch
        %4901 = sbr.rel (%p4899) target = $region52
      $region51: #{birealnet_block.1} parent=47 // pred_region
        %s4902 = smul.u32 2, %s23
      $region52: #{birealnet_block.1} parent=47 // pred_fallthru
        _
    $region48: #{birealnet_block.1} parent=5 // pred_fallthru
      _
    %p4903 = scmp.le.s32.totalorder 2, %s13
    // Predicated region
    $region53: #{birealnet_block.1} parent=5 // pred_check
      %p4904 = pneg %p4903
    $region54: #{birealnet_block.1} parent=5 // pred_check_branch
      %4906 = sbr.rel (%p4904) target = $region56
    $region55: #{birealnet_block.1} parent=5 // pred_region
      %s4907 = ssub.s32 %s13, 2
      // Predicated region
      $region57: #{birealnet_block.1} parent=55 // pred_check
        %p4908 = pneg %p208
      $region58: #{birealnet_block.1} parent=55 // pred_check_branch
        %4910 = sbr.rel (%p4908) target = $region60
      $region59: #{birealnet_block.1} parent=55 // pred_region
        %s4911 = smul.u32 2, %s25
        %p4912 = scmp.lt.s32.totalorder %s24, 1
        %s4913 = scalar_select %p4912, %s24, 1
        %p4914 = scmp.lt.s32.totalorder %s4911, 1
        %s4915 = scalar_select %p4914, %s4911, 1
        %s4916 = smul.addr %s4915, 2
        %s4917 = smul.addr %s4913, 4
        %s4918 = sadd.s32 %s4916, %s4917
        %s4919 = smul.addr %s4918, 8
        %s4920 = scalar_lea.vmem %s7, %s4919
      $region60: #{birealnet_block.1} parent=55 // pred_fallthru
        _
    $region56: #{birealnet_block.1} parent=5 // pred_fallthru
      _
  $region6: #{birealnet_block.1} parent=0 // loop_footer
    %s17 = sadd.s32 1, %s13
  $region7: #{birealnet_block.1} parent=0 // loop_footer_branch
    %12 = sbr.rel target = $region3
  $region8: #{birealnet_block.1} parent=0 // loop_exit
    _

</llo_original>
